<compile_context>
chip_gen: v5e
topology: v5e:2x2
jax: 0.10.0
libtpu: 0.0.40
codegen_flags: <defaults>
</compile_context>

<pallas_src>
from functools import partial

import numpy as np
import jax
import jax.numpy as jnp
from jax.experimental import pallas as pl

BN_EPS = 1e-5
OUT_WIDTH = 128        # lane-dense packed output slab width (>= n_actions + 2)


def _full_spec(shape):
    # Whole-array block (no grid) — block_shape equals full array dims.
    return pl.BlockSpec(shape, lambda: tuple(0 for _ in shape))


# ----------------------------------------------------------------------------
# Fused forward kernel
# ----------------------------------------------------------------------------
def fused_forward_kernel(img_ref, *refs, n_actions):
    conv_refs = refs[:15]                                   # 3 x (Toeplitz, gamma, beta, R, Rt)
    w1_ref, b1_ref, wva_ref, bva_ref, wfin_ref, bfin_ref = refs[15:21]
    out_ref = refs[21]

    x = img_ref[...]                                        # (B, H*W*3), (h,w,c) flattened
    bsz = x.shape[0]

    for li in range(3):
        m_ref, g_ref, bt_ref, r_ref, rt_ref = conv_refs[5 * li:5 * (li + 1)]
        # Conv2d(valid, stride 1) as one 2D matmul with the precomputed block-Toeplitz matrix.
        # Conv bias is omitted: it cancels exactly under the training-mode BatchNorm below.
        y = jnp.dot(x, m_ref[...], preferred_element_type=jnp.float32)                 # (B, S*C)
        # BatchNorm (training-mode batch stats over N,H,W), single pass:
        # per-channel sums via channel-pooling matmul R (S*C, C).
        spatial = r_ref.shape[0] // r_ref.shape[1]
        inv_n = 1.0 / float(bsz * spatial)
        ch = jnp.dot(y, r_ref[...], preferred_element_type=jnp.float32)                # (B, C)
        chsq = jnp.dot(y * y, r_ref[...], preferred_element_type=jnp.float32)          # (B, C)
        mean = jnp.sum(ch, axis=0, keepdims=True) * inv_n                              # (1, C)
        ex2 = jnp.sum(chsq, axis=0, keepdims=True) * inv_n
        var = ex2 - mean * mean                                                        # biased var
        scale = g_ref[...] * jax.lax.rsqrt(var + BN_EPS)
        shift = bt_ref[...] - mean * scale
        # Broadcast per-channel scale/shift back to the (h,w,c) lane layout via Rt (C, S*C).
        scale_full = jnp.dot(scale, rt_ref[...], preferred_element_type=jnp.float32)
        shift_full = jnp.dot(shift, rt_ref[...], preferred_element_type=jnp.float32)
        x = jnp.maximum(y * scale_full + shift_full, 0.0)                              # ReLU

    # Head: fc1 (weight rows pre-permuted for (h,w,c) flatten), fused fc2_val|fc2_act,
    # fused [pd | vf_ext | vf_int] into a lane-dense packed slab.
    emb = jnp.dot(x, w1_ref[...], preferred_element_type=jnp.float32) + b1_ref[...]    # (B, hidden)
    va = jnp.maximum(
        jnp.dot(emb, wva_ref[...], preferred_element_type=jnp.float32) + bva_ref[...], 0.0)  # [val|act]
    z = jnp.dot(va, wfin_ref[...], preferred_element_type=jnp.float32) + bfin_ref[...]       # (B, OUT_W)

    # log_softmax only over the pd columns; value columns pass through untouched.
    lane = jax.lax.broadcasted_iota(jnp.int32, z.shape, 1)
    is_pd = lane < n_actions
    pd_masked = jnp.where(is_pd, z, -1e30)
    m = jnp.max(pd_masked, axis=1, keepdims=True)
    lse = m + jnp.log(jnp.sum(jnp.exp(pd_masked - m), axis=1, keepdims=True))
    out_ref[...] = jnp.where(is_pd, z - lse, z)


# ----------------------------------------------------------------------------
# Pallas wrapper
# ----------------------------------------------------------------------------
def forward_pallas(kp, image, memory):
    """Mirrors WorldsPolicyModel.forward (use_memory=False, use_text=False).

    Returns (log_softmax logits, (vpred_ext, vpred_int), memory).
    """
    B = image.shape[0]
    img2d = image.astype(jnp.float32).reshape(B, -1)        # NHWC row-major flatten (free)
    args = (img2d,) + kp["consts"]
    out = pl.pallas_call(
        partial(fused_forward_kernel, n_actions=kp["n_actions"]),
        out_shape=jax.ShapeDtypeStruct((B, kp["out_width"]), jnp.float32),
        in_specs=[_full_spec(a.shape) for a in args],
        out_specs=_full_spec((B, kp["out_width"])),
    )(*args)
    n_a = kp["n_actions"]
    logits = out[:, :n_a]
    vext = out[:, n_a]
    vint = out[:, n_a + 1]
    return logits, (vext, vint), memory                     # memory unchanged (use_memory=False)


# ----------------------------------------------------------------------------
# Init-time constant construction (host-side, done once)
# ----------------------------------------------------------------------------
def conv_to_matrix(kern, H, W):
    """(kh,kw,cin,cout) valid/stride-1 conv as a (H*W*cin, Ho*Wo*cout) block-Toeplitz matrix,
    both sides flattened in (h, w, c) order."""
    kh, kw, cin, cout = kern.shape
    Ho, Wo = H - kh + 1, W - kw + 1
    M = np.zeros((H * W * cin, Ho * Wo * cout), np.float32)
    for oh in range(Ho):
        for ow in range(Wo):
            c0 = (oh * Wo + ow) * cout
            for i in range(kh):
                for j in range(kw):
                    r0 = ((oh + i) * W + (ow + j)) * cin
                    M[r0:r0 + cin, c0:c0 + cout] = kern[i, j]
    return M


def prepare_pallas_params(params, img_hw, out_width=OUT_WIDTH):
    H, W = img_hw
    consts = []
    h, w = H, W
    last_c = 3
    for (kern, bias, gamma, beta) in params["convs"]:
        del bias  # conv bias cancels exactly under training-mode BatchNorm (see header note)
        kern_np = np.asarray(kern)
        kh, kw, _, cout = kern_np.shape
        ho, wo = h - kh + 1, w - kw + 1
        S = ho * wo
        M = conv_to_matrix(kern_np, h, w)                               # (h*w*cin, S*cout)
        R = np.tile(np.eye(cout, dtype=np.float32), (S, 1))             # (S*cout, cout) channel pool
        Rt = np.ascontiguousarray(R.T)                                  # (cout, S*cout) broadcast
        consts += [jnp.asarray(M), jnp.asarray(gamma), jnp.asarray(beta),
                   jnp.asarray(R), jnp.asarray(Rt)]
        h, w, last_c = ho, wo, cout

    hd = params["head"]
    C = last_c
    n_actions = int(hd["wpd"].shape[1])
    mem = int(hd["wv"].shape[1])
    assert n_actions + 2 <= out_width

    # fc1 rows are in PyTorch (c,h,w) flatten order; permute once to accept (h,w,c).
    chw = np.arange(C * h * w).reshape(C, h, w)
    hwc_to_chw = chw.transpose(1, 2, 0).reshape(-1)
    w1_hwc = np.asarray(hd["w1"])[hwc_to_chw]

    # fc2_val | fc2_act fused into one matmul.
    wva = np.concatenate([np.asarray(hd["wv"]), np.asarray(hd["wa"])], axis=1)   # (hidden, 2*mem)
    bva = np.concatenate([np.asarray(hd["bv"]), np.asarray(hd["ba"])], axis=1)

    # pd | vf_ext | vf_int fused into one lane-dense (2*mem, out_width) matmul.
    wfin = np.zeros((2 * mem, out_width), np.float32)
    wfin[mem:, :n_actions] = np.asarray(hd["wpd"])           # act -> pd
    wfin[:mem, n_actions] = np.asarray(hd["wve"])[:, 0]      # val -> vf_ext
    wfin[:mem, n_actions + 1] = np.asarray(hd["wvi"])[:, 0]  # val -> vf_int
    bfin = np.zeros((1, out_width), np.float32)
    bfin[0, :n_actions] = np.asarray(hd["bpd"])[0]
    bfin[0, n_actions] = np.asarray(hd["bve"])[0, 0]
    bfin[0, n_actions + 1] = np.asarray(hd["bvi"])[0, 0]

    consts += [jnp.asarray(w1_hwc), jnp.asarray(hd["b1"]),
               jnp.asarray(wva), jnp.asarray(bva),
               jnp.asarray(wfin), jnp.asarray(bfin)]
    return {"consts": tuple(consts), "n_actions": n_actions, "out_width": int(out_width)}


# ----------------------------------------------------------------------------
# Pure-JAX reference (PyTorch-faithful: conv bias included, NCHW flatten, separate heads)
# ----------------------------------------------------------------------------
def forward_ref(params, image, memory):
    hi = jax.lax.Precision.HIGHEST
    x = image.astype(jnp.float32)                            # NHWC
    for (kern, bias, gamma, beta) in params["convs"]:
        y = jax.lax.conv_general_dilated(
            x, kern, window_strides=(1, 1), padding="VALID",
            dimension_numbers=("NHWC", "HWIO", "NHWC"), precision=hi)
        y = y + bias.reshape(1, 1, 1, -1)
        mean = jnp.mean(y, axis=(0, 1, 2), keepdims=True)
        var = jnp.mean(jnp.square(y - mean), axis=(0, 1, 2), keepdims=True)   # biased (PyTorch BN fwd)
        x = jnp.maximum((y - mean) * jax.lax.rsqrt(var + BN_EPS)
                        * gamma.reshape(1, 1, 1, -1) + beta.reshape(1, 1, 1, -1), 0.0)
    B = x.shape[0]
    flat = jnp.transpose(x, (0, 3, 1, 2)).reshape(B, -1)     # PyTorch NCHW flatten
    hd = params["head"]
    dot = lambda a, b: jnp.dot(a, b, precision=hi)
    emb = dot(flat, hd["w1"]) + hd["b1"]
    val = jnp.maximum(dot(emb, hd["wv"]) + hd["bv"], 0.0)
    act = jnp.maximum(dot(emb, hd["wa"]) + hd["ba"], 0.0)
    vint = dot(val, hd["wvi"]) + hd["bvi"]
    vext = dot(val, hd["wve"]) + hd["bve"]
    pd = dot(act, hd["wpd"]) + hd["bpd"]
    logits = pd - jax.scipy.special.logsumexp(pd, axis=1, keepdims=True)
    return logits, (vext[:, 0], vint[:, 0]), memory


# ----------------------------------------------------------------------------
# Deterministic parameter init (synthetic; shapes follow WorldsPolicyModel.__init__)
# ----------------------------------------------------------------------------
def init_params(key, img_hw=(7, 7), hidden_size=128, memory_size=128, n_actions=7):
    keys = iter(jax.random.split(key, 64))

    def nk():
        return next(keys)

    def dense(fan_in, fan_out):
        w = jax.random.normal(nk(), (fan_in, fan_out), jnp.float32) / np.sqrt(fan_in)
        b = 0.1 * jax.random.normal(nk(), (1, fan_out), jnp.float32)
        return w, b

    convs = []
    for kh, kw, cin, cout in [(3, 3, 3, 16), (2, 2, 16, 32), (2, 2, 32, 64)]:
        kern = jax.random.normal(nk(), (kh, kw, cin, cout), jnp.float32) / np.sqrt(kh * kw * cin)
        bias = 0.1 * jax.random.normal(nk(), (1, cout), jnp.float32)
        gamma = 1.0 + 0.1 * jax.random.normal(nk(), (1, cout), jnp.float32)
        beta = 0.1 * jax.random.normal(nk(), (1, cout), jnp.float32)
        convs.append((kern, bias, gamma, beta))

    n, m = img_hw
    image_embedding_size = (n - 4) * (m - 4) * 64

    w1, b1 = dense(image_embedding_size, hidden_size)   # rows in PyTorch (c,h,w) flatten order
    wv, bv = dense(hidden_size, memory_size)            # fc2_val
    wa, ba = dense(hidden_size, memory_size)            # fc2_act
    wvi, bvi = dense(memory_size, 1)                    # vf_int
    wve, bve = dense(memory_size, 1)                    # vf_ext
    wpd, bpd = dense(memory_size, n_actions)            # pd

    head = dict(w1=w1, b1=b1, wv=wv, bv=bv, wa=wa, ba=ba,
                wvi=wvi, bvi=bvi, wve=wve, bve=bve, wpd=wpd, bpd=bpd)
    return {"convs": convs, "head": head}


# ----------------------------------------------------------------------------
if __name__ == "__main__":
    key = jax.random.PRNGKey(0)
    k_img, k_mem, k_par = jax.random.split(key, 3)

    B, H, W = 8, 7, 7            # minigrid-style 7x7x3 observations; B=8 fills one sublane group
    n_actions = 7
    memory_size = 128

    image = jax.random.uniform(k_img, (B, H, W, 3), jnp.float32, 0.0, 10.0)
    memory = jax.random.normal(k_mem, (B, memory_size), jnp.float32)
    params = init_params(k_par, img_hw=(H, W), n_actions=n_actions)
    kparams = prepare_pallas_params(params, (H, W))

    fwd = jax.jit(lambda img, mem: forward_pallas(kparams, img, mem))
    logits, (vpred_ext, vpred_int), mem_out = fwd(image, memory)
    jax.block_until_ready((logits, vpred_ext, vpred_int, mem_out))

    # validate against a PyTorch-faithful pure-JAX reference (conv bias included, NCHW flatten)
    ref_logits, (ref_vext, ref_vint), ref_mem = forward_ref(params, image, memory)
    assert np.allclose(np.asarray(logits), np.asarray(ref_logits), atol=1e-2, rtol=1e-2)
    assert np.allclose(np.asarray(vpred_ext), np.asarray(ref_vext), atol=1e-2, rtol=1e-2)
    assert np.allclose(np.asarray(vpred_int), np.asarray(ref_vint), atol=1e-2, rtol=1e-2)
    assert np.allclose(np.asarray(mem_out), np.asarray(ref_mem))
    assert np.allclose(np.exp(np.asarray(logits)).sum(axis=1), 1.0, atol=1e-3)

    print("KERNEL_OK")
</pallas_src>

<mosaic_0001>
module attributes {stable_mosaic.version = 11 : i64} {
  func.func @fused_forward_kernel(%arg0: memref<8x147xf32, #tpu.memory_space<vmem>>, %arg1: memref<147x400xf32, #tpu.memory_space<vmem>>, %arg2: memref<1x16xf32, #tpu.memory_space<vmem>>, %arg3: memref<1x16xf32, #tpu.memory_space<vmem>>, %arg4: memref<400x16xf32, #tpu.memory_space<vmem>>, %arg5: memref<16x400xf32, #tpu.memory_space<vmem>>, %arg6: memref<400x512xf32, #tpu.memory_space<vmem>>, %arg7: memref<1x32xf32, #tpu.memory_space<vmem>>, %arg8: memref<1x32xf32, #tpu.memory_space<vmem>>, %arg9: memref<512x32xf32, #tpu.memory_space<vmem>>, %arg10: memref<32x512xf32, #tpu.memory_space<vmem>>, %arg11: memref<512x576xf32, #tpu.memory_space<vmem>>, %arg12: memref<1x64xf32, #tpu.memory_space<vmem>>, %arg13: memref<1x64xf32, #tpu.memory_space<vmem>>, %arg14: memref<576x64xf32, #tpu.memory_space<vmem>>, %arg15: memref<64x576xf32, #tpu.memory_space<vmem>>, %arg16: memref<576x128xf32, #tpu.memory_space<vmem>>, %arg17: memref<1x128xf32, #tpu.memory_space<vmem>>, %arg18: memref<128x256xf32, #tpu.memory_space<vmem>>, %arg19: memref<1x256xf32, #tpu.memory_space<vmem>>, %arg20: memref<256x128xf32, #tpu.memory_space<vmem>>, %arg21: memref<1x128xf32, #tpu.memory_space<vmem>>, %arg22: memref<8x128xf32, #tpu.memory_space<vmem>>) attributes {dimension_semantics = [], scalar_prefetch = 0 : i64, scratch_operands = 0 : i64, tpu.core_type = #tpu.core_type<tc>} {
    %c0 = arith.constant 0 : index
    %c0_0 = arith.constant 0 : index
    %0 = vector.load %arg0[%c0, %c0_0] : memref<8x147xf32, #tpu.memory_space<vmem>>, vector<8x147xf32>
    %c0_1 = arith.constant 0 : index
    %c0_2 = arith.constant 0 : index
    %1 = vector.load %arg1[%c0_1, %c0_2] : memref<147x400xf32, #tpu.memory_space<vmem>>, vector<147x400xf32>
    %cst = arith.constant dense<0.000000e+00> : vector<8x400xf32>
    %2 = tpu.matmul %0, %1, %cst {dimension_numbers = #tpu.dot_dimension_numbers<[1], [0], [0], [1], [0, 0, 1, 1], [], []>} : vector<8x147xf32>, vector<147x400xf32>, vector<8x400xf32> -> vector<8x400xf32>
    %c0_3 = arith.constant 0 : index
    %c0_4 = arith.constant 0 : index
    %3 = vector.load %arg4[%c0_3, %c0_4] : memref<400x16xf32, #tpu.memory_space<vmem>>, vector<400x16xf32>
    %cst_5 = arith.constant dense<0.000000e+00> : vector<8x16xf32>
    %4 = tpu.matmul %2, %3, %cst_5 {dimension_numbers = #tpu.dot_dimension_numbers<[1], [0], [0], [1], [0, 0, 1, 1], [], []>} : vector<8x400xf32>, vector<400x16xf32>, vector<8x16xf32> -> vector<8x16xf32>
    %5 = arith.mulf %2, %2 : vector<8x400xf32>
    %c0_6 = arith.constant 0 : index
    %c0_7 = arith.constant 0 : index
    %6 = vector.load %arg4[%c0_6, %c0_7] : memref<400x16xf32, #tpu.memory_space<vmem>>, vector<400x16xf32>
    %cst_8 = arith.constant dense<0.000000e+00> : vector<8x16xf32>
    %7 = tpu.matmul %5, %6, %cst_8 {dimension_numbers = #tpu.dot_dimension_numbers<[1], [0], [0], [1], [0, 0, 1, 1], [], []>} : vector<8x400xf32>, vector<400x16xf32>, vector<8x16xf32> -> vector<8x16xf32>
    %cst_9 = arith.constant dense<0.000000e+00> : vector<16xf32>
    %8 = vector.multi_reduction <add>, %4, %cst_9 [0] : vector<8x16xf32> to vector<16xf32>
    %9 = vector.shape_cast %8 : vector<16xf32> to vector<1x16xf32>
    %cst_10 = arith.constant 5.000000e-03 : f32
    %10 = vector.broadcast %cst_10 : f32 to vector<1x16xf32>
    %11 = arith.mulf %9, %10 : vector<1x16xf32>
    %cst_11 = arith.constant dense<0.000000e+00> : vector<16xf32>
    %12 = vector.multi_reduction <add>, %7, %cst_11 [0] : vector<8x16xf32> to vector<16xf32>
    %13 = vector.shape_cast %12 : vector<16xf32> to vector<1x16xf32>
    %cst_12 = arith.constant 5.000000e-03 : f32
    %14 = vector.broadcast %cst_12 : f32 to vector<1x16xf32>
    %15 = arith.mulf %13, %14 : vector<1x16xf32>
    %16 = arith.mulf %11, %11 : vector<1x16xf32>
    %17 = arith.subf %15, %16 : vector<1x16xf32>
    %c0_13 = arith.constant 0 : index
    %c0_14 = arith.constant 0 : index
    %18 = vector.load %arg2[%c0_13, %c0_14] : memref<1x16xf32, #tpu.memory_space<vmem>>, vector<1x16xf32>
    %cst_15 = arith.constant 9.99999974E-6 : f32
    %19 = vector.broadcast %cst_15 : f32 to vector<1x16xf32>
    %20 = arith.addf %17, %19 : vector<1x16xf32>
    %21 = math.rsqrt %20 : vector<1x16xf32>
    %22 = arith.mulf %18, %21 : vector<1x16xf32>
    %c0_16 = arith.constant 0 : index
    %c0_17 = arith.constant 0 : index
    %23 = vector.load %arg3[%c0_16, %c0_17] : memref<1x16xf32, #tpu.memory_space<vmem>>, vector<1x16xf32>
    %24 = arith.mulf %11, %22 : vector<1x16xf32>
    %25 = arith.subf %23, %24 : vector<1x16xf32>
    %c0_18 = arith.constant 0 : index
    %c0_19 = arith.constant 0 : index
    %26 = vector.load %arg5[%c0_18, %c0_19] : memref<16x400xf32, #tpu.memory_space<vmem>>, vector<16x400xf32>
    %cst_20 = arith.constant dense<0.000000e+00> : vector<1x400xf32>
    %27 = tpu.matmul %22, %26, %cst_20 {dimension_numbers = #tpu.dot_dimension_numbers<[1], [0], [0], [1], [0, 0, 1, 1], [], []>} : vector<1x16xf32>, vector<16x400xf32>, vector<1x400xf32> -> vector<1x400xf32>
    %c0_21 = arith.constant 0 : index
    %c0_22 = arith.constant 0 : index
    %28 = vector.load %arg5[%c0_21, %c0_22] : memref<16x400xf32, #tpu.memory_space<vmem>>, vector<16x400xf32>
    %cst_23 = arith.constant dense<0.000000e+00> : vector<1x400xf32>
    %29 = tpu.matmul %25, %28, %cst_23 {dimension_numbers = #tpu.dot_dimension_numbers<[1], [0], [0], [1], [0, 0, 1, 1], [], []>} : vector<1x16xf32>, vector<16x400xf32>, vector<1x400xf32> -> vector<1x400xf32>
    %30 = vector.broadcast %27 : vector<1x400xf32> to vector<8x400xf32>
    %31 = arith.mulf %2, %30 : vector<8x400xf32>
    %32 = vector.broadcast %29 : vector<1x400xf32> to vector<8x400xf32>
    %33 = arith.addf %31, %32 : vector<8x400xf32>
    %cst_24 = arith.constant 0.000000e+00 : f32
    %34 = vector.broadcast %cst_24 : f32 to vector<8x400xf32>
    %35 = arith.maximumf %33, %34 : vector<8x400xf32>
    %c0_25 = arith.constant 0 : index
    %c0_26 = arith.constant 0 : index
    %36 = vector.load %arg6[%c0_25, %c0_26] : memref<400x512xf32, #tpu.memory_space<vmem>>, vector<400x512xf32>
    %cst_27 = arith.constant dense<0.000000e+00> : vector<8x512xf32>
    %37 = tpu.matmul %35, %36, %cst_27 {dimension_numbers = #tpu.dot_dimension_numbers<[1], [0], [0], [1], [0, 0, 1, 1], [], []>} : vector<8x400xf32>, vector<400x512xf32>, vector<8x512xf32> -> vector<8x512xf32>
    %c0_28 = arith.constant 0 : index
    %c0_29 = arith.constant 0 : index
    %38 = vector.load %arg9[%c0_28, %c0_29] : memref<512x32xf32, #tpu.memory_space<vmem>>, vector<512x32xf32>
    %cst_30 = arith.constant dense<0.000000e+00> : vector<8x32xf32>
    %39 = tpu.matmul %37, %38, %cst_30 {dimension_numbers = #tpu.dot_dimension_numbers<[1], [0], [0], [1], [0, 0, 1, 1], [], []>} : vector<8x512xf32>, vector<512x32xf32>, vector<8x32xf32> -> vector<8x32xf32>
    %40 = arith.mulf %37, %37 : vector<8x512xf32>
    %c0_31 = arith.constant 0 : index
    %c0_32 = arith.constant 0 : index
    %41 = vector.load %arg9[%c0_31, %c0_32] : memref<512x32xf32, #tpu.memory_space<vmem>>, vector<512x32xf32>
    %cst_33 = arith.constant dense<0.000000e+00> : vector<8x32xf32>
    %42 = tpu.matmul %40, %41, %cst_33 {dimension_numbers = #tpu.dot_dimension_numbers<[1], [0], [0], [1], [0, 0, 1, 1], [], []>} : vector<8x512xf32>, vector<512x32xf32>, vector<8x32xf32> -> vector<8x32xf32>
    %cst_34 = arith.constant dense<0.000000e+00> : vector<32xf32>
    %43 = vector.multi_reduction <add>, %39, %cst_34 [0] : vector<8x32xf32> to vector<32xf32>
    %44 = vector.shape_cast %43 : vector<32xf32> to vector<1x32xf32>
    %cst_35 = arith.constant 7.812500e-03 : f32
    %45 = vector.broadcast %cst_35 : f32 to vector<1x32xf32>
    %46 = arith.mulf %44, %45 : vector<1x32xf32>
    %cst_36 = arith.constant dense<0.000000e+00> : vector<32xf32>
    %47 = vector.multi_reduction <add>, %42, %cst_36 [0] : vector<8x32xf32> to vector<32xf32>
    %48 = vector.shape_cast %47 : vector<32xf32> to vector<1x32xf32>
    %cst_37 = arith.constant 7.812500e-03 : f32
    %49 = vector.broadcast %cst_37 : f32 to vector<1x32xf32>
    %50 = arith.mulf %48, %49 : vector<1x32xf32>
    %51 = arith.mulf %46, %46 : vector<1x32xf32>
    %52 = arith.subf %50, %51 : vector<1x32xf32>
    %c0_38 = arith.constant 0 : index
    %c0_39 = arith.constant 0 : index
    %53 = vector.load %arg7[%c0_38, %c0_39] : memref<1x32xf32, #tpu.memory_space<vmem>>, vector<1x32xf32>
    %cst_40 = arith.constant 9.99999974E-6 : f32
    %54 = vector.broadcast %cst_40 : f32 to vector<1x32xf32>
    %55 = arith.addf %52, %54 : vector<1x32xf32>
    %56 = math.rsqrt %55 : vector<1x32xf32>
    %57 = arith.mulf %53, %56 : vector<1x32xf32>
    %c0_41 = arith.constant 0 : index
    %c0_42 = arith.constant 0 : index
    %58 = vector.load %arg8[%c0_41, %c0_42] : memref<1x32xf32, #tpu.memory_space<vmem>>, vector<1x32xf32>
    %59 = arith.mulf %46, %57 : vector<1x32xf32>
    %60 = arith.subf %58, %59 : vector<1x32xf32>
    %c0_43 = arith.constant 0 : index
    %c0_44 = arith.constant 0 : index
    %61 = vector.load %arg10[%c0_43, %c0_44] : memref<32x512xf32, #tpu.memory_space<vmem>>, vector<32x512xf32>
    %cst_45 = arith.constant dense<0.000000e+00> : vector<1x512xf32>
    %62 = tpu.matmul %57, %61, %cst_45 {dimension_numbers = #tpu.dot_dimension_numbers<[1], [0], [0], [1], [0, 0, 1, 1], [], []>} : vector<1x32xf32>, vector<32x512xf32>, vector<1x512xf32> -> vector<1x512xf32>
    %c0_46 = arith.constant 0 : index
    %c0_47 = arith.constant 0 : index
    %63 = vector.load %arg10[%c0_46, %c0_47] : memref<32x512xf32, #tpu.memory_space<vmem>>, vector<32x512xf32>
    %cst_48 = arith.constant dense<0.000000e+00> : vector<1x512xf32>
    %64 = tpu.matmul %60, %63, %cst_48 {dimension_numbers = #tpu.dot_dimension_numbers<[1], [0], [0], [1], [0, 0, 1, 1], [], []>} : vector<1x32xf32>, vector<32x512xf32>, vector<1x512xf32> -> vector<1x512xf32>
    %65 = vector.broadcast %62 : vector<1x512xf32> to vector<8x512xf32>
    %66 = arith.mulf %37, %65 : vector<8x512xf32>
    %67 = vector.broadcast %64 : vector<1x512xf32> to vector<8x512xf32>
    %68 = arith.addf %66, %67 : vector<8x512xf32>
    %cst_49 = arith.constant 0.000000e+00 : f32
    %69 = vector.broadcast %cst_49 : f32 to vector<8x512xf32>
    %70 = arith.maximumf %68, %69 : vector<8x512xf32>
    %c0_50 = arith.constant 0 : index
    %c0_51 = arith.constant 0 : index
    %71 = vector.load %arg11[%c0_50, %c0_51] : memref<512x576xf32, #tpu.memory_space<vmem>>, vector<512x576xf32>
    %cst_52 = arith.constant dense<0.000000e+00> : vector<8x576xf32>
    %72 = tpu.matmul %70, %71, %cst_52 {dimension_numbers = #tpu.dot_dimension_numbers<[1], [0], [0], [1], [0, 0, 1, 1], [], []>} : vector<8x512xf32>, vector<512x576xf32>, vector<8x576xf32> -> vector<8x576xf32>
    %c0_53 = arith.constant 0 : index
    %c0_54 = arith.constant 0 : index
    %73 = vector.load %arg14[%c0_53, %c0_54] : memref<576x64xf32, #tpu.memory_space<vmem>>, vector<576x64xf32>
    %cst_55 = arith.constant dense<0.000000e+00> : vector<8x64xf32>
    %74 = tpu.matmul %72, %73, %cst_55 {dimension_numbers = #tpu.dot_dimension_numbers<[1], [0], [0], [1], [0, 0, 1, 1], [], []>} : vector<8x576xf32>, vector<576x64xf32>, vector<8x64xf32> -> vector<8x64xf32>
    %75 = arith.mulf %72, %72 : vector<8x576xf32>
    %c0_56 = arith.constant 0 : index
    %c0_57 = arith.constant 0 : index
    %76 = vector.load %arg14[%c0_56, %c0_57] : memref<576x64xf32, #tpu.memory_space<vmem>>, vector<576x64xf32>
    %cst_58 = arith.constant dense<0.000000e+00> : vector<8x64xf32>
    %77 = tpu.matmul %75, %76, %cst_58 {dimension_numbers = #tpu.dot_dimension_numbers<[1], [0], [0], [1], [0, 0, 1, 1], [], []>} : vector<8x576xf32>, vector<576x64xf32>, vector<8x64xf32> -> vector<8x64xf32>
    %cst_59 = arith.constant dense<0.000000e+00> : vector<64xf32>
    %78 = vector.multi_reduction <add>, %74, %cst_59 [0] : vector<8x64xf32> to vector<64xf32>
    %79 = vector.shape_cast %78 : vector<64xf32> to vector<1x64xf32>
    %cst_60 = arith.constant 0.013888889 : f32
    %80 = vector.broadcast %cst_60 : f32 to vector<1x64xf32>
    %81 = arith.mulf %79, %80 : vector<1x64xf32>
    %cst_61 = arith.constant dense<0.000000e+00> : vector<64xf32>
    %82 = vector.multi_reduction <add>, %77, %cst_61 [0] : vector<8x64xf32> to vector<64xf32>
    %83 = vector.shape_cast %82 : vector<64xf32> to vector<1x64xf32>
    %cst_62 = arith.constant 0.013888889 : f32
    %84 = vector.broadcast %cst_62 : f32 to vector<1x64xf32>
    %85 = arith.mulf %83, %84 : vector<1x64xf32>
    %86 = arith.mulf %81, %81 : vector<1x64xf32>
    %87 = arith.subf %85, %86 : vector<1x64xf32>
    %c0_63 = arith.constant 0 : index
    %c0_64 = arith.constant 0 : index
    %88 = vector.load %arg12[%c0_63, %c0_64] : memref<1x64xf32, #tpu.memory_space<vmem>>, vector<1x64xf32>
    %cst_65 = arith.constant 9.99999974E-6 : f32
    %89 = vector.broadcast %cst_65 : f32 to vector<1x64xf32>
    %90 = arith.addf %87, %89 : vector<1x64xf32>
    %91 = math.rsqrt %90 : vector<1x64xf32>
    %92 = arith.mulf %88, %91 : vector<1x64xf32>
    %c0_66 = arith.constant 0 : index
    %c0_67 = arith.constant 0 : index
    %93 = vector.load %arg13[%c0_66, %c0_67] : memref<1x64xf32, #tpu.memory_space<vmem>>, vector<1x64xf32>
    %94 = arith.mulf %81, %92 : vector<1x64xf32>
    %95 = arith.subf %93, %94 : vector<1x64xf32>
    %c0_68 = arith.constant 0 : index
    %c0_69 = arith.constant 0 : index
    %96 = vector.load %arg15[%c0_68, %c0_69] : memref<64x576xf32, #tpu.memory_space<vmem>>, vector<64x576xf32>
    %cst_70 = arith.constant dense<0.000000e+00> : vector<1x576xf32>
    %97 = tpu.matmul %92, %96, %cst_70 {dimension_numbers = #tpu.dot_dimension_numbers<[1], [0], [0], [1], [0, 0, 1, 1], [], []>} : vector<1x64xf32>, vector<64x576xf32>, vector<1x576xf32> -> vector<1x576xf32>
    %c0_71 = arith.constant 0 : index
    %c0_72 = arith.constant 0 : index
    %98 = vector.load %arg15[%c0_71, %c0_72] : memref<64x576xf32, #tpu.memory_space<vmem>>, vector<64x576xf32>
    %cst_73 = arith.constant dense<0.000000e+00> : vector<1x576xf32>
    %99 = tpu.matmul %95, %98, %cst_73 {dimension_numbers = #tpu.dot_dimension_numbers<[1], [0], [0], [1], [0, 0, 1, 1], [], []>} : vector<1x64xf32>, vector<64x576xf32>, vector<1x576xf32> -> vector<1x576xf32>
    %100 = vector.broadcast %97 : vector<1x576xf32> to vector<8x576xf32>
    %101 = arith.mulf %72, %100 : vector<8x576xf32>
    %102 = vector.broadcast %99 : vector<1x576xf32> to vector<8x576xf32>
    %103 = arith.addf %101, %102 : vector<8x576xf32>
    %cst_74 = arith.constant 0.000000e+00 : f32
    %104 = vector.broadcast %cst_74 : f32 to vector<8x576xf32>
    %105 = arith.maximumf %103, %104 : vector<8x576xf32>
    %c0_75 = arith.constant 0 : index
    %c0_76 = arith.constant 0 : index
    %106 = vector.load %arg16[%c0_75, %c0_76] : memref<576x128xf32, #tpu.memory_space<vmem>>, vector<576x128xf32>
    %cst_77 = arith.constant dense<0.000000e+00> : vector<8x128xf32>
    %107 = tpu.matmul %105, %106, %cst_77 {dimension_numbers = #tpu.dot_dimension_numbers<[1], [0], [0], [1], [0, 0, 1, 1], [], []>} : vector<8x576xf32>, vector<576x128xf32>, vector<8x128xf32> -> vector<8x128xf32>
    %c0_78 = arith.constant 0 : index
    %c0_79 = arith.constant 0 : index
    %108 = vector.load %arg17[%c0_78, %c0_79] : memref<1x128xf32, #tpu.memory_space<vmem>>, vector<1x128xf32>
    %109 = vector.broadcast %108 : vector<1x128xf32> to vector<8x128xf32>
    %110 = arith.addf %107, %109 : vector<8x128xf32>
    %c0_80 = arith.constant 0 : index
    %c0_81 = arith.constant 0 : index
    %111 = vector.load %arg18[%c0_80, %c0_81] : memref<128x256xf32, #tpu.memory_space<vmem>>, vector<128x256xf32>
    %cst_82 = arith.constant dense<0.000000e+00> : vector<8x256xf32>
    %112 = tpu.matmul %110, %111, %cst_82 {dimension_numbers = #tpu.dot_dimension_numbers<[1], [0], [0], [1], [0, 0, 1, 1], [], []>} : vector<8x128xf32>, vector<128x256xf32>, vector<8x256xf32> -> vector<8x256xf32>
    %c0_83 = arith.constant 0 : index
    %c0_84 = arith.constant 0 : index
    %113 = vector.load %arg19[%c0_83, %c0_84] : memref<1x256xf32, #tpu.memory_space<vmem>>, vector<1x256xf32>
    %114 = vector.broadcast %113 : vector<1x256xf32> to vector<8x256xf32>
    %115 = arith.addf %112, %114 : vector<8x256xf32>
    %cst_85 = arith.constant 0.000000e+00 : f32
    %116 = vector.broadcast %cst_85 : f32 to vector<8x256xf32>
    %117 = arith.maximumf %115, %116 : vector<8x256xf32>
    %c0_86 = arith.constant 0 : index
    %c0_87 = arith.constant 0 : index
    %118 = vector.load %arg20[%c0_86, %c0_87] : memref<256x128xf32, #tpu.memory_space<vmem>>, vector<256x128xf32>
    %cst_88 = arith.constant dense<0.000000e+00> : vector<8x128xf32>
    %119 = tpu.matmul %117, %118, %cst_88 {dimension_numbers = #tpu.dot_dimension_numbers<[1], [0], [0], [1], [0, 0, 1, 1], [], []>} : vector<8x256xf32>, vector<256x128xf32>, vector<8x128xf32> -> vector<8x128xf32>
    %c0_89 = arith.constant 0 : index
    %c0_90 = arith.constant 0 : index
    %120 = vector.load %arg21[%c0_89, %c0_90] : memref<1x128xf32, #tpu.memory_space<vmem>>, vector<1x128xf32>
    %121 = vector.broadcast %120 : vector<1x128xf32> to vector<8x128xf32>
    %122 = arith.addf %119, %121 : vector<8x128xf32>
    %123 = tpu.iota {dimensions = array<i32: 1>} : vector<8x128xi32>
    %c7_i32 = arith.constant 7 : i32
    %124 = vector.broadcast %c7_i32 : i32 to vector<8x128xi32>
    %125 = arith.cmpi slt, %123, %124 : vector<8x128xi32>
    %cst_91 = arith.constant -1.000000e+30 : f32
    %126 = vector.broadcast %cst_91 : f32 to vector<8x128xf32>
    %127 = arith.select %125, %122, %126 : vector<8x128xi1>, vector<8x128xf32>
    %cst_92 = arith.constant dense<0xFF800000> : vector<8xf32>
    %128 = vector.multi_reduction <maximumf>, %127, %cst_92 [1] : vector<8x128xf32> to vector<8xf32>
    %129 = vector.shape_cast %128 : vector<8xf32> to vector<8x1xf32>
    %130 = vector.broadcast %129 : vector<8x1xf32> to vector<8x128xf32>
    %131 = arith.subf %127, %130 : vector<8x128xf32>
    %132 = math.exp %131 : vector<8x128xf32>
    %cst_93 = arith.constant dense<0.000000e+00> : vector<8xf32>
    %133 = vector.multi_reduction <add>, %132, %cst_93 [1] : vector<8x128xf32> to vector<8xf32>
    %134 = vector.shape_cast %133 : vector<8xf32> to vector<8x1xf32>
    %135 = math.log %134 : vector<8x1xf32>
    %136 = arith.addf %129, %135 : vector<8x1xf32>
    %137 = vector.broadcast %136 : vector<8x1xf32> to vector<8x128xf32>
    %138 = arith.subf %122, %137 : vector<8x128xf32>
    %139 = arith.select %125, %138, %122 : vector<8x128xi1>, vector<8x128xf32>
    %c0_94 = arith.constant 0 : index
    %c0_95 = arith.constant 0 : index
    %140 = vector.load %arg22[%c0_94, %c0_95] : memref<8x128xf32, #tpu.memory_space<vmem>>, vector<8x128xf32>
    tpu.vector_store %arg22[%c0_94, %c0_95], %139 {strides = array<i32>} : memref<8x128xf32, #tpu.memory_space<vmem>>, vector<8x128xf32>,
    return
  }
}

</mosaic_0001>

<llo_original>
// kernel: _lambda_.1
$region0: #{_lambda_.1}
  #allocation0 [shape = 'u32[]', space=smem, size = 0x4, offset = 0x4, fixed_abs, tag = 'smem constant byte address 0x4 - core index']
  #allocation1 [shape = 'u32[72,128]{1,0:T(1,128)}', space=vmem, size = 0x9000, scoped, tag = 'internal scratch']
  %s0 = inlined_call_operand.vmem [shape: f32[8,147], index: 0, kind: input, shape index: {}]
  %s1 = inlined_call_operand.hbm [shape: f32[147,400], index: 1, kind: input, shape index: {}]
  %s2 = inlined_call_operand.hbm [shape: f32[1,16], index: 2, kind: input, shape index: {}]
  %s3 = inlined_call_operand.hbm [shape: f32[1,16], index: 3, kind: input, shape index: {}]
  %s4 = inlined_call_operand.hbm [shape: f32[400,16], index: 4, kind: input, shape index: {}]
  %s5 = inlined_call_operand.hbm [shape: f32[16,400], index: 5, kind: input, shape index: {}]
  %s6 = inlined_call_operand.hbm [shape: f32[400,512], index: 6, kind: input, shape index: {}]
  %s7 = inlined_call_operand.hbm [shape: f32[1,32], index: 7, kind: input, shape index: {}]
  %s8 = inlined_call_operand.hbm [shape: f32[1,32], index: 8, kind: input, shape index: {}]
  %s9 = inlined_call_operand.hbm [shape: f32[512,32], index: 9, kind: input, shape index: {}]
  %s10 = inlined_call_operand.hbm [shape: f32[32,512], index: 10, kind: input, shape index: {}]
  %s11 = inlined_call_operand.hbm [shape: f32[512,576], index: 11, kind: input, shape index: {}]
  %s12 = inlined_call_operand.hbm [shape: f32[1,64], index: 12, kind: input, shape index: {}]
  %s13 = inlined_call_operand.hbm [shape: f32[1,64], index: 13, kind: input, shape index: {}]
  %s14 = inlined_call_operand.hbm [shape: f32[576,64], index: 14, kind: input, shape index: {}]
  %s15 = inlined_call_operand.hbm [shape: f32[64,576], index: 15, kind: input, shape index: {}]
  %s16 = inlined_call_operand.hbm [shape: f32[576,128], index: 16, kind: input, shape index: {}]
  %s17 = inlined_call_operand.hbm [shape: f32[1,128], index: 17, kind: input, shape index: {}]
  %s18 = inlined_call_operand.hbm [shape: f32[128,256], index: 18, kind: input, shape index: {}]
  %s19 = inlined_call_operand.hbm [shape: f32[1,256], index: 19, kind: input, shape index: {}]
  %s20 = inlined_call_operand.hbm [shape: f32[256,128], index: 20, kind: input, shape index: {}]
  %s21 = inlined_call_operand.hbm [shape: f32[1,128], index: 21, kind: input, shape index: {}]
  %s22 = inlined_call_operand.vmem [shape: f32[8,128], index: 22, kind: output, shape index: {}]
  %s23 = sld [smem:[#allocation0]]
  $region182: #{_lambda_.1} parent=0
    _
  %s25 = ssub.s32 1, %s23
  %s26 = scalar_select 0, %s25, %s23
  $region1: #{_lambda_.1} parent=0
    #allocation2 [shape = 'u8[311296]{0}', space=vmem, size = 0x4c000, scoped, tag = 'input window, operand 1, single buffered']
    #allocation3 [shape = 's32[1]{0}', space=sflag, size = 0x4, scoped, tag = 'scoped memory for _lambda_.1']
    #allocation4 [shape = 'u8[512]{0}', space=vmem, size = 0x400, scoped, tag = 'input window, operand 2, single buffered']
    #allocation5 [shape = 's32[1]{0}', space=sflag, size = 0x4, scoped, tag = 'scoped memory for _lambda_.1']
    #allocation6 [shape = 'u8[512]{0}', space=vmem, size = 0x400, scoped, tag = 'input window, operand 3, single buffered']
    #allocation7 [shape = 'u8[204800]{0}', space=vmem, size = 0x32000, scoped, tag = 'input window, operand 4, single buffered']
    #allocation8 [shape = 's32[1]{0}', space=sflag, size = 0x4, scoped, tag = 'scoped memory for _lambda_.1']
    #allocation9 [shape = 'u8[32768]{0}', space=vmem, size = 0x8000, scoped, tag = 'input window, operand 5, single buffered']
    #allocation10 [shape = 'u8[819200]{0}', space=vmem, size = 0xc8000, scoped, tag = 'input window, operand 6, single buffered']
    #allocation11 [shape = 's32[1]{0}', space=sflag, size = 0x4, scoped, tag = 'scoped memory for _lambda_.1']
    #allocation12 [shape = 'u8[512]{0}', space=vmem, size = 0x400, scoped, tag = 'input window, operand 7, single buffered']
    #allocation13 [shape = 'u8[512]{0}', space=vmem, size = 0x400, scoped, tag = 'input window, operand 8, single buffered']
    #allocation14 [shape = 's32[1]{0}', space=sflag, size = 0x4, scoped, tag = 'scoped memory for _lambda_.1']
    #allocation15 [shape = 'u8[262144]{0}', space=vmem, size = 0x40000, scoped, tag = 'input window, operand 9, single buffered']
    #allocation16 [shape = 'u8[65536]{0}', space=vmem, size = 0x10000, scoped, tag = 'input window, operand 10, single buffered']
    #allocation17 [shape = 's32[1]{0}', space=sflag, size = 0x4, scoped, tag = 'scoped memory for _lambda_.1']
    #allocation18 [shape = 'u8[1310720]{0}', space=vmem, size = 0x140000, scoped, tag = 'input window, operand 11, single buffered']
    #allocation19 [shape = 'u8[512]{0}', space=vmem, size = 0x400, scoped, tag = 'input window, operand 12, single buffered']
    #allocation20 [shape = 's32[1]{0}', space=sflag, size = 0x4, scoped, tag = 'scoped memory for _lambda_.1']
    #allocation21 [shape = 'u8[512]{0}', space=vmem, size = 0x400, scoped, tag = 'input window, operand 13, single buffered']
    #allocation22 [shape = 'u8[294912]{0}', space=vmem, size = 0x48000, scoped, tag = 'input window, operand 14, single buffered']
    #allocation23 [shape = 's32[1]{0}', space=sflag, size = 0x4, scoped, tag = 'scoped memory for _lambda_.1']
    #allocation24 [shape = 'u8[163840]{0}', space=vmem, size = 0x28000, scoped, tag = 'input window, operand 15, single buffered']
    #allocation25 [shape = 'u8[294912]{0}', space=vmem, size = 0x48000, scoped, tag = 'input window, operand 16, single buffered']
    #allocation26 [shape = 's32[1]{0}', space=sflag, size = 0x4, scoped, tag = 'scoped memory for _lambda_.1']
    #allocation27 [shape = 'u8[512]{0}', space=vmem, size = 0x400, scoped, tag = 'input window, operand 17, single buffered']
    #allocation28 [shape = 'u8[131072]{0}', space=vmem, size = 0x20000, scoped, tag = 'input window, operand 18, single buffered']
    #allocation29 [shape = 's32[1]{0}', space=sflag, size = 0x4, scoped, tag = 'scoped memory for _lambda_.1']
    #allocation30 [shape = 'u8[1024]{0}', space=vmem, size = 0x400, scoped, tag = 'input window, operand 19, single buffered']
    #allocation31 [shape = 'u8[131072]{0}', space=vmem, size = 0x20000, scoped, tag = 'input window, operand 20, single buffered']
    #allocation32 [shape = 's32[1]{0}', space=sflag, size = 0x4, scoped, tag = 'scoped memory for _lambda_.1']
    #allocation33 [shape = 'u8[512]{0}', space=vmem, size = 0x400, scoped, tag = 'input window, operand 21, single buffered']
    %27 = vsyncpa [#allocation3], 0
    %28 = vsyncpa [#allocation5], 0
    %29 = vsyncpa [#allocation8], 0
    %30 = vsyncpa [#allocation11], 0
    %31 = vsyncpa [#allocation14], 0
    %32 = vsyncpa [#allocation17], 0
    %33 = vsyncpa [#allocation20], 0
    %34 = vsyncpa [#allocation23], 0
    %35 = vsyncpa [#allocation26], 0
    %36 = vsyncpa [#allocation29], 0
    %37 = vsyncpa [#allocation32], 0
    // Predicated region
    $region2: #{_lambda_.1} parent=1 // pred_check
      _
    $region3: #{_lambda_.1} parent=1 // pred_check_branch
      %39 = sbr.rel (0) target = $region5
    $region4: #{_lambda_.1} parent=1 // pred_region
      _
    $region5: #{_lambda_.1} parent=1 // pred_fallthru
      _
    // Predicated region
    $region6: #{_lambda_.1} parent=1 // pred_check
      _
    $region7: #{_lambda_.1} parent=1 // pred_check_branch
      %41 = sbr.rel (0) target = $region9
    $region8: #{_lambda_.1} parent=1 // pred_region
      %43 = vsyncadd [#allocation3], 0
      %s44 = sshll.u32 %s1, 4
      %s45 = int_to_ptr.hbm [resolvable:$true] %s44
      %s46 = sshll.u32 [#allocation2], 4
      %s47 = int_to_ptr.vmem [resolvable:$true] %s46
      %52 = dma.hbm_to_vmem [thread:$0]  %s45, 9728, %s47, [#allocation3], 512, 512, 32
    $region9: #{_lambda_.1} parent=1 // pred_fallthru
      _
    // Predicated region
    $region10: #{_lambda_.1} parent=1 // pred_check
      _
    $region11: #{_lambda_.1} parent=1 // pred_check_branch
      %54 = sbr.rel (0) target = $region13
    $region12: #{_lambda_.1} parent=1 // pred_region
      %56 = vsyncadd [#allocation5], 0
      %s58 = sshll.u32 %s2, 4
      %s59 = int_to_ptr.hbm [resolvable:$true] %s58
      %s60 = sshll.u32 [#allocation4], 4
      %s61 = int_to_ptr.vmem [resolvable:$true] %s60
      %63 = dma.hbm_to_vmem [thread:$0]  %s59, 16, %s61, [#allocation5]
    $region13: #{_lambda_.1} parent=1 // pred_fallthru
      _
    // Predicated region
    $region14: #{_lambda_.1} parent=1 // pred_check
      _
    $region15: #{_lambda_.1} parent=1 // pred_check_branch
      %65 = sbr.rel (0) target = $region17
    $region16: #{_lambda_.1} parent=1 // pred_region
      %67 = vsyncadd [#allocation5], 0
      %s69 = sshll.u32 %s3, 4
      %s70 = int_to_ptr.hbm [resolvable:$true] %s69
      %s71 = sshll.u32 [#allocation6], 4
      %s72 = int_to_ptr.vmem [resolvable:$true] %s71
      %74 = dma.hbm_to_vmem [thread:$0]  %s70, 16, %s72, [#allocation5]
    $region17: #{_lambda_.1} parent=1 // pred_fallthru
      _
    // Predicated region
    $region18: #{_lambda_.1} parent=1 // pred_check
      _
    $region19: #{_lambda_.1} parent=1 // pred_check_branch
      %76 = sbr.rel (0) target = $region21
    $region20: #{_lambda_.1} parent=1 // pred_region
      %78 = vsyncadd [#allocation8], 0
      %s79 = sshll.u32 %s4, 4
      %s80 = int_to_ptr.hbm [resolvable:$true] %s79
      %s81 = sshll.u32 [#allocation7], 4
      %s82 = int_to_ptr.vmem [resolvable:$true] %s81
      %87 = dma.hbm_to_vmem [thread:$0]  %s80, 6400, %s82, [#allocation8], 128, 128, 8
    $region21: #{_lambda_.1} parent=1 // pred_fallthru
      _
    // Predicated region
    $region22: #{_lambda_.1} parent=1 // pred_check
      _
    $region23: #{_lambda_.1} parent=1 // pred_check_branch
      %89 = sbr.rel (0) target = $region25
    $region24: #{_lambda_.1} parent=1 // pred_region
      %91 = vsyncadd [#allocation8], 0
      %s92 = sshll.u32 %s5, 4
      %s93 = int_to_ptr.hbm [resolvable:$true] %s92
      %s94 = sshll.u32 [#allocation9], 4
      %s95 = int_to_ptr.vmem [resolvable:$true] %s94
      %100 = dma.hbm_to_vmem [thread:$0]  %s93, 1024, %s95, [#allocation8], 512, 512, 32
    $region25: #{_lambda_.1} parent=1 // pred_fallthru
      _
    // Predicated region
    $region26: #{_lambda_.1} parent=1 // pred_check
      _
    $region27: #{_lambda_.1} parent=1 // pred_check_branch
      %102 = sbr.rel (0) target = $region29
    $region28: #{_lambda_.1} parent=1 // pred_region
      %104 = vsyncadd [#allocation11], 0
      %s105 = sshll.u32 %s6, 4
      %s106 = int_to_ptr.hbm [resolvable:$true] %s105
      %s107 = sshll.u32 [#allocation10], 4
      %s108 = int_to_ptr.vmem [resolvable:$true] %s107
      %113 = dma.hbm_to_vmem [thread:$0]  %s106, 25600, %s108, [#allocation11], 512, 512, 32
    $region29: #{_lambda_.1} parent=1 // pred_fallthru
      _
    // Predicated region
    $region30: #{_lambda_.1} parent=1 // pred_check
      _
    $region31: #{_lambda_.1} parent=1 // pred_check_branch
      %115 = sbr.rel (0) target = $region33
    $region32: #{_lambda_.1} parent=1 // pred_region
      %117 = vsyncadd [#allocation11], 0
      %s119 = sshll.u32 %s7, 4
      %s120 = int_to_ptr.hbm [resolvable:$true] %s119
      %s121 = sshll.u32 [#allocation12], 4
      %s122 = int_to_ptr.vmem [resolvable:$true] %s121
      %124 = dma.hbm_to_vmem [thread:$0]  %s120, 16, %s122, [#allocation11]
    $region33: #{_lambda_.1} parent=1 // pred_fallthru
      _
    // Predicated region
    $region34: #{_lambda_.1} parent=1 // pred_check
      _
    $region35: #{_lambda_.1} parent=1 // pred_check_branch
      %126 = sbr.rel (0) target = $region37
    $region36: #{_lambda_.1} parent=1 // pred_region
      %128 = vsyncadd [#allocation14], 0
      %s130 = sshll.u32 %s8, 4
      %s131 = int_to_ptr.hbm [resolvable:$true] %s130
      %s132 = sshll.u32 [#allocation13], 4
      %s133 = int_to_ptr.vmem [resolvable:$true] %s132
      %135 = dma.hbm_to_vmem [thread:$0]  %s131, 16, %s133, [#allocation14]
    $region37: #{_lambda_.1} parent=1 // pred_fallthru
      _
    // Predicated region
    $region38: #{_lambda_.1} parent=1 // pred_check
      _
    $region39: #{_lambda_.1} parent=1 // pred_check_branch
      %137 = sbr.rel (0) target = $region41
    $region40: #{_lambda_.1} parent=1 // pred_region
      %139 = vsyncadd [#allocation14], 0
      %s140 = sshll.u32 %s9, 4
      %s141 = int_to_ptr.hbm [resolvable:$true] %s140
      %s142 = sshll.u32 [#allocation15], 4
      %s143 = int_to_ptr.vmem [resolvable:$true] %s142
      %148 = dma.hbm_to_vmem [thread:$0]  %s141, 8192, %s143, [#allocation14], 128, 128, 8
    $region41: #{_lambda_.1} parent=1 // pred_fallthru
      _
    // Predicated region
    $region42: #{_lambda_.1} parent=1 // pred_check
      _
    $region43: #{_lambda_.1} parent=1 // pred_check_branch
      %150 = sbr.rel (0) target = $region45
    $region44: #{_lambda_.1} parent=1 // pred_region
      %152 = vsyncadd [#allocation17], 0
      %s153 = sshll.u32 %s10, 4
      %s154 = int_to_ptr.hbm [resolvable:$true] %s153
      %s155 = sshll.u32 [#allocation16], 4
      %s156 = int_to_ptr.vmem [resolvable:$true] %s155
      %161 = dma.hbm_to_vmem [thread:$0]  %s154, 2048, %s156, [#allocation17], 512, 512, 32
    $region45: #{_lambda_.1} parent=1 // pred_fallthru
      _
    // Predicated region
    $region46: #{_lambda_.1} parent=1 // pred_check
      _
    $region47: #{_lambda_.1} parent=1 // pred_check_branch
      %163 = sbr.rel (0) target = $region49
    $region48: #{_lambda_.1} parent=1 // pred_region
      %165 = vsyncadd [#allocation17], 0
      %s166 = sshll.u32 %s11, 4
      %s167 = int_to_ptr.hbm [resolvable:$true] %s166
      %s168 = sshll.u32 [#allocation18], 4
      %s169 = int_to_ptr.vmem [resolvable:$true] %s168
      %174 = dma.hbm_to_vmem [thread:$0]  %s167, 40960, %s169, [#allocation17], 640, 640, 40
    $region49: #{_lambda_.1} parent=1 // pred_fallthru
      _
    // Predicated region
    $region50: #{_lambda_.1} parent=1 // pred_check
      _
    $region51: #{_lambda_.1} parent=1 // pred_check_branch
      %176 = sbr.rel (0) target = $region53
    $region52: #{_lambda_.1} parent=1 // pred_region
      %178 = vsyncadd [#allocation20], 0
      %s180 = sshll.u32 %s12, 4
      %s181 = int_to_ptr.hbm [resolvable:$true] %s180
      %s182 = sshll.u32 [#allocation19], 4
      %s183 = int_to_ptr.vmem [resolvable:$true] %s182
      %185 = dma.hbm_to_vmem [thread:$0]  %s181, 16, %s183, [#allocation20]
    $region53: #{_lambda_.1} parent=1 // pred_fallthru
      _
    // Predicated region
    $region54: #{_lambda_.1} parent=1 // pred_check
      _
    $region55: #{_lambda_.1} parent=1 // pred_check_branch
      %187 = sbr.rel (0) target = $region57
    $region56: #{_lambda_.1} parent=1 // pred_region
      %189 = vsyncadd [#allocation20], 0
      %s191 = sshll.u32 %s13, 4
      %s192 = int_to_ptr.hbm [resolvable:$true] %s191
      %s193 = sshll.u32 [#allocation21], 4
      %s194 = int_to_ptr.vmem [resolvable:$true] %s193
      %196 = dma.hbm_to_vmem [thread:$0]  %s192, 16, %s194, [#allocation20]
    $region57: #{_lambda_.1} parent=1 // pred_fallthru
      _
    // Predicated region
    $region58: #{_lambda_.1} parent=1 // pred_check
      _
    $region59: #{_lambda_.1} parent=1 // pred_check_branch
      %198 = sbr.rel (0) target = $region61
    $region60: #{_lambda_.1} parent=1 // pred_region
      %200 = vsyncadd [#allocation23], 0
      %s201 = sshll.u32 %s14, 4
      %s202 = int_to_ptr.hbm [resolvable:$true] %s201
      %s203 = sshll.u32 [#allocation22], 4
      %s204 = int_to_ptr.vmem [resolvable:$true] %s203
      %209 = dma.hbm_to_vmem [thread:$0]  %s202, 9216, %s204, [#allocation23], 128, 128, 8
    $region61: #{_lambda_.1} parent=1 // pred_fallthru
      _
    // Predicated region
    $region62: #{_lambda_.1} parent=1 // pred_check
      _
    $region63: #{_lambda_.1} parent=1 // pred_check_branch
      %211 = sbr.rel (0) target = $region65
    $region64: #{_lambda_.1} parent=1 // pred_region
      %213 = vsyncadd [#allocation23], 0
      %s214 = sshll.u32 %s15, 4
      %s215 = int_to_ptr.hbm [resolvable:$true] %s214
      %s216 = sshll.u32 [#allocation24], 4
      %s217 = int_to_ptr.vmem [resolvable:$true] %s216
      %222 = dma.hbm_to_vmem [thread:$0]  %s215, 5120, %s217, [#allocation23], 640, 640, 40
    $region65: #{_lambda_.1} parent=1 // pred_fallthru
      _
    // Predicated region
    $region66: #{_lambda_.1} parent=1 // pred_check
      _
    $region67: #{_lambda_.1} parent=1 // pred_check_branch
      %224 = sbr.rel (0) target = $region69
    $region68: #{_lambda_.1} parent=1 // pred_region
      %226 = vsyncadd [#allocation26], 0
      %s227 = sshll.u32 %s16, 4
      %s228 = int_to_ptr.hbm [resolvable:$true] %s227
      %s229 = sshll.u32 [#allocation25], 4
      %s230 = int_to_ptr.vmem [resolvable:$true] %s229
      %235 = dma.hbm_to_vmem [thread:$0]  %s228, 9216, %s230, [#allocation26], 128, 128, 8
    $region69: #{_lambda_.1} parent=1 // pred_fallthru
      _
    // Predicated region
    $region70: #{_lambda_.1} parent=1 // pred_check
      _
    $region71: #{_lambda_.1} parent=1 // pred_check_branch
      %237 = sbr.rel (0) target = $region73
    $region72: #{_lambda_.1} parent=1 // pred_region
      %239 = vsyncadd [#allocation26], 0
      %s241 = sshll.u32 %s17, 4
      %s242 = int_to_ptr.hbm [resolvable:$true] %s241
      %s243 = sshll.u32 [#allocation27], 4
      %s244 = int_to_ptr.vmem [resolvable:$true] %s243
      %246 = dma.hbm_to_vmem [thread:$0]  %s242, 16, %s244, [#allocation26]
    $region73: #{_lambda_.1} parent=1 // pred_fallthru
      _
    // Predicated region
    $region74: #{_lambda_.1} parent=1 // pred_check
      _
    $region75: #{_lambda_.1} parent=1 // pred_check_branch
      %248 = sbr.rel (0) target = $region77
    $region76: #{_lambda_.1} parent=1 // pred_region
      %250 = vsyncadd [#allocation29], 0
      %s251 = sshll.u32 %s18, 4
      %s252 = int_to_ptr.hbm [resolvable:$true] %s251
      %s253 = sshll.u32 [#allocation28], 4
      %s254 = int_to_ptr.vmem [resolvable:$true] %s253
      %259 = dma.hbm_to_vmem [thread:$0]  %s252, 4096, %s254, [#allocation29], 256, 256, 16
    $region77: #{_lambda_.1} parent=1 // pred_fallthru
      _
    // Predicated region
    $region78: #{_lambda_.1} parent=1 // pred_check
      _
    $region79: #{_lambda_.1} parent=1 // pred_check_branch
      %261 = sbr.rel (0) target = $region81
    $region80: #{_lambda_.1} parent=1 // pred_region
      %263 = vsyncadd [#allocation29], 0
      %s265 = sshll.u32 %s19, 4
      %s266 = int_to_ptr.hbm [resolvable:$true] %s265
      %s267 = sshll.u32 [#allocation30], 4
      %s268 = int_to_ptr.vmem [resolvable:$true] %s267
      %270 = dma.hbm_to_vmem [thread:$0]  %s266, 32, %s268, [#allocation29]
    $region81: #{_lambda_.1} parent=1 // pred_fallthru
      _
    // Predicated region
    $region82: #{_lambda_.1} parent=1 // pred_check
      _
    $region83: #{_lambda_.1} parent=1 // pred_check_branch
      %272 = sbr.rel (0) target = $region85
    $region84: #{_lambda_.1} parent=1 // pred_region
      %274 = vsyncadd [#allocation32], 0
      %s275 = sshll.u32 %s20, 4
      %s276 = int_to_ptr.hbm [resolvable:$true] %s275
      %s277 = sshll.u32 [#allocation31], 4
      %s278 = int_to_ptr.vmem [resolvable:$true] %s277
      %283 = dma.hbm_to_vmem [thread:$0]  %s276, 4096, %s278, [#allocation32], 128, 128, 8
    $region85: #{_lambda_.1} parent=1 // pred_fallthru
      _
    // Predicated region
    $region86: #{_lambda_.1} parent=1 // pred_check
      _
    $region87: #{_lambda_.1} parent=1 // pred_check_branch
      %285 = sbr.rel (0) target = $region89
    $region88: #{_lambda_.1} parent=1 // pred_region
      %287 = vsyncadd [#allocation32], 0
      %s289 = sshll.u32 %s21, 4
      %s290 = int_to_ptr.hbm [resolvable:$true] %s289
      %s291 = sshll.u32 [#allocation33], 4
      %s292 = int_to_ptr.vmem [resolvable:$true] %s291
      %294 = dma.hbm_to_vmem [thread:$0]  %s290, 16, %s292, [#allocation32]
    $region89: #{_lambda_.1} parent=1 // pred_fallthru
      _
    // Predicated region
    $region90: #{_lambda_.1} parent=1 // pred_check
      _
    $region91: #{_lambda_.1} parent=1 // pred_check_branch
      %296 = sbr.rel (0) target = $region93
    $region92: #{_lambda_.1} parent=1 // pred_region
      %298 = dma.done [#allocation3], 9728
    $region93: #{_lambda_.1} parent=1 // pred_fallthru
      _
    // Predicated region
    $region94: #{_lambda_.1} parent=1 // pred_check
      _
    $region95: #{_lambda_.1} parent=1 // pred_check_branch
      %300 = sbr.rel (0) target = $region97
    $region96: #{_lambda_.1} parent=1 // pred_region
      %302 = dma.done [#allocation5], 16
    $region97: #{_lambda_.1} parent=1 // pred_fallthru
      _
    // Predicated region
    $region98: #{_lambda_.1} parent=1 // pred_check
      _
    $region99: #{_lambda_.1} parent=1 // pred_check_branch
      %304 = sbr.rel (0) target = $region101
    $region100: #{_lambda_.1} parent=1 // pred_region
      %306 = dma.done [#allocation5], 16
    $region101: #{_lambda_.1} parent=1 // pred_fallthru
      _
    // Predicated region
    $region102: #{_lambda_.1} parent=1 // pred_check
      _
    $region103: #{_lambda_.1} parent=1 // pred_check_branch
      %308 = sbr.rel (0) target = $region105
    $region104: #{_lambda_.1} parent=1 // pred_region
      %310 = dma.done [#allocation8], 6400
    $region105: #{_lambda_.1} parent=1 // pred_fallthru
      _
    // Predicated region
    $region106: #{_lambda_.1} parent=1 // pred_check
      _
    $region107: #{_lambda_.1} parent=1 // pred_check_branch
      %312 = sbr.rel (0) target = $region109
    $region108: #{_lambda_.1} parent=1 // pred_region
      %314 = dma.done [#allocation8], 1024
    $region109: #{_lambda_.1} parent=1 // pred_fallthru
      _
    // Predicated region
    $region110: #{_lambda_.1} parent=1 // pred_check
      _
    $region111: #{_lambda_.1} parent=1 // pred_check_branch
      %316 = sbr.rel (0) target = $region113
    $region112: #{_lambda_.1} parent=1 // pred_region
      %318 = dma.done [#allocation11], 25600
    $region113: #{_lambda_.1} parent=1 // pred_fallthru
      _
    // Predicated region
    $region114: #{_lambda_.1} parent=1 // pred_check
      _
    $region115: #{_lambda_.1} parent=1 // pred_check_branch
      %320 = sbr.rel (0) target = $region117
    $region116: #{_lambda_.1} parent=1 // pred_region
      %322 = dma.done [#allocation11], 16
    $region117: #{_lambda_.1} parent=1 // pred_fallthru
      _
    // Predicated region
    $region118: #{_lambda_.1} parent=1 // pred_check
      _
    $region119: #{_lambda_.1} parent=1 // pred_check_branch
      %324 = sbr.rel (0) target = $region121
    $region120: #{_lambda_.1} parent=1 // pred_region
      %326 = dma.done [#allocation14], 16
    $region121: #{_lambda_.1} parent=1 // pred_fallthru
      _
    // Predicated region
    $region122: #{_lambda_.1} parent=1 // pred_check
      _
    $region123: #{_lambda_.1} parent=1 // pred_check_branch
      %328 = sbr.rel (0) target = $region125
    $region124: #{_lambda_.1} parent=1 // pred_region
      %330 = dma.done [#allocation14], 8192
    $region125: #{_lambda_.1} parent=1 // pred_fallthru
      _
    // Predicated region
    $region126: #{_lambda_.1} parent=1 // pred_check
      _
    $region127: #{_lambda_.1} parent=1 // pred_check_branch
      %332 = sbr.rel (0) target = $region129
    $region128: #{_lambda_.1} parent=1 // pred_region
      %334 = dma.done [#allocation17], 2048
    $region129: #{_lambda_.1} parent=1 // pred_fallthru
      _
    // Predicated region
    $region130: #{_lambda_.1} parent=1 // pred_check
      _
    $region131: #{_lambda_.1} parent=1 // pred_check_branch
      %336 = sbr.rel (0) target = $region133
    $region132: #{_lambda_.1} parent=1 // pred_region
      %338 = dma.done [#allocation17], 40960
    $region133: #{_lambda_.1} parent=1 // pred_fallthru
      _
    // Predicated region
    $region134: #{_lambda_.1} parent=1 // pred_check
      _
    $region135: #{_lambda_.1} parent=1 // pred_check_branch
      %340 = sbr.rel (0) target = $region137
    $region136: #{_lambda_.1} parent=1 // pred_region
      %342 = dma.done [#allocation20], 16
    $region137: #{_lambda_.1} parent=1 // pred_fallthru
      _
    // Predicated region
    $region138: #{_lambda_.1} parent=1 // pred_check
      _
    $region139: #{_lambda_.1} parent=1 // pred_check_branch
      %344 = sbr.rel (0) target = $region141
    $region140: #{_lambda_.1} parent=1 // pred_region
      %346 = dma.done [#allocation20], 16
    $region141: #{_lambda_.1} parent=1 // pred_fallthru
      _
    // Predicated region
    $region142: #{_lambda_.1} parent=1 // pred_check
      _
    $region143: #{_lambda_.1} parent=1 // pred_check_branch
      %348 = sbr.rel (0) target = $region145
    $region144: #{_lambda_.1} parent=1 // pred_region
      %350 = dma.done [#allocation23], 9216
    $region145: #{_lambda_.1} parent=1 // pred_fallthru
      _
    // Predicated region
    $region146: #{_lambda_.1} parent=1 // pred_check
      _
    $region147: #{_lambda_.1} parent=1 // pred_check_branch
      %352 = sbr.rel (0) target = $region149
    $region148: #{_lambda_.1} parent=1 // pred_region
      %354 = dma.done [#allocation23], 5120
    $region149: #{_lambda_.1} parent=1 // pred_fallthru
      _
    // Predicated region
    $region150: #{_lambda_.1} parent=1 // pred_check
      _
    $region151: #{_lambda_.1} parent=1 // pred_check_branch
      %356 = sbr.rel (0) target = $region153
    $region152: #{_lambda_.1} parent=1 // pred_region
      %358 = dma.done [#allocation26], 9216
    $region153: #{_lambda_.1} parent=1 // pred_fallthru
      _
    // Predicated region
    $region154: #{_lambda_.1} parent=1 // pred_check
      _
    $region155: #{_lambda_.1} parent=1 // pred_check_branch
      %360 = sbr.rel (0) target = $region157
    $region156: #{_lambda_.1} parent=1 // pred_region
      %362 = dma.done [#allocation26], 16
    $region157: #{_lambda_.1} parent=1 // pred_fallthru
      _
    // Predicated region
    $region158: #{_lambda_.1} parent=1 // pred_check
      _
    $region159: #{_lambda_.1} parent=1 // pred_check_branch
      %364 = sbr.rel (0) target = $region161
    $region160: #{_lambda_.1} parent=1 // pred_region
      %366 = dma.done [#allocation29], 4096
    $region161: #{_lambda_.1} parent=1 // pred_fallthru
      _
    // Predicated region
    $region162: #{_lambda_.1} parent=1 // pred_check
      _
    $region163: #{_lambda_.1} parent=1 // pred_check_branch
      %368 = sbr.rel (0) target = $region165
    $region164: #{_lambda_.1} parent=1 // pred_region
      %370 = dma.done [#allocation29], 32
    $region165: #{_lambda_.1} parent=1 // pred_fallthru
      _
    // Predicated region
    $region166: #{_lambda_.1} parent=1 // pred_check
      _
    $region167: #{_lambda_.1} parent=1 // pred_check_branch
      %372 = sbr.rel (0) target = $region169
    $region168: #{_lambda_.1} parent=1 // pred_region
      %374 = dma.done [#allocation32], 4096
    $region169: #{_lambda_.1} parent=1 // pred_fallthru
      _
    // Predicated region
    $region170: #{_lambda_.1} parent=1 // pred_check
      _
    $region171: #{_lambda_.1} parent=1 // pred_check_branch
      %376 = sbr.rel (0) target = $region173
    $region172: #{_lambda_.1} parent=1 // pred_region
      %378 = dma.done [#allocation32], 16
    $region173: #{_lambda_.1} parent=1 // pred_fallthru
      _
    %v379 = vld [vmem:[%s0] sm:$0xff]
    %v380 = vld [vmem:[%s0 + $0x8] sm:$0xff]
    %v381 = vld [vmem:[#allocation2] sm:$0xff]
    %v382 = vld [vmem:[#allocation2 + $0x8] sm:$0xff]
    %v383 = vld [vmem:[#allocation2 + $0x10] sm:$0xff]
    %v384 = vld [vmem:[#allocation2 + $0x18] sm:$0xff]
    %v385 = vld [vmem:[#allocation2 + $0x20] sm:$0xff]
    %v386 = vld [vmem:[#allocation2 + $0x28] sm:$0xff]
    %v387 = vld [vmem:[#allocation2 + $0x30] sm:$0xff]
    %v388 = vld [vmem:[#allocation2 + $0x38] sm:$0xff]
    %v389 = vld [vmem:[#allocation2 + $0x40] sm:$0xff]
    %v390 = vld [vmem:[#allocation2 + $0x48] sm:$0xff]
    %v391 = vld [vmem:[#allocation2 + $0x50] sm:$0xff]
    %v392 = vld [vmem:[#allocation2 + $0x58] sm:$0xff]
    %v393 = vld [vmem:[#allocation2 + $0x60] sm:$0xff]
    %v394 = vld [vmem:[#allocation2 + $0x68] sm:$0xff]
    %v395 = vld [vmem:[#allocation2 + $0x70] sm:$0xff]
    %v396 = vld [vmem:[#allocation2 + $0x78] sm:$0xff]
    %v397 = vld [vmem:[#allocation2 + $0x80] sm:$0xff]
    %v398 = vld [vmem:[#allocation2 + $0x88] sm:$0xff]
    %v399 = vld [vmem:[#allocation2 + $0x90] sm:$0xff]
    %v400 = vld [vmem:[#allocation2 + $0x98] sm:$0xff]
    %v401 = vld [vmem:[#allocation2 + $0xa0] sm:$0xff]
    %v402 = vld [vmem:[#allocation2 + $0xa8] sm:$0xff]
    %v403 = vld [vmem:[#allocation2 + $0xb0] sm:$0xff]
    %v404 = vld [vmem:[#allocation2 + $0xb8] sm:$0xff]
    %v405 = vld [vmem:[#allocation2 + $0xc0] sm:$0xff]
    %v406 = vld [vmem:[#allocation2 + $0xc8] sm:$0xff]
    %v407 = vld [vmem:[#allocation2 + $0xd0] sm:$0xff]
    %v408 = vld [vmem:[#allocation2 + $0xd8] sm:$0xff]
    %v409 = vld [vmem:[#allocation2 + $0xe0] sm:$0xff]
    %v410 = vld [vmem:[#allocation2 + $0xe8] sm:$0xff]
    %v411 = vld [vmem:[#allocation2 + $0xf0] sm:$0xff]
    %v412 = vld [vmem:[#allocation2 + $0xf8] sm:$0xff]
    %v413 = vld [vmem:[#allocation2 + $0x100] sm:$0xff]
    %v414 = vld [vmem:[#allocation2 + $0x108] sm:$0xff]
    %v415 = vld [vmem:[#allocation2 + $0x110] sm:$0xff]
    %v416 = vld [vmem:[#allocation2 + $0x118] sm:$0xff]
    %v417 = vld [vmem:[#allocation2 + $0x120] sm:$0xff]
    %v418 = vld [vmem:[#allocation2 + $0x128] sm:$0xff]
    %v419 = vld [vmem:[#allocation2 + $0x130] sm:$0xff]
    %v420 = vld [vmem:[#allocation2 + $0x138] sm:$0xff]
    %v421 = vld [vmem:[#allocation2 + $0x140] sm:$0xff]
    %v422 = vld [vmem:[#allocation2 + $0x148] sm:$0xff]
    %v423 = vld [vmem:[#allocation2 + $0x150] sm:$0xff]
    %v424 = vld [vmem:[#allocation2 + $0x158] sm:$0xff]
    %v425 = vld [vmem:[#allocation2 + $0x160] sm:$0xff]
    %v426 = vld [vmem:[#allocation2 + $0x168] sm:$0xff]
    %v427 = vld [vmem:[#allocation2 + $0x170] sm:$0xff]
    %v428 = vld [vmem:[#allocation2 + $0x178] sm:$0xff]
    %v429 = vld [vmem:[#allocation2 + $0x180] sm:$0xff]
    %v430 = vld [vmem:[#allocation2 + $0x188] sm:$0xff]
    %v431 = vld [vmem:[#allocation2 + $0x190] sm:$0xff]
    %v432 = vld [vmem:[#allocation2 + $0x198] sm:$0xff]
    %v433 = vld [vmem:[#allocation2 + $0x1a0] sm:$0xff]
    %v434 = vld [vmem:[#allocation2 + $0x1a8] sm:$0xff]
    %v435 = vld [vmem:[#allocation2 + $0x1b0] sm:$0xff]
    %v436 = vld [vmem:[#allocation2 + $0x1b8] sm:$0xff]
    %v437 = vld [vmem:[#allocation2 + $0x1c0] sm:$0xff]
    %v438 = vld [vmem:[#allocation2 + $0x1c8] sm:$0xff]
    %v439 = vld [vmem:[#allocation2 + $0x1d0] sm:$0xff]
    %v440 = vld [vmem:[#allocation2 + $0x1d8] sm:$0xff]
    %v441 = vld [vmem:[#allocation2 + $0x1e0] sm:$0xff]
    %v442 = vld [vmem:[#allocation2 + $0x1e8] sm:$0xff]
    %v443 = vld [vmem:[#allocation2 + $0x1f0] sm:$0xff]
    %v444 = vld [vmem:[#allocation2 + $0x1f8] sm:$0xff]
    %v445 = vld [vmem:[#allocation2 + $0x200] sm:$0xff]
    %v446 = vld [vmem:[#allocation2 + $0x208] sm:$0xff]
    %v447 = vld [vmem:[#allocation2 + $0x210] sm:$0xff]
    %v448 = vld [vmem:[#allocation2 + $0x218] sm:$0xff]
    %v449 = vld [vmem:[#allocation2 + $0x220] sm:$0xff]
    %v450 = vld [vmem:[#allocation2 + $0x228] sm:$0xff]
    %v451 = vld [vmem:[#allocation2 + $0x230] sm:$0xff]
    %v452 = vld [vmem:[#allocation2 + $0x238] sm:$0xff]
    %v453 = vld [vmem:[#allocation2 + $0x240] sm:$0x7]
    %v454 = vld [vmem:[#allocation2 + $0x248] sm:$0x7]
    %v455 = vld [vmem:[#allocation2 + $0x250] sm:$0x7]
    %v456 = vld [vmem:[#allocation2 + $0x258] sm:$0x7]
    %vm457 = vcmask 154624
    %v459 = vsel %vm457, %v380, 0
    %vm461 = vcmask 1042432
    %v463 = vsel %vm461, %v453, 0
    %v466 = vsel %vm461, %v454, 0
    %v469 = vsel %vm461, %v455, 0
    %v472 = vsel %vm461, %v456, 0
    %474 = vmatpush.msra.mxu0 %v441
    %475 = vmatpush.msra.mxu0 %v437
    %476 = vmatpush.msra.mxu0 %v433
    %477 = vmatpush.msra.mxu0 %v429
    %478 = vmatpush.msra.mxu0 %v425
    %479 = vmatpush.msra.mxu0 %v421
    %480 = vmatpush.msra.mxu0 %v417
    %481 = vmatpush.msra.mxu0 %v413
    %482 = vmatpush.msra.mxu0 %v409
    %483 = vmatpush.msra.mxu0 %v405
    %484 = vmatpush.msra.mxu0 %v401
    %485 = vmatpush.msra.mxu0 %v397
    %486 = vmatpush.msra.mxu0 %v393
    %487 = vmatpush.msra.mxu0 %v389
    %488 = vmatpush.msra.mxu0 %v385
    %489 = vmatpush.msra.mxu0 %v381
    %490 = vmatmul.f32.gmra.mxu0 %v379
    %v491 = vpop.f32.mrf.mxu0
    %v492 = vadd.f32 0.0, %v491
    %493 = vdwg.mxu0
    %494 = vmatpush.msra.mxu0 0.0
    %495 = vmatpush.msra.mxu0 0.0
    %496 = vmatpush.msra.mxu0 0.0
    %497 = vmatpush.msra.mxu0 0.0
    %498 = vmatpush.msra.mxu0 0.0
    %499 = vmatpush.msra.mxu0 0.0
    %500 = vmatpush.msra.mxu0 0.0
    %501 = vmatpush.msra.mxu0 0.0
    %502 = vmatpush.msra.mxu0 0.0
    %503 = vmatpush.msra.mxu0 0.0
    %504 = vmatpush.msra.mxu0 0.0
    %505 = vmatpush.msra.mxu0 0.0
    %506 = vmatpush.msra.mxu0 0.0
    %507 = vmatpush.msra.mxu0 %v463
    %508 = vmatpush.msra.mxu0 %v449
    %509 = vmatpush.msra.mxu0 %v445
    %510 = vmatmul.f32.gmra.mxu0 %v459
    %v511 = vpop.f32.mrf.mxu0
    %v512 = vadd.f32 %v492, %v511
    %513 = vdwg.mxu0
    %514 = vmatpush.msra.mxu0 %v442
    %515 = vmatpush.msra.mxu0 %v438
    %516 = vmatpush.msra.mxu0 %v434
    %517 = vmatpush.msra.mxu0 %v430
    %518 = vmatpush.msra.mxu0 %v426
    %519 = vmatpush.msra.mxu0 %v422
    %520 = vmatpush.msra.mxu0 %v418
    %521 = vmatpush.msra.mxu0 %v414
    %522 = vmatpush.msra.mxu0 %v410
    %523 = vmatpush.msra.mxu0 %v406
    %524 = vmatpush.msra.mxu0 %v402
    %525 = vmatpush.msra.mxu0 %v398
    %526 = vmatpush.msra.mxu0 %v394
    %527 = vmatpush.msra.mxu0 %v390
    %528 = vmatpush.msra.mxu0 %v386
    %529 = vmatpush.msra.mxu0 %v382
    %530 = vmatmul.f32.gmra.mxu0 %v379
    %v531 = vpop.f32.mrf.mxu0
    %v532 = vadd.f32 0.0, %v531
    %533 = vdwg.mxu0
    %534 = vmatpush.msra.mxu0 0.0
    %535 = vmatpush.msra.mxu0 0.0
    %536 = vmatpush.msra.mxu0 0.0
    %537 = vmatpush.msra.mxu0 0.0
    %538 = vmatpush.msra.mxu0 0.0
    %539 = vmatpush.msra.mxu0 0.0
    %540 = vmatpush.msra.mxu0 0.0
    %541 = vmatpush.msra.mxu0 0.0
    %542 = vmatpush.msra.mxu0 0.0
    %543 = vmatpush.msra.mxu0 0.0
    %544 = vmatpush.msra.mxu0 0.0
    %545 = vmatpush.msra.mxu0 0.0
    %546 = vmatpush.msra.mxu0 0.0
    %547 = vmatpush.msra.mxu0 %v466
    %548 = vmatpush.msra.mxu0 %v450
    %549 = vmatpush.msra.mxu0 %v446
    %550 = vmatmul.f32.gmra.mxu0 %v459
    %v551 = vpop.f32.mrf.mxu0
    %v552 = vadd.f32 %v532, %v551
    %553 = vdwg.mxu0
    %554 = vmatpush.msra.mxu0 %v443
    %555 = vmatpush.msra.mxu0 %v439
    %556 = vmatpush.msra.mxu0 %v435
    %557 = vmatpush.msra.mxu0 %v431
    %558 = vmatpush.msra.mxu0 %v427
    %559 = vmatpush.msra.mxu0 %v423
    %560 = vmatpush.msra.mxu0 %v419
    %561 = vmatpush.msra.mxu0 %v415
    %562 = vmatpush.msra.mxu0 %v411
    %563 = vmatpush.msra.mxu0 %v407
    %564 = vmatpush.msra.mxu0 %v403
    %565 = vmatpush.msra.mxu0 %v399
    %566 = vmatpush.msra.mxu0 %v395
    %567 = vmatpush.msra.mxu0 %v391
    %568 = vmatpush.msra.mxu0 %v387
    %569 = vmatpush.msra.mxu0 %v383
    %570 = vmatmul.f32.gmra.mxu0 %v379
    %v571 = vpop.f32.mrf.mxu0
    %v572 = vadd.f32 0.0, %v571
    %573 = vdwg.mxu0
    %574 = vmatpush.msra.mxu0 0.0
    %575 = vmatpush.msra.mxu0 0.0
    %576 = vmatpush.msra.mxu0 0.0
    %577 = vmatpush.msra.mxu0 0.0
    %578 = vmatpush.msra.mxu0 0.0
    %579 = vmatpush.msra.mxu0 0.0
    %580 = vmatpush.msra.mxu0 0.0
    %581 = vmatpush.msra.mxu0 0.0
    %582 = vmatpush.msra.mxu0 0.0
    %583 = vmatpush.msra.mxu0 0.0
    %584 = vmatpush.msra.mxu0 0.0
    %585 = vmatpush.msra.mxu0 0.0
    %586 = vmatpush.msra.mxu0 0.0
    %587 = vmatpush.msra.mxu0 %v469
    %588 = vmatpush.msra.mxu0 %v451
    %589 = vmatpush.msra.mxu0 %v447
    %590 = vmatmul.f32.gmra.mxu0 %v459
    %v591 = vpop.f32.mrf.mxu0
    %v592 = vadd.f32 %v572, %v591
    %593 = vdwg.mxu0
    %594 = vmatpush.msra.mxu0 %v444
    %595 = vmatpush.msra.mxu0 %v440
    %596 = vmatpush.msra.mxu0 %v436
    %597 = vmatpush.msra.mxu0 %v432
    %598 = vmatpush.msra.mxu0 %v428
    %599 = vmatpush.msra.mxu0 %v424
    %600 = vmatpush.msra.mxu0 %v420
    %601 = vmatpush.msra.mxu0 %v416
    %602 = vmatpush.msra.mxu0 %v412
    %603 = vmatpush.msra.mxu0 %v408
    %604 = vmatpush.msra.mxu0 %v404
    %605 = vmatpush.msra.mxu0 %v400
    %606 = vmatpush.msra.mxu0 %v396
    %607 = vmatpush.msra.mxu0 %v392
    %608 = vmatpush.msra.mxu0 %v388
    %609 = vmatpush.msra.mxu0 %v384
    %610 = vmatmul.f32.gmra.mxu0 %v379
    %v611 = vpop.f32.mrf.mxu0
    %v612 = vadd.f32 0.0, %v611
    %613 = vdwg.mxu0
    %614 = vmatpush.msra.mxu0 0.0
    %615 = vmatpush.msra.mxu0 0.0
    %616 = vmatpush.msra.mxu0 0.0
    %617 = vmatpush.msra.mxu0 0.0
    %618 = vmatpush.msra.mxu0 0.0
    %619 = vmatpush.msra.mxu0 0.0
    %620 = vmatpush.msra.mxu0 0.0
    %621 = vmatpush.msra.mxu0 0.0
    %622 = vmatpush.msra.mxu0 0.0
    %623 = vmatpush.msra.mxu0 0.0
    %624 = vmatpush.msra.mxu0 0.0
    %625 = vmatpush.msra.mxu0 0.0
    %626 = vmatpush.msra.mxu0 0.0
    %627 = vmatpush.msra.mxu0 %v472
    %628 = vmatpush.msra.mxu0 %v452
    %629 = vmatpush.msra.mxu0 %v448
    %630 = vmatmul.f32.gmra.mxu0 %v459
    %v631 = vpop.f32.mrf.mxu0
    %v632 = vadd.f32 %v612, %v631
    %633 = vdwg.mxu0
    %v634 = vld [vmem:[#allocation7] sm:$0xff]
    %v635 = vld [vmem:[#allocation7 + $0x8] sm:$0xff]
    %v636 = vld [vmem:[#allocation7 + $0x10] sm:$0xff]
    %v637 = vld [vmem:[#allocation7 + $0x18] sm:$0xff]
    %v638 = vld [vmem:[#allocation7 + $0x20] sm:$0xff]
    %v639 = vld [vmem:[#allocation7 + $0x28] sm:$0xff]
    %v640 = vld [vmem:[#allocation7 + $0x30] sm:$0xff]
    %v641 = vld [vmem:[#allocation7 + $0x38] sm:$0xff]
    %v642 = vld [vmem:[#allocation7 + $0x40] sm:$0xff]
    %v643 = vld [vmem:[#allocation7 + $0x48] sm:$0xff]
    %v644 = vld [vmem:[#allocation7 + $0x50] sm:$0xff]
    %v645 = vld [vmem:[#allocation7 + $0x58] sm:$0xff]
    %v646 = vld [vmem:[#allocation7 + $0x60] sm:$0xff]
    %v647 = vld [vmem:[#allocation7 + $0x68] sm:$0xff]
    %v648 = vld [vmem:[#allocation7 + $0x70] sm:$0xff]
    %v649 = vld [vmem:[#allocation7 + $0x78] sm:$0xff]
    %v650 = vld [vmem:[#allocation7 + $0x80] sm:$0xff]
    %v651 = vld [vmem:[#allocation7 + $0x88] sm:$0xff]
    %v652 = vld [vmem:[#allocation7 + $0x90] sm:$0xff]
    %v653 = vld [vmem:[#allocation7 + $0x98] sm:$0xff]
    %v654 = vld [vmem:[#allocation7 + $0xa0] sm:$0xff]
    %v655 = vld [vmem:[#allocation7 + $0xa8] sm:$0xff]
    %v656 = vld [vmem:[#allocation7 + $0xb0] sm:$0xff]
    %v657 = vld [vmem:[#allocation7 + $0xb8] sm:$0xff]
    %v658 = vld [vmem:[#allocation7 + $0xc0] sm:$0xff]
    %v659 = vld [vmem:[#allocation7 + $0xc8] sm:$0xff]
    %v660 = vld [vmem:[#allocation7 + $0xd0] sm:$0xff]
    %v661 = vld [vmem:[#allocation7 + $0xd8] sm:$0xff]
    %v662 = vld [vmem:[#allocation7 + $0xe0] sm:$0xff]
    %v663 = vld [vmem:[#allocation7 + $0xe8] sm:$0xff]
    %v664 = vld [vmem:[#allocation7 + $0xf0] sm:$0xff]
    %v665 = vld [vmem:[#allocation7 + $0xf8] sm:$0xff]
    %v666 = vld [vmem:[#allocation7 + $0x100] sm:$0xff]
    %v667 = vld [vmem:[#allocation7 + $0x108] sm:$0xff]
    %v668 = vld [vmem:[#allocation7 + $0x110] sm:$0xff]
    %v669 = vld [vmem:[#allocation7 + $0x118] sm:$0xff]
    %v670 = vld [vmem:[#allocation7 + $0x120] sm:$0xff]
    %v671 = vld [vmem:[#allocation7 + $0x128] sm:$0xff]
    %v672 = vld [vmem:[#allocation7 + $0x130] sm:$0xff]
    %v673 = vld [vmem:[#allocation7 + $0x138] sm:$0xff]
    %v674 = vld [vmem:[#allocation7 + $0x140] sm:$0xff]
    %v675 = vld [vmem:[#allocation7 + $0x148] sm:$0xff]
    %v676 = vld [vmem:[#allocation7 + $0x150] sm:$0xff]
    %v677 = vld [vmem:[#allocation7 + $0x158] sm:$0xff]
    %v678 = vld [vmem:[#allocation7 + $0x160] sm:$0xff]
    %v679 = vld [vmem:[#allocation7 + $0x168] sm:$0xff]
    %v680 = vld [vmem:[#allocation7 + $0x170] sm:$0xff]
    %v681 = vld [vmem:[#allocation7 + $0x178] sm:$0xff]
    %v682 = vld [vmem:[#allocation7 + $0x180] sm:$0xff]
    %v683 = vld [vmem:[#allocation7 + $0x188] sm:$0xff]
    %vm684 = vcmask 130048
    %v686 = vsel %vm684, %v632, 0
    %688 = vmatpush.msra.mxu0 %v649
    %689 = vmatpush.msra.mxu0 %v648
    %690 = vmatpush.msra.mxu0 %v647
    %691 = vmatpush.msra.mxu0 %v646
    %692 = vmatpush.msra.mxu0 %v645
    %693 = vmatpush.msra.mxu0 %v644
    %694 = vmatpush.msra.mxu0 %v643
    %695 = vmatpush.msra.mxu0 %v642
    %696 = vmatpush.msra.mxu0 %v641
    %697 = vmatpush.msra.mxu0 %v640
    %698 = vmatpush.msra.mxu0 %v639
    %699 = vmatpush.msra.mxu0 %v638
    %700 = vmatpush.msra.mxu0 %v637
    %701 = vmatpush.msra.mxu0 %v636
    %702 = vmatpush.msra.mxu0 %v635
    %703 = vmatpush.msra.mxu0 %v634
    %704 = vmatmul.f32.gmra.mxu0 %v512
    %v705 = vpop.f32.mrf.mxu0
    %v706 = vadd.f32 0.0, %v705
    %707 = vdwg.mxu0
    %708 = vmatpush.msra.mxu0 %v665
    %709 = vmatpush.msra.mxu0 %v664
    %710 = vmatpush.msra.mxu0 %v663
    %711 = vmatpush.msra.mxu0 %v662
    %712 = vmatpush.msra.mxu0 %v661
    %713 = vmatpush.msra.mxu0 %v660
    %714 = vmatpush.msra.mxu0 %v659
    %715 = vmatpush.msra.mxu0 %v658
    %716 = vmatpush.msra.mxu0 %v657
    %717 = vmatpush.msra.mxu0 %v656
    %718 = vmatpush.msra.mxu0 %v655
    %719 = vmatpush.msra.mxu0 %v654
    %720 = vmatpush.msra.mxu0 %v653
    %721 = vmatpush.msra.mxu0 %v652
    %722 = vmatpush.msra.mxu0 %v651
    %723 = vmatpush.msra.mxu0 %v650
    %724 = vmatmul.f32.gmra.mxu0 %v552
    %v725 = vpop.f32.mrf.mxu0
    %v726 = vadd.f32 %v706, %v725
    %727 = vdwg.mxu0
    %728 = vmatpush.msra.mxu0 %v681
    %729 = vmatpush.msra.mxu0 %v680
    %730 = vmatpush.msra.mxu0 %v679
    %731 = vmatpush.msra.mxu0 %v678
    %732 = vmatpush.msra.mxu0 %v677
    %733 = vmatpush.msra.mxu0 %v676
    %734 = vmatpush.msra.mxu0 %v675
    %735 = vmatpush.msra.mxu0 %v674
    %736 = vmatpush.msra.mxu0 %v673
    %737 = vmatpush.msra.mxu0 %v672
    %738 = vmatpush.msra.mxu0 %v671
    %739 = vmatpush.msra.mxu0 %v670
    %740 = vmatpush.msra.mxu0 %v669
    %741 = vmatpush.msra.mxu0 %v668
    %742 = vmatpush.msra.mxu0 %v667
    %743 = vmatpush.msra.mxu0 %v666
    %744 = vmatmul.f32.gmra.mxu0 %v592
    %v745 = vpop.f32.mrf.mxu0
    %v746 = vadd.f32 %v726, %v745
    %747 = vdwg.mxu0
    %748 = vmatpush.msra.mxu0 0.0
    %749 = vmatpush.msra.mxu0 0.0
    %750 = vmatpush.msra.mxu0 0.0
    %751 = vmatpush.msra.mxu0 0.0
    %752 = vmatpush.msra.mxu0 0.0
    %753 = vmatpush.msra.mxu0 0.0
    %754 = vmatpush.msra.mxu0 0.0
    %755 = vmatpush.msra.mxu0 0.0
    %756 = vmatpush.msra.mxu0 0.0
    %757 = vmatpush.msra.mxu0 0.0
    %758 = vmatpush.msra.mxu0 0.0
    %759 = vmatpush.msra.mxu0 0.0
    %760 = vmatpush.msra.mxu0 0.0
    %761 = vmatpush.msra.mxu0 0.0
    %762 = vmatpush.msra.mxu0 %v683
    %763 = vmatpush.msra.mxu0 %v682
    %764 = vmatmul.f32.gmra.mxu0 %v686
    %v765 = vpop.f32.mrf.mxu0
    %v766 = vadd.f32 %v746, %v765
    %767 = vdwg.mxu0
    %v768 = vmul.f32 %v512, %v512
    %v769 = vmul.f32 %v552, %v552
    %v770 = vmul.f32 %v592, %v592
    %v771 = vmul.f32 %v632, %v632
    %v773 = vsel %vm684, %v771, 0
    %775 = vmatpush.msra.mxu0 %v649
    %776 = vmatpush.msra.mxu0 %v648
    %777 = vmatpush.msra.mxu0 %v647
    %778 = vmatpush.msra.mxu0 %v646
    %779 = vmatpush.msra.mxu0 %v645
    %780 = vmatpush.msra.mxu0 %v644
    %781 = vmatpush.msra.mxu0 %v643
    %782 = vmatpush.msra.mxu0 %v642
    %783 = vmatpush.msra.mxu0 %v641
    %784 = vmatpush.msra.mxu0 %v640
    %785 = vmatpush.msra.mxu0 %v639
    %786 = vmatpush.msra.mxu0 %v638
    %787 = vmatpush.msra.mxu0 %v637
    %788 = vmatpush.msra.mxu0 %v636
    %789 = vmatpush.msra.mxu0 %v635
    %790 = vmatpush.msra.mxu0 %v634
    %791 = vmatmul.f32.gmra.mxu0 %v768
    %v792 = vpop.f32.mrf.mxu0
    %v793 = vadd.f32 0.0, %v792
    %794 = vdwg.mxu0
    %795 = vmatpush.msra.mxu0 %v665
    %796 = vmatpush.msra.mxu0 %v664
    %797 = vmatpush.msra.mxu0 %v663
    %798 = vmatpush.msra.mxu0 %v662
    %799 = vmatpush.msra.mxu0 %v661
    %800 = vmatpush.msra.mxu0 %v660
    %801 = vmatpush.msra.mxu0 %v659
    %802 = vmatpush.msra.mxu0 %v658
    %803 = vmatpush.msra.mxu0 %v657
    %804 = vmatpush.msra.mxu0 %v656
    %805 = vmatpush.msra.mxu0 %v655
    %806 = vmatpush.msra.mxu0 %v654
    %807 = vmatpush.msra.mxu0 %v653
    %808 = vmatpush.msra.mxu0 %v652
    %809 = vmatpush.msra.mxu0 %v651
    %810 = vmatpush.msra.mxu0 %v650
    %811 = vmatmul.f32.gmra.mxu0 %v769
    %v812 = vpop.f32.mrf.mxu0
    %v813 = vadd.f32 %v793, %v812
    %814 = vdwg.mxu0
    %815 = vmatpush.msra.mxu0 %v681
    %816 = vmatpush.msra.mxu0 %v680
    %817 = vmatpush.msra.mxu0 %v679
    %818 = vmatpush.msra.mxu0 %v678
    %819 = vmatpush.msra.mxu0 %v677
    %820 = vmatpush.msra.mxu0 %v676
    %821 = vmatpush.msra.mxu0 %v675
    %822 = vmatpush.msra.mxu0 %v674
    %823 = vmatpush.msra.mxu0 %v673
    %824 = vmatpush.msra.mxu0 %v672
    %825 = vmatpush.msra.mxu0 %v671
    %826 = vmatpush.msra.mxu0 %v670
    %827 = vmatpush.msra.mxu0 %v669
    %828 = vmatpush.msra.mxu0 %v668
    %829 = vmatpush.msra.mxu0 %v667
    %830 = vmatpush.msra.mxu0 %v666
    %831 = vmatmul.f32.gmra.mxu0 %v770
    %v832 = vpop.f32.mrf.mxu0
    %v833 = vadd.f32 %v813, %v832
    %834 = vdwg.mxu0
    %835 = vmatpush.msra.mxu0 0.0
    %836 = vmatpush.msra.mxu0 0.0
    %837 = vmatpush.msra.mxu0 0.0
    %838 = vmatpush.msra.mxu0 0.0
    %839 = vmatpush.msra.mxu0 0.0
    %840 = vmatpush.msra.mxu0 0.0
    %841 = vmatpush.msra.mxu0 0.0
    %842 = vmatpush.msra.mxu0 0.0
    %843 = vmatpush.msra.mxu0 0.0
    %844 = vmatpush.msra.mxu0 0.0
    %845 = vmatpush.msra.mxu0 0.0
    %846 = vmatpush.msra.mxu0 0.0
    %847 = vmatpush.msra.mxu0 0.0
    %848 = vmatpush.msra.mxu0 0.0
    %849 = vmatpush.msra.mxu0 %v683
    %850 = vmatpush.msra.mxu0 %v682
    %851 = vmatmul.f32.gmra.mxu0 %v773
    %v852 = vpop.f32.mrf.mxu0
    %v853 = vadd.f32 %v833, %v852
    %854 = vdwg.mxu0
    %v855 = vsel %vm684, %v766, 0.0
    %v856 = vrot.slane %v855, 4
    %v857 = vadd.f32 %v855, %v856
    %v858 = vrot.slane %v857, 2
    %v859 = vadd.f32 %v857, %v858
    %v860 = vrot.slane %v859, 1
    %v861 = vadd.f32 %v859, %v860
    %v862 = vmul.f32 %v861, 0.005
    %v863 = vsel %vm684, %v853, 0.0
    %v864 = vrot.slane %v863, 4
    %v865 = vadd.f32 %v863, %v864
    %v866 = vrot.slane %v865, 2
    %v867 = vadd.f32 %v865, %v866
    %v868 = vrot.slane %v867, 1
    %v869 = vadd.f32 %v867, %v868
    %v870 = vmul.f32 %v869, 0.005
    %v871 = vmul.f32 %v862, %v862
    %v872 = vsub.f32 %v870, %v871
    %v873 = vld [vmem:[#allocation4] sm:$0x1]
    %v874 = vadd.f32 %v872, 1e-05
    %v875 = vrsqrt.pop %v874
    %v876 = vmul.f32 %v875, %v874
    %v877 = vmul.f32 %v876, %v875
    %v878 = vmul.f32 0.5, %v877
    %v879 = vsub.f32 1.5, %v878
    %v880 = vmul.f32 %v875, %v879
    %vm881 = vweird.f32 %v874
    %vm882 = vweird.f32 %v875
    %vm883 = vmor %vm881, %vm882
    %v884 = vsel %vm883, %v875, %v880
    %v885 = vmul.f32 %v873, %v884
    %v886 = vld [vmem:[#allocation6] sm:$0x1]
    %v887 = vmul.f32 %v862, %v885
    %v888 = vsub.f32 %v886, %v887
    %v889 = vld [vmem:[#allocation9] sm:$0xff]
    %v890 = vld [vmem:[#allocation9 + $0x8] sm:$0xff]
    %v891 = vld [vmem:[#allocation9 + $0x10] sm:$0xff]
    %v892 = vld [vmem:[#allocation9 + $0x18] sm:$0xff]
    %v893 = vld [vmem:[#allocation9 + $0x20] sm:$0xff]
    %v894 = vld [vmem:[#allocation9 + $0x28] sm:$0xff]
    %v895 = vld [vmem:[#allocation9 + $0x30] sm:$0xff]
    %v896 = vld [vmem:[#allocation9 + $0x38] sm:$0xff]
    %v898 = vsel %vm684, %v885, 0
    %900 = vmatpush.msra.mxu0 0.0
    %901 = vmatpush.msra.mxu0 0.0
    %902 = vmatpush.msra.mxu0 0.0
    %903 = vmatpush.msra.mxu0 0.0
    %904 = vmatpush.msra.mxu0 0.0
    %905 = vmatpush.msra.mxu0 0.0
    %906 = vmatpush.msra.mxu0 0.0
    %907 = vmatpush.msra.mxu0 0.0
    %908 = vmatpush.msra.mxu0 0.0
    %909 = vmatpush.msra.mxu0 0.0
    %910 = vmatpush.msra.mxu0 0.0
    %911 = vmatpush.msra.mxu0 0.0
    %912 = vmatpush.msra.mxu0 0.0
    %913 = vmatpush.msra.mxu0 0.0
    %914 = vmatpush.msra.mxu0 %v893
    %915 = vmatpush.msra.mxu0 %v889
    %916 = vmatmul.f32.gmra.mxu0 %v898
    %v917 = vpop.f32.mrf.mxu0
    %v918 = vadd.f32 0.0, %v917
    %919 = vdwg.mxu0
    %920 = vmatpush.msra.mxu0 0.0
    %921 = vmatpush.msra.mxu0 0.0
    %922 = vmatpush.msra.mxu0 0.0
    %923 = vmatpush.msra.mxu0 0.0
    %924 = vmatpush.msra.mxu0 0.0
    %925 = vmatpush.msra.mxu0 0.0
    %926 = vmatpush.msra.mxu0 0.0
    %927 = vmatpush.msra.mxu0 0.0
    %928 = vmatpush.msra.mxu0 0.0
    %929 = vmatpush.msra.mxu0 0.0
    %930 = vmatpush.msra.mxu0 0.0
    %931 = vmatpush.msra.mxu0 0.0
    %932 = vmatpush.msra.mxu0 0.0
    %933 = vmatpush.msra.mxu0 0.0
    %934 = vmatpush.msra.mxu0 %v894
    %935 = vmatpush.msra.mxu0 %v890
    %936 = vmatmul.f32.gmra.mxu0 %v898
    %v937 = vpop.f32.mrf.mxu0
    %v938 = vadd.f32 0.0, %v937
    %939 = vdwg.mxu0
    %940 = vmatpush.msra.mxu0 0.0
    %941 = vmatpush.msra.mxu0 0.0
    %942 = vmatpush.msra.mxu0 0.0
    %943 = vmatpush.msra.mxu0 0.0
    %944 = vmatpush.msra.mxu0 0.0
    %945 = vmatpush.msra.mxu0 0.0
    %946 = vmatpush.msra.mxu0 0.0
    %947 = vmatpush.msra.mxu0 0.0
    %948 = vmatpush.msra.mxu0 0.0
    %949 = vmatpush.msra.mxu0 0.0
    %950 = vmatpush.msra.mxu0 0.0
    %951 = vmatpush.msra.mxu0 0.0
    %952 = vmatpush.msra.mxu0 0.0
    %953 = vmatpush.msra.mxu0 0.0
    %954 = vmatpush.msra.mxu0 %v895
    %955 = vmatpush.msra.mxu0 %v891
    %956 = vmatmul.f32.gmra.mxu0 %v898
    %v957 = vpop.f32.mrf.mxu0
    %v958 = vadd.f32 0.0, %v957
    %959 = vdwg.mxu0
    %960 = vmatpush.msra.mxu0 0.0
    %961 = vmatpush.msra.mxu0 0.0
    %962 = vmatpush.msra.mxu0 0.0
    %963 = vmatpush.msra.mxu0 0.0
    %964 = vmatpush.msra.mxu0 0.0
    %965 = vmatpush.msra.mxu0 0.0
    %966 = vmatpush.msra.mxu0 0.0
    %967 = vmatpush.msra.mxu0 0.0
    %968 = vmatpush.msra.mxu0 0.0
    %969 = vmatpush.msra.mxu0 0.0
    %970 = vmatpush.msra.mxu0 0.0
    %971 = vmatpush.msra.mxu0 0.0
    %972 = vmatpush.msra.mxu0 0.0
    %973 = vmatpush.msra.mxu0 0.0
    %974 = vmatpush.msra.mxu0 %v896
    %975 = vmatpush.msra.mxu0 %v892
    %976 = vmatmul.f32.gmra.mxu0 %v898
    %v977 = vpop.f32.mrf.mxu0
    %v978 = vadd.f32 0.0, %v977
    %979 = vdwg.mxu0
    %v981 = vsel %vm684, %v888, 0
    %983 = vmatpush.msra.mxu0 0.0
    %984 = vmatpush.msra.mxu0 0.0
    %985 = vmatpush.msra.mxu0 0.0
    %986 = vmatpush.msra.mxu0 0.0
    %987 = vmatpush.msra.mxu0 0.0
    %988 = vmatpush.msra.mxu0 0.0
    %989 = vmatpush.msra.mxu0 0.0
    %990 = vmatpush.msra.mxu0 0.0
    %991 = vmatpush.msra.mxu0 0.0
    %992 = vmatpush.msra.mxu0 0.0
    %993 = vmatpush.msra.mxu0 0.0
    %994 = vmatpush.msra.mxu0 0.0
    %995 = vmatpush.msra.mxu0 0.0
    %996 = vmatpush.msra.mxu0 0.0
    %997 = vmatpush.msra.mxu0 %v893
    %998 = vmatpush.msra.mxu0 %v889
    %999 = vmatmul.f32.gmra.mxu0 %v981
    %v1000 = vpop.f32.mrf.mxu0
    %v1001 = vadd.f32 0.0, %v1000
    %1002 = vdwg.mxu0
    %1003 = vmatpush.msra.mxu0 0.0
    %1004 = vmatpush.msra.mxu0 0.0
    %1005 = vmatpush.msra.mxu0 0.0
    %1006 = vmatpush.msra.mxu0 0.0
    %1007 = vmatpush.msra.mxu0 0.0
    %1008 = vmatpush.msra.mxu0 0.0
    %1009 = vmatpush.msra.mxu0 0.0
    %1010 = vmatpush.msra.mxu0 0.0
    %1011 = vmatpush.msra.mxu0 0.0
    %1012 = vmatpush.msra.mxu0 0.0
    %1013 = vmatpush.msra.mxu0 0.0
    %1014 = vmatpush.msra.mxu0 0.0
    %1015 = vmatpush.msra.mxu0 0.0
    %1016 = vmatpush.msra.mxu0 0.0
    %1017 = vmatpush.msra.mxu0 %v894
    %1018 = vmatpush.msra.mxu0 %v890
    %1019 = vmatmul.f32.gmra.mxu0 %v981
    %v1020 = vpop.f32.mrf.mxu0
    %v1021 = vadd.f32 0.0, %v1020
    %1022 = vdwg.mxu0
    %1023 = vmatpush.msra.mxu0 0.0
    %1024 = vmatpush.msra.mxu0 0.0
    %1025 = vmatpush.msra.mxu0 0.0
    %1026 = vmatpush.msra.mxu0 0.0
    %1027 = vmatpush.msra.mxu0 0.0
    %1028 = vmatpush.msra.mxu0 0.0
    %1029 = vmatpush.msra.mxu0 0.0
    %1030 = vmatpush.msra.mxu0 0.0
    %1031 = vmatpush.msra.mxu0 0.0
    %1032 = vmatpush.msra.mxu0 0.0
    %1033 = vmatpush.msra.mxu0 0.0
    %1034 = vmatpush.msra.mxu0 0.0
    %1035 = vmatpush.msra.mxu0 0.0
    %1036 = vmatpush.msra.mxu0 0.0
    %1037 = vmatpush.msra.mxu0 %v895
    %1038 = vmatpush.msra.mxu0 %v891
    %1039 = vmatmul.f32.gmra.mxu0 %v981
    %v1040 = vpop.f32.mrf.mxu0
    %v1041 = vadd.f32 0.0, %v1040
    %1042 = vdwg.mxu0
    %1043 = vmatpush.msra.mxu0 0.0
    %1044 = vmatpush.msra.mxu0 0.0
    %1045 = vmatpush.msra.mxu0 0.0
    %1046 = vmatpush.msra.mxu0 0.0
    %1047 = vmatpush.msra.mxu0 0.0
    %1048 = vmatpush.msra.mxu0 0.0
    %1049 = vmatpush.msra.mxu0 0.0
    %1050 = vmatpush.msra.mxu0 0.0
    %1051 = vmatpush.msra.mxu0 0.0
    %1052 = vmatpush.msra.mxu0 0.0
    %1053 = vmatpush.msra.mxu0 0.0
    %1054 = vmatpush.msra.mxu0 0.0
    %1055 = vmatpush.msra.mxu0 0.0
    %1056 = vmatpush.msra.mxu0 0.0
    %1057 = vmatpush.msra.mxu0 %v896
    %1058 = vmatpush.msra.mxu0 %v892
    %1059 = vmatmul.f32.gmra.mxu0 %v981
    %v1060 = vpop.f32.mrf.mxu0
    %v1061 = vadd.f32 0.0, %v1060
    %1062 = vdwg.mxu0
    %v1063 = vperm.slane %v918, 0
    %v1064 = vperm.slane %v938, 0
    %v1065 = vperm.slane %v958, 0
    %v1066 = vperm.slane %v978, 0
    %v1067 = vmul.f32 %v512, %v1063
    %v1068 = vmul.f32 %v552, %v1064
    %v1069 = vmul.f32 %v592, %v1065
    %v1070 = vmul.f32 %v632, %v1066
    %v1071 = vperm.slane %v1001, 0
    %v1072 = vperm.slane %v1021, 0
    %v1073 = vperm.slane %v1041, 0
    %v1074 = vperm.slane %v1061, 0
    %v1075 = vadd.f32 %v1067, %v1071
    %v1076 = vadd.f32 %v1068, %v1072
    %v1077 = vadd.f32 %v1069, %v1073
    %v1078 = vadd.f32 %v1070, %v1074
    %v1079 = vmax.f32 %v1075, 0.0
    %v1080 = vmax.f32 %v1076, 0.0
    %v1081 = vmax.f32 %v1077, 0.0
    %v1082 = vmax.f32 %v1078, 0.0
    %v1083 = vld [vmem:[#allocation10] sm:$0xff]
    %v1084 = vld [vmem:[#allocation10 + $0x8] sm:$0xff]
    %v1085 = vld [vmem:[#allocation10 + $0x10] sm:$0xff]
    %v1086 = vld [vmem:[#allocation10 + $0x18] sm:$0xff]
    %v1087 = vld [vmem:[#allocation10 + $0x20] sm:$0xff]
    %v1088 = vld [vmem:[#allocation10 + $0x28] sm:$0xff]
    %v1089 = vld [vmem:[#allocation10 + $0x30] sm:$0xff]
    %v1090 = vld [vmem:[#allocation10 + $0x38] sm:$0xff]
    %v1091 = vld [vmem:[#allocation10 + $0x40] sm:$0xff]
    %v1092 = vld [vmem:[#allocation10 + $0x48] sm:$0xff]
    %v1093 = vld [vmem:[#allocation10 + $0x50] sm:$0xff]
    %v1094 = vld [vmem:[#allocation10 + $0x58] sm:$0xff]
    %v1095 = vld [vmem:[#allocation10 + $0x60] sm:$0xff]
    %v1096 = vld [vmem:[#allocation10 + $0x68] sm:$0xff]
    %v1097 = vld [vmem:[#allocation10 + $0x70] sm:$0xff]
    %v1098 = vld [vmem:[#allocation10 + $0x78] sm:$0xff]
    %v1099 = vld [vmem:[#allocation10 + $0x80] sm:$0xff]
    %v1100 = vld [vmem:[#allocation10 + $0x88] sm:$0xff]
    %v1101 = vld [vmem:[#allocation10 + $0x90] sm:$0xff]
    %v1102 = vld [vmem:[#allocation10 + $0x98] sm:$0xff]
    %v1103 = vld [vmem:[#allocation10 + $0xa0] sm:$0xff]
    %v1104 = vld [vmem:[#allocation10 + $0xa8] sm:$0xff]
    %v1105 = vld [vmem:[#allocation10 + $0xb0] sm:$0xff]
    %v1106 = vld [vmem:[#allocation10 + $0xb8] sm:$0xff]
    %v1107 = vld [vmem:[#allocation10 + $0xc0] sm:$0xff]
    %v1108 = vld [vmem:[#allocation10 + $0xc8] sm:$0xff]
    %v1109 = vld [vmem:[#allocation10 + $0xd0] sm:$0xff]
    %v1110 = vld [vmem:[#allocation10 + $0xd8] sm:$0xff]
    %v1111 = vld [vmem:[#allocation10 + $0xe0] sm:$0xff]
    %v1112 = vld [vmem:[#allocation10 + $0xe8] sm:$0xff]
    %v1113 = vld [vmem:[#allocation10 + $0xf0] sm:$0xff]
    %v1114 = vld [vmem:[#allocation10 + $0xf8] sm:$0xff]
    %v1115 = vld [vmem:[#allocation10 + $0x100] sm:$0xff]
    %v1116 = vld [vmem:[#allocation10 + $0x108] sm:$0xff]
    %v1117 = vld [vmem:[#allocation10 + $0x110] sm:$0xff]
    %v1118 = vld [vmem:[#allocation10 + $0x118] sm:$0xff]
    %v1119 = vld [vmem:[#allocation10 + $0x120] sm:$0xff]
    %v1120 = vld [vmem:[#allocation10 + $0x128] sm:$0xff]
    %v1121 = vld [vmem:[#allocation10 + $0x130] sm:$0xff]
    %v1122 = vld [vmem:[#allocation10 + $0x138] sm:$0xff]
    %v1123 = vld [vmem:[#allocation10 + $0x140] sm:$0xff]
    %v1124 = vld [vmem:[#allocation10 + $0x148] sm:$0xff]
    %v1125 = vld [vmem:[#allocation10 + $0x150] sm:$0xff]
    %v1126 = vld [vmem:[#allocation10 + $0x158] sm:$0xff]
    %v1127 = vld [vmem:[#allocation10 + $0x160] sm:$0xff]
    %v1128 = vld [vmem:[#allocation10 + $0x168] sm:$0xff]
    %v1129 = vld [vmem:[#allocation10 + $0x170] sm:$0xff]
    %v1130 = vld [vmem:[#allocation10 + $0x178] sm:$0xff]
    %v1131 = vld [vmem:[#allocation10 + $0x180] sm:$0xff]
    %v1132 = vld [vmem:[#allocation10 + $0x188] sm:$0xff]
    %v1133 = vld [vmem:[#allocation10 + $0x190] sm:$0xff]
    %v1134 = vld [vmem:[#allocation10 + $0x198] sm:$0xff]
    %v1135 = vld [vmem:[#allocation10 + $0x1a0] sm:$0xff]
    %v1136 = vld [vmem:[#allocation10 + $0x1a8] sm:$0xff]
    %v1137 = vld [vmem:[#allocation10 + $0x1b0] sm:$0xff]
    %v1138 = vld [vmem:[#allocation10 + $0x1b8] sm:$0xff]
    %v1139 = vld [vmem:[#allocation10 + $0x1c0] sm:$0xff]
    %v1140 = vld [vmem:[#allocation10 + $0x1c8] sm:$0xff]
    %v1141 = vld [vmem:[#allocation10 + $0x1d0] sm:$0xff]
    %v1142 = vld [vmem:[#allocation10 + $0x1d8] sm:$0xff]
    %v1143 = vld [vmem:[#allocation10 + $0x1e0] sm:$0xff]
    %v1144 = vld [vmem:[#allocation10 + $0x1e8] sm:$0xff]
    %v1145 = vld [vmem:[#allocation10 + $0x1f0] sm:$0xff]
    %v1146 = vld [vmem:[#allocation10 + $0x1f8] sm:$0xff]
    %v1147 = vld [vmem:[#allocation10 + $0x200] sm:$0xff]
    %v1148 = vld [vmem:[#allocation10 + $0x208] sm:$0xff]
    %v1149 = vld [vmem:[#allocation10 + $0x210] sm:$0xff]
    %v1150 = vld [vmem:[#allocation10 + $0x218] sm:$0xff]
    %v1151 = vld [vmem:[#allocation10 + $0x220] sm:$0xff]
    %v1152 = vld [vmem:[#allocation10 + $0x228] sm:$0xff]
    %v1153 = vld [vmem:[#allocation10 + $0x230] sm:$0xff]
    %v1154 = vld [vmem:[#allocation10 + $0x238] sm:$0xff]
    %v1155 = vld [vmem:[#allocation10 + $0x240] sm:$0xff]
    %v1156 = vld [vmem:[#allocation10 + $0x248] sm:$0xff]
    %v1157 = vld [vmem:[#allocation10 + $0x250] sm:$0xff]
    %v1158 = vld [vmem:[#allocation10 + $0x258] sm:$0xff]
    %v1159 = vld [vmem:[#allocation10 + $0x260] sm:$0xff]
    %v1160 = vld [vmem:[#allocation10 + $0x268] sm:$0xff]
    %v1161 = vld [vmem:[#allocation10 + $0x270] sm:$0xff]
    %v1162 = vld [vmem:[#allocation10 + $0x278] sm:$0xff]
    %v1163 = vld [vmem:[#allocation10 + $0x280] sm:$0xff]
    %v1164 = vld [vmem:[#allocation10 + $0x288] sm:$0xff]
    %v1165 = vld [vmem:[#allocation10 + $0x290] sm:$0xff]
    %v1166 = vld [vmem:[#allocation10 + $0x298] sm:$0xff]
    %v1167 = vld [vmem:[#allocation10 + $0x2a0] sm:$0xff]
    %v1168 = vld [vmem:[#allocation10 + $0x2a8] sm:$0xff]
    %v1169 = vld [vmem:[#allocation10 + $0x2b0] sm:$0xff]
    %v1170 = vld [vmem:[#allocation10 + $0x2b8] sm:$0xff]
    %v1171 = vld [vmem:[#allocation10 + $0x2c0] sm:$0xff]
    %v1172 = vld [vmem:[#allocation10 + $0x2c8] sm:$0xff]
    %v1173 = vld [vmem:[#allocation10 + $0x2d0] sm:$0xff]
    %v1174 = vld [vmem:[#allocation10 + $0x2d8] sm:$0xff]
    %v1175 = vld [vmem:[#allocation10 + $0x2e0] sm:$0xff]
    %v1176 = vld [vmem:[#allocation10 + $0x2e8] sm:$0xff]
    %v1177 = vld [vmem:[#allocation10 + $0x2f0] sm:$0xff]
    %v1178 = vld [vmem:[#allocation10 + $0x2f8] sm:$0xff]
    %v1179 = vld [vmem:[#allocation10 + $0x300] sm:$0xff]
    %v1180 = vld [vmem:[#allocation10 + $0x308] sm:$0xff]
    %v1181 = vld [vmem:[#allocation10 + $0x310] sm:$0xff]
    %v1182 = vld [vmem:[#allocation10 + $0x318] sm:$0xff]
    %v1183 = vld [vmem:[#allocation10 + $0x320] sm:$0xff]
    %v1184 = vld [vmem:[#allocation10 + $0x328] sm:$0xff]
    %v1185 = vld [vmem:[#allocation10 + $0x330] sm:$0xff]
    %v1186 = vld [vmem:[#allocation10 + $0x338] sm:$0xff]
    %v1187 = vld [vmem:[#allocation10 + $0x340] sm:$0xff]
    %v1188 = vld [vmem:[#allocation10 + $0x348] sm:$0xff]
    %v1189 = vld [vmem:[#allocation10 + $0x350] sm:$0xff]
    %v1190 = vld [vmem:[#allocation10 + $0x358] sm:$0xff]
    %v1191 = vld [vmem:[#allocation10 + $0x360] sm:$0xff]
    %v1192 = vld [vmem:[#allocation10 + $0x368] sm:$0xff]
    %v1193 = vld [vmem:[#allocation10 + $0x370] sm:$0xff]
    %v1194 = vld [vmem:[#allocation10 + $0x378] sm:$0xff]
    %v1195 = vld [vmem:[#allocation10 + $0x380] sm:$0xff]
    %v1196 = vld [vmem:[#allocation10 + $0x388] sm:$0xff]
    %v1197 = vld [vmem:[#allocation10 + $0x390] sm:$0xff]
    %v1198 = vld [vmem:[#allocation10 + $0x398] sm:$0xff]
    %v1199 = vld [vmem:[#allocation10 + $0x3a0] sm:$0xff]
    %v1200 = vld [vmem:[#allocation10 + $0x3a8] sm:$0xff]
    %v1201 = vld [vmem:[#allocation10 + $0x3b0] sm:$0xff]
    %v1202 = vld [vmem:[#allocation10 + $0x3b8] sm:$0xff]
    %v1203 = vld [vmem:[#allocation10 + $0x3c0] sm:$0xff]
    %v1204 = vld [vmem:[#allocation10 + $0x3c8] sm:$0xff]
    %v1205 = vld [vmem:[#allocation10 + $0x3d0] sm:$0xff]
    %v1206 = vld [vmem:[#allocation10 + $0x3d8] sm:$0xff]
    %v1207 = vld [vmem:[#allocation10 + $0x3e0] sm:$0xff]
    %v1208 = vld [vmem:[#allocation10 + $0x3e8] sm:$0xff]
    %v1209 = vld [vmem:[#allocation10 + $0x3f0] sm:$0xff]
    %v1210 = vld [vmem:[#allocation10 + $0x3f8] sm:$0xff]
    %v1211 = vld [vmem:[#allocation10 + $0x400] sm:$0xff]
    %v1212 = vld [vmem:[#allocation10 + $0x408] sm:$0xff]
    %v1213 = vld [vmem:[#allocation10 + $0x410] sm:$0xff]
    %v1214 = vld [vmem:[#allocation10 + $0x418] sm:$0xff]
    %v1215 = vld [vmem:[#allocation10 + $0x420] sm:$0xff]
    %v1216 = vld [vmem:[#allocation10 + $0x428] sm:$0xff]
    %v1217 = vld [vmem:[#allocation10 + $0x430] sm:$0xff]
    %v1218 = vld [vmem:[#allocation10 + $0x438] sm:$0xff]
    %v1219 = vld [vmem:[#allocation10 + $0x440] sm:$0xff]
    %v1220 = vld [vmem:[#allocation10 + $0x448] sm:$0xff]
    %v1221 = vld [vmem:[#allocation10 + $0x450] sm:$0xff]
    %v1222 = vld [vmem:[#allocation10 + $0x458] sm:$0xff]
    %v1223 = vld [vmem:[#allocation10 + $0x460] sm:$0xff]
    %v1224 = vld [vmem:[#allocation10 + $0x468] sm:$0xff]
    %v1225 = vld [vmem:[#allocation10 + $0x470] sm:$0xff]
    %v1226 = vld [vmem:[#allocation10 + $0x478] sm:$0xff]
    %v1227 = vld [vmem:[#allocation10 + $0x480] sm:$0xff]
    %v1228 = vld [vmem:[#allocation10 + $0x488] sm:$0xff]
    %v1229 = vld [vmem:[#allocation10 + $0x490] sm:$0xff]
    %v1230 = vld [vmem:[#allocation10 + $0x498] sm:$0xff]
    %v1231 = vld [vmem:[#allocation10 + $0x4a0] sm:$0xff]
    %v1232 = vld [vmem:[#allocation10 + $0x4a8] sm:$0xff]
    %v1233 = vld [vmem:[#allocation10 + $0x4b0] sm:$0xff]
    %v1234 = vld [vmem:[#allocation10 + $0x4b8] sm:$0xff]
    %v1235 = vld [vmem:[#allocation10 + $0x4c0] sm:$0xff]
    %v1236 = vld [vmem:[#allocation10 + $0x4c8] sm:$0xff]
    %v1237 = vld [vmem:[#allocation10 + $0x4d0] sm:$0xff]
    %v1238 = vld [vmem:[#allocation10 + $0x4d8] sm:$0xff]
    %v1239 = vld [vmem:[#allocation10 + $0x4e0] sm:$0xff]
    %v1240 = vld [vmem:[#allocation10 + $0x4e8] sm:$0xff]
    %v1241 = vld [vmem:[#allocation10 + $0x4f0] sm:$0xff]
    %v1242 = vld [vmem:[#allocation10 + $0x4f8] sm:$0xff]
    %v1243 = vld [vmem:[#allocation10 + $0x500] sm:$0xff]
    %v1244 = vld [vmem:[#allocation10 + $0x508] sm:$0xff]
    %v1245 = vld [vmem:[#allocation10 + $0x510] sm:$0xff]
    %v1246 = vld [vmem:[#allocation10 + $0x518] sm:$0xff]
    %v1247 = vld [vmem:[#allocation10 + $0x520] sm:$0xff]
    %v1248 = vld [vmem:[#allocation10 + $0x528] sm:$0xff]
    %v1249 = vld [vmem:[#allocation10 + $0x530] sm:$0xff]
    %v1250 = vld [vmem:[#allocation10 + $0x538] sm:$0xff]
    %v1251 = vld [vmem:[#allocation10 + $0x540] sm:$0xff]
    %v1252 = vld [vmem:[#allocation10 + $0x548] sm:$0xff]
    %v1253 = vld [vmem:[#allocation10 + $0x550] sm:$0xff]
    %v1254 = vld [vmem:[#allocation10 + $0x558] sm:$0xff]
    %v1255 = vld [vmem:[#allocation10 + $0x560] sm:$0xff]
    %v1256 = vld [vmem:[#allocation10 + $0x568] sm:$0xff]
    %v1257 = vld [vmem:[#allocation10 + $0x570] sm:$0xff]
    %v1258 = vld [vmem:[#allocation10 + $0x578] sm:$0xff]
    %v1259 = vld [vmem:[#allocation10 + $0x580] sm:$0xff]
    %v1260 = vld [vmem:[#allocation10 + $0x588] sm:$0xff]
    %v1261 = vld [vmem:[#allocation10 + $0x590] sm:$0xff]
    %v1262 = vld [vmem:[#allocation10 + $0x598] sm:$0xff]
    %v1263 = vld [vmem:[#allocation10 + $0x5a0] sm:$0xff]
    %v1264 = vld [vmem:[#allocation10 + $0x5a8] sm:$0xff]
    %v1265 = vld [vmem:[#allocation10 + $0x5b0] sm:$0xff]
    %v1266 = vld [vmem:[#allocation10 + $0x5b8] sm:$0xff]
    %v1267 = vld [vmem:[#allocation10 + $0x5c0] sm:$0xff]
    %v1268 = vld [vmem:[#allocation10 + $0x5c8] sm:$0xff]
    %v1269 = vld [vmem:[#allocation10 + $0x5d0] sm:$0xff]
    %v1270 = vld [vmem:[#allocation10 + $0x5d8] sm:$0xff]
    %v1271 = vld [vmem:[#allocation10 + $0x5e0] sm:$0xff]
    %v1272 = vld [vmem:[#allocation10 + $0x5e8] sm:$0xff]
    %v1273 = vld [vmem:[#allocation10 + $0x5f0] sm:$0xff]
    %v1274 = vld [vmem:[#allocation10 + $0x5f8] sm:$0xff]
    %v1275 = vld [vmem:[#allocation10 + $0x600] sm:$0xff]
    %v1276 = vld [vmem:[#allocation10 + $0x608] sm:$0xff]
    %v1277 = vld [vmem:[#allocation10 + $0x610] sm:$0xff]
    %v1278 = vld [vmem:[#allocation10 + $0x618] sm:$0xff]
    %v1279 = vld [vmem:[#allocation10 + $0x620] sm:$0xff]
    %v1280 = vld [vmem:[#allocation10 + $0x628] sm:$0xff]
    %v1281 = vld [vmem:[#allocation10 + $0x630] sm:$0xff]
    %v1282 = vld [vmem:[#allocation10 + $0x638] sm:$0xff]
    %v1284 = vsel %vm684, %v1082, 0
    %1286 = vmatpush.msra.mxu0 %v1143
    %1287 = vmatpush.msra.mxu0 %v1139
    %1288 = vmatpush.msra.mxu0 %v1135
    %1289 = vmatpush.msra.mxu0 %v1131
    %1290 = vmatpush.msra.mxu0 %v1127
    %1291 = vmatpush.msra.mxu0 %v1123
    %1292 = vmatpush.msra.mxu0 %v1119
    %1293 = vmatpush.msra.mxu0 %v1115
    %1294 = vmatpush.msra.mxu0 %v1111
    %1295 = vmatpush.msra.mxu0 %v1107
    %1296 = vmatpush.msra.mxu0 %v1103
    %1297 = vmatpush.msra.mxu0 %v1099
    %1298 = vmatpush.msra.mxu0 %v1095
    %1299 = vmatpush.msra.mxu0 %v1091
    %1300 = vmatpush.msra.mxu0 %v1087
    %1301 = vmatpush.msra.mxu0 %v1083
    %1302 = vmatmul.f32.gmra.mxu0 %v1079
    %v1303 = vpop.f32.mrf.mxu0
    %v1304 = vadd.f32 0.0, %v1303
    %1305 = vdwg.mxu0
    %1306 = vmatpush.msra.mxu0 %v1207
    %1307 = vmatpush.msra.mxu0 %v1203
    %1308 = vmatpush.msra.mxu0 %v1199
    %1309 = vmatpush.msra.mxu0 %v1195
    %1310 = vmatpush.msra.mxu0 %v1191
    %1311 = vmatpush.msra.mxu0 %v1187
    %1312 = vmatpush.msra.mxu0 %v1183
    %1313 = vmatpush.msra.mxu0 %v1179
    %1314 = vmatpush.msra.mxu0 %v1175
    %1315 = vmatpush.msra.mxu0 %v1171
    %1316 = vmatpush.msra.mxu0 %v1167
    %1317 = vmatpush.msra.mxu0 %v1163
    %1318 = vmatpush.msra.mxu0 %v1159
    %1319 = vmatpush.msra.mxu0 %v1155
    %1320 = vmatpush.msra.mxu0 %v1151
    %1321 = vmatpush.msra.mxu0 %v1147
    %1322 = vmatmul.f32.gmra.mxu0 %v1080
    %v1323 = vpop.f32.mrf.mxu0
    %v1324 = vadd.f32 %v1304, %v1323
    %1325 = vdwg.mxu0
    %1326 = vmatpush.msra.mxu0 %v1271
    %1327 = vmatpush.msra.mxu0 %v1267
    %1328 = vmatpush.msra.mxu0 %v1263
    %1329 = vmatpush.msra.mxu0 %v1259
    %1330 = vmatpush.msra.mxu0 %v1255
    %1331 = vmatpush.msra.mxu0 %v1251
    %1332 = vmatpush.msra.mxu0 %v1247
    %1333 = vmatpush.msra.mxu0 %v1243
    %1334 = vmatpush.msra.mxu0 %v1239
    %1335 = vmatpush.msra.mxu0 %v1235
    %1336 = vmatpush.msra.mxu0 %v1231
    %1337 = vmatpush.msra.mxu0 %v1227
    %1338 = vmatpush.msra.mxu0 %v1223
    %1339 = vmatpush.msra.mxu0 %v1219
    %1340 = vmatpush.msra.mxu0 %v1215
    %1341 = vmatpush.msra.mxu0 %v1211
    %1342 = vmatmul.f32.gmra.mxu0 %v1081
    %v1343 = vpop.f32.mrf.mxu0
    %v1344 = vadd.f32 %v1324, %v1343
    %1345 = vdwg.mxu0
    %1346 = vmatpush.msra.mxu0 0.0
    %1347 = vmatpush.msra.mxu0 0.0
    %1348 = vmatpush.msra.mxu0 0.0
    %1349 = vmatpush.msra.mxu0 0.0
    %1350 = vmatpush.msra.mxu0 0.0
    %1351 = vmatpush.msra.mxu0 0.0
    %1352 = vmatpush.msra.mxu0 0.0
    %1353 = vmatpush.msra.mxu0 0.0
    %1354 = vmatpush.msra.mxu0 0.0
    %1355 = vmatpush.msra.mxu0 0.0
    %1356 = vmatpush.msra.mxu0 0.0
    %1357 = vmatpush.msra.mxu0 0.0
    %1358 = vmatpush.msra.mxu0 0.0
    %1359 = vmatpush.msra.mxu0 0.0
    %1360 = vmatpush.msra.mxu0 %v1279
    %1361 = vmatpush.msra.mxu0 %v1275
    %1362 = vmatmul.f32.gmra.mxu0 %v1284
    %v1363 = vpop.f32.mrf.mxu0
    %v1364 = vadd.f32 %v1344, %v1363
    %1365 = vdwg.mxu0
    %1366 = vmatpush.msra.mxu0 %v1144
    %1367 = vmatpush.msra.mxu0 %v1140
    %1368 = vmatpush.msra.mxu0 %v1136
    %1369 = vmatpush.msra.mxu0 %v1132
    %1370 = vmatpush.msra.mxu0 %v1128
    %1371 = vmatpush.msra.mxu0 %v1124
    %1372 = vmatpush.msra.mxu0 %v1120
    %1373 = vmatpush.msra.mxu0 %v1116
    %1374 = vmatpush.msra.mxu0 %v1112
    %1375 = vmatpush.msra.mxu0 %v1108
    %1376 = vmatpush.msra.mxu0 %v1104
    %1377 = vmatpush.msra.mxu0 %v1100
    %1378 = vmatpush.msra.mxu0 %v1096
    %1379 = vmatpush.msra.mxu0 %v1092
    %1380 = vmatpush.msra.mxu0 %v1088
    %1381 = vmatpush.msra.mxu0 %v1084
    %1382 = vmatmul.f32.gmra.mxu0 %v1079
    %v1383 = vpop.f32.mrf.mxu0
    %v1384 = vadd.f32 0.0, %v1383
    %1385 = vdwg.mxu0
    %1386 = vmatpush.msra.mxu0 %v1208
    %1387 = vmatpush.msra.mxu0 %v1204
    %1388 = vmatpush.msra.mxu0 %v1200
    %1389 = vmatpush.msra.mxu0 %v1196
    %1390 = vmatpush.msra.mxu0 %v1192
    %1391 = vmatpush.msra.mxu0 %v1188
    %1392 = vmatpush.msra.mxu0 %v1184
    %1393 = vmatpush.msra.mxu0 %v1180
    %1394 = vmatpush.msra.mxu0 %v1176
    %1395 = vmatpush.msra.mxu0 %v1172
    %1396 = vmatpush.msra.mxu0 %v1168
    %1397 = vmatpush.msra.mxu0 %v1164
    %1398 = vmatpush.msra.mxu0 %v1160
    %1399 = vmatpush.msra.mxu0 %v1156
    %1400 = vmatpush.msra.mxu0 %v1152
    %1401 = vmatpush.msra.mxu0 %v1148
    %1402 = vmatmul.f32.gmra.mxu0 %v1080
    %v1403 = vpop.f32.mrf.mxu0
    %v1404 = vadd.f32 %v1384, %v1403
    %1405 = vdwg.mxu0
    %1406 = vmatpush.msra.mxu0 %v1272
    %1407 = vmatpush.msra.mxu0 %v1268
    %1408 = vmatpush.msra.mxu0 %v1264
    %1409 = vmatpush.msra.mxu0 %v1260
    %1410 = vmatpush.msra.mxu0 %v1256
    %1411 = vmatpush.msra.mxu0 %v1252
    %1412 = vmatpush.msra.mxu0 %v1248
    %1413 = vmatpush.msra.mxu0 %v1244
    %1414 = vmatpush.msra.mxu0 %v1240
    %1415 = vmatpush.msra.mxu0 %v1236
    %1416 = vmatpush.msra.mxu0 %v1232
    %1417 = vmatpush.msra.mxu0 %v1228
    %1418 = vmatpush.msra.mxu0 %v1224
    %1419 = vmatpush.msra.mxu0 %v1220
    %1420 = vmatpush.msra.mxu0 %v1216
    %1421 = vmatpush.msra.mxu0 %v1212
    %1422 = vmatmul.f32.gmra.mxu0 %v1081
    %v1423 = vpop.f32.mrf.mxu0
    %v1424 = vadd.f32 %v1404, %v1423
    %1425 = vdwg.mxu0
    %1426 = vmatpush.msra.mxu0 0.0
    %1427 = vmatpush.msra.mxu0 0.0
    %1428 = vmatpush.msra.mxu0 0.0
    %1429 = vmatpush.msra.mxu0 0.0
    %1430 = vmatpush.msra.mxu0 0.0
    %1431 = vmatpush.msra.mxu0 0.0
    %1432 = vmatpush.msra.mxu0 0.0
    %1433 = vmatpush.msra.mxu0 0.0
    %1434 = vmatpush.msra.mxu0 0.0
    %1435 = vmatpush.msra.mxu0 0.0
    %1436 = vmatpush.msra.mxu0 0.0
    %1437 = vmatpush.msra.mxu0 0.0
    %1438 = vmatpush.msra.mxu0 0.0
    %1439 = vmatpush.msra.mxu0 0.0
    %1440 = vmatpush.msra.mxu0 %v1280
    %1441 = vmatpush.msra.mxu0 %v1276
    %1442 = vmatmul.f32.gmra.mxu0 %v1284
    %v1443 = vpop.f32.mrf.mxu0
    %v1444 = vadd.f32 %v1424, %v1443
    %1445 = vdwg.mxu0
    %1446 = vmatpush.msra.mxu0 %v1145
    %1447 = vmatpush.msra.mxu0 %v1141
    %1448 = vmatpush.msra.mxu0 %v1137
    %1449 = vmatpush.msra.mxu0 %v1133
    %1450 = vmatpush.msra.mxu0 %v1129
    %1451 = vmatpush.msra.mxu0 %v1125
    %1452 = vmatpush.msra.mxu0 %v1121
    %1453 = vmatpush.msra.mxu0 %v1117
    %1454 = vmatpush.msra.mxu0 %v1113
    %1455 = vmatpush.msra.mxu0 %v1109
    %1456 = vmatpush.msra.mxu0 %v1105
    %1457 = vmatpush.msra.mxu0 %v1101
    %1458 = vmatpush.msra.mxu0 %v1097
    %1459 = vmatpush.msra.mxu0 %v1093
    %1460 = vmatpush.msra.mxu0 %v1089
    %1461 = vmatpush.msra.mxu0 %v1085
    %1462 = vmatmul.f32.gmra.mxu0 %v1079
    %v1463 = vpop.f32.mrf.mxu0
    %v1464 = vadd.f32 0.0, %v1463
    %1465 = vdwg.mxu0
    %1466 = vmatpush.msra.mxu0 %v1209
    %1467 = vmatpush.msra.mxu0 %v1205
    %1468 = vmatpush.msra.mxu0 %v1201
    %1469 = vmatpush.msra.mxu0 %v1197
    %1470 = vmatpush.msra.mxu0 %v1193
    %1471 = vmatpush.msra.mxu0 %v1189
    %1472 = vmatpush.msra.mxu0 %v1185
    %1473 = vmatpush.msra.mxu0 %v1181
    %1474 = vmatpush.msra.mxu0 %v1177
    %1475 = vmatpush.msra.mxu0 %v1173
    %1476 = vmatpush.msra.mxu0 %v1169
    %1477 = vmatpush.msra.mxu0 %v1165
    %1478 = vmatpush.msra.mxu0 %v1161
    %1479 = vmatpush.msra.mxu0 %v1157
    %1480 = vmatpush.msra.mxu0 %v1153
    %1481 = vmatpush.msra.mxu0 %v1149
    %1482 = vmatmul.f32.gmra.mxu0 %v1080
    %v1483 = vpop.f32.mrf.mxu0
    %v1484 = vadd.f32 %v1464, %v1483
    %1485 = vdwg.mxu0
    %1486 = vmatpush.msra.mxu0 %v1273
    %1487 = vmatpush.msra.mxu0 %v1269
    %1488 = vmatpush.msra.mxu0 %v1265
    %1489 = vmatpush.msra.mxu0 %v1261
    %1490 = vmatpush.msra.mxu0 %v1257
    %1491 = vmatpush.msra.mxu0 %v1253
    %1492 = vmatpush.msra.mxu0 %v1249
    %1493 = vmatpush.msra.mxu0 %v1245
    %1494 = vmatpush.msra.mxu0 %v1241
    %1495 = vmatpush.msra.mxu0 %v1237
    %1496 = vmatpush.msra.mxu0 %v1233
    %1497 = vmatpush.msra.mxu0 %v1229
    %1498 = vmatpush.msra.mxu0 %v1225
    %1499 = vmatpush.msra.mxu0 %v1221
    %1500 = vmatpush.msra.mxu0 %v1217
    %1501 = vmatpush.msra.mxu0 %v1213
    %1502 = vmatmul.f32.gmra.mxu0 %v1081
    %v1503 = vpop.f32.mrf.mxu0
    %v1504 = vadd.f32 %v1484, %v1503
    %1505 = vdwg.mxu0
    %1506 = vmatpush.msra.mxu0 0.0
    %1507 = vmatpush.msra.mxu0 0.0
    %1508 = vmatpush.msra.mxu0 0.0
    %1509 = vmatpush.msra.mxu0 0.0
    %1510 = vmatpush.msra.mxu0 0.0
    %1511 = vmatpush.msra.mxu0 0.0
    %1512 = vmatpush.msra.mxu0 0.0
    %1513 = vmatpush.msra.mxu0 0.0
    %1514 = vmatpush.msra.mxu0 0.0
    %1515 = vmatpush.msra.mxu0 0.0
    %1516 = vmatpush.msra.mxu0 0.0
    %1517 = vmatpush.msra.mxu0 0.0
    %1518 = vmatpush.msra.mxu0 0.0
    %1519 = vmatpush.msra.mxu0 0.0
    %1520 = vmatpush.msra.mxu0 %v1281
    %1521 = vmatpush.msra.mxu0 %v1277
    %1522 = vmatmul.f32.gmra.mxu0 %v1284
    %v1523 = vpop.f32.mrf.mxu0
    %v1524 = vadd.f32 %v1504, %v1523
    %1525 = vdwg.mxu0
    %1526 = vmatpush.msra.mxu0 %v1146
    %1527 = vmatpush.msra.mxu0 %v1142
    %1528 = vmatpush.msra.mxu0 %v1138
    %1529 = vmatpush.msra.mxu0 %v1134
    %1530 = vmatpush.msra.mxu0 %v1130
    %1531 = vmatpush.msra.mxu0 %v1126
    %1532 = vmatpush.msra.mxu0 %v1122
    %1533 = vmatpush.msra.mxu0 %v1118
    %1534 = vmatpush.msra.mxu0 %v1114
    %1535 = vmatpush.msra.mxu0 %v1110
    %1536 = vmatpush.msra.mxu0 %v1106
    %1537 = vmatpush.msra.mxu0 %v1102
    %1538 = vmatpush.msra.mxu0 %v1098
    %1539 = vmatpush.msra.mxu0 %v1094
    %1540 = vmatpush.msra.mxu0 %v1090
    %1541 = vmatpush.msra.mxu0 %v1086
    %1542 = vmatmul.f32.gmra.mxu0 %v1079
    %v1543 = vpop.f32.mrf.mxu0
    %v1544 = vadd.f32 0.0, %v1543
    %1545 = vdwg.mxu0
    %1546 = vmatpush.msra.mxu0 %v1210
    %1547 = vmatpush.msra.mxu0 %v1206
    %1548 = vmatpush.msra.mxu0 %v1202
    %1549 = vmatpush.msra.mxu0 %v1198
    %1550 = vmatpush.msra.mxu0 %v1194
    %1551 = vmatpush.msra.mxu0 %v1190
    %1552 = vmatpush.msra.mxu0 %v1186
    %1553 = vmatpush.msra.mxu0 %v1182
    %1554 = vmatpush.msra.mxu0 %v1178
    %1555 = vmatpush.msra.mxu0 %v1174
    %1556 = vmatpush.msra.mxu0 %v1170
    %1557 = vmatpush.msra.mxu0 %v1166
    %1558 = vmatpush.msra.mxu0 %v1162
    %1559 = vmatpush.msra.mxu0 %v1158
    %1560 = vmatpush.msra.mxu0 %v1154
    %1561 = vmatpush.msra.mxu0 %v1150
    %1562 = vmatmul.f32.gmra.mxu0 %v1080
    %v1563 = vpop.f32.mrf.mxu0
    %v1564 = vadd.f32 %v1544, %v1563
    %1565 = vdwg.mxu0
    %1566 = vmatpush.msra.mxu0 %v1274
    %1567 = vmatpush.msra.mxu0 %v1270
    %1568 = vmatpush.msra.mxu0 %v1266
    %1569 = vmatpush.msra.mxu0 %v1262
    %1570 = vmatpush.msra.mxu0 %v1258
    %1571 = vmatpush.msra.mxu0 %v1254
    %1572 = vmatpush.msra.mxu0 %v1250
    %1573 = vmatpush.msra.mxu0 %v1246
    %1574 = vmatpush.msra.mxu0 %v1242
    %1575 = vmatpush.msra.mxu0 %v1238
    %1576 = vmatpush.msra.mxu0 %v1234
    %1577 = vmatpush.msra.mxu0 %v1230
    %1578 = vmatpush.msra.mxu0 %v1226
    %1579 = vmatpush.msra.mxu0 %v1222
    %1580 = vmatpush.msra.mxu0 %v1218
    %1581 = vmatpush.msra.mxu0 %v1214
    %1582 = vmatmul.f32.gmra.mxu0 %v1081
    %v1583 = vpop.f32.mrf.mxu0
    %v1584 = vadd.f32 %v1564, %v1583
    %1585 = vdwg.mxu0
    %1586 = vmatpush.msra.mxu0 0.0
    %1587 = vmatpush.msra.mxu0 0.0
    %1588 = vmatpush.msra.mxu0 0.0
    %1589 = vmatpush.msra.mxu0 0.0
    %1590 = vmatpush.msra.mxu0 0.0
    %1591 = vmatpush.msra.mxu0 0.0
    %1592 = vmatpush.msra.mxu0 0.0
    %1593 = vmatpush.msra.mxu0 0.0
    %1594 = vmatpush.msra.mxu0 0.0
    %1595 = vmatpush.msra.mxu0 0.0
    %1596 = vmatpush.msra.mxu0 0.0
    %1597 = vmatpush.msra.mxu0 0.0
    %1598 = vmatpush.msra.mxu0 0.0
    %1599 = vmatpush.msra.mxu0 0.0
    %1600 = vmatpush.msra.mxu0 %v1282
    %1601 = vmatpush.msra.mxu0 %v1278
    %1602 = vmatmul.f32.gmra.mxu0 %v1284
    %v1603 = vpop.f32.mrf.mxu0
    %v1604 = vadd.f32 %v1584, %v1603
    %1605 = vdwg.mxu0
    %v1606 = vld [vmem:[#allocation15] sm:$0xff]
    %v1607 = vld [vmem:[#allocation15 + $0x8] sm:$0xff]
    %v1608 = vld [vmem:[#allocation15 + $0x10] sm:$0xff]
    %v1609 = vld [vmem:[#allocation15 + $0x18] sm:$0xff]
    %v1610 = vld [vmem:[#allocation15 + $0x20] sm:$0xff]
    %v1611 = vld [vmem:[#allocation15 + $0x28] sm:$0xff]
    %v1612 = vld [vmem:[#allocation15 + $0x30] sm:$0xff]
    %v1613 = vld [vmem:[#allocation15 + $0x38] sm:$0xff]
    %v1614 = vld [vmem:[#allocation15 + $0x40] sm:$0xff]
    %v1615 = vld [vmem:[#allocation15 + $0x48] sm:$0xff]
    %v1616 = vld [vmem:[#allocation15 + $0x50] sm:$0xff]
    %v1617 = vld [vmem:[#allocation15 + $0x58] sm:$0xff]
    %v1618 = vld [vmem:[#allocation15 + $0x60] sm:$0xff]
    %v1619 = vld [vmem:[#allocation15 + $0x68] sm:$0xff]
    %v1620 = vld [vmem:[#allocation15 + $0x70] sm:$0xff]
    %v1621 = vld [vmem:[#allocation15 + $0x78] sm:$0xff]
    %v1622 = vld [vmem:[#allocation15 + $0x80] sm:$0xff]
    %v1623 = vld [vmem:[#allocation15 + $0x88] sm:$0xff]
    %v1624 = vld [vmem:[#allocation15 + $0x90] sm:$0xff]
    %v1625 = vld [vmem:[#allocation15 + $0x98] sm:$0xff]
    %v1626 = vld [vmem:[#allocation15 + $0xa0] sm:$0xff]
    %v1627 = vld [vmem:[#allocation15 + $0xa8] sm:$0xff]
    %v1628 = vld [vmem:[#allocation15 + $0xb0] sm:$0xff]
    %v1629 = vld [vmem:[#allocation15 + $0xb8] sm:$0xff]
    %v1630 = vld [vmem:[#allocation15 + $0xc0] sm:$0xff]
    %v1631 = vld [vmem:[#allocation15 + $0xc8] sm:$0xff]
    %v1632 = vld [vmem:[#allocation15 + $0xd0] sm:$0xff]
    %v1633 = vld [vmem:[#allocation15 + $0xd8] sm:$0xff]
    %v1634 = vld [vmem:[#allocation15 + $0xe0] sm:$0xff]
    %v1635 = vld [vmem:[#allocation15 + $0xe8] sm:$0xff]
    %v1636 = vld [vmem:[#allocation15 + $0xf0] sm:$0xff]
    %v1637 = vld [vmem:[#allocation15 + $0xf8] sm:$0xff]
    %v1638 = vld [vmem:[#allocation15 + $0x100] sm:$0xff]
    %v1639 = vld [vmem:[#allocation15 + $0x108] sm:$0xff]
    %v1640 = vld [vmem:[#allocation15 + $0x110] sm:$0xff]
    %v1641 = vld [vmem:[#allocation15 + $0x118] sm:$0xff]
    %v1642 = vld [vmem:[#allocation15 + $0x120] sm:$0xff]
    %v1643 = vld [vmem:[#allocation15 + $0x128] sm:$0xff]
    %v1644 = vld [vmem:[#allocation15 + $0x130] sm:$0xff]
    %v1645 = vld [vmem:[#allocation15 + $0x138] sm:$0xff]
    %v1646 = vld [vmem:[#allocation15 + $0x140] sm:$0xff]
    %v1647 = vld [vmem:[#allocation15 + $0x148] sm:$0xff]
    %v1648 = vld [vmem:[#allocation15 + $0x150] sm:$0xff]
    %v1649 = vld [vmem:[#allocation15 + $0x158] sm:$0xff]
    %v1650 = vld [vmem:[#allocation15 + $0x160] sm:$0xff]
    %v1651 = vld [vmem:[#allocation15 + $0x168] sm:$0xff]
    %v1652 = vld [vmem:[#allocation15 + $0x170] sm:$0xff]
    %v1653 = vld [vmem:[#allocation15 + $0x178] sm:$0xff]
    %v1654 = vld [vmem:[#allocation15 + $0x180] sm:$0xff]
    %v1655 = vld [vmem:[#allocation15 + $0x188] sm:$0xff]
    %v1656 = vld [vmem:[#allocation15 + $0x190] sm:$0xff]
    %v1657 = vld [vmem:[#allocation15 + $0x198] sm:$0xff]
    %v1658 = vld [vmem:[#allocation15 + $0x1a0] sm:$0xff]
    %v1659 = vld [vmem:[#allocation15 + $0x1a8] sm:$0xff]
    %v1660 = vld [vmem:[#allocation15 + $0x1b0] sm:$0xff]
    %v1661 = vld [vmem:[#allocation15 + $0x1b8] sm:$0xff]
    %v1662 = vld [vmem:[#allocation15 + $0x1c0] sm:$0xff]
    %v1663 = vld [vmem:[#allocation15 + $0x1c8] sm:$0xff]
    %v1664 = vld [vmem:[#allocation15 + $0x1d0] sm:$0xff]
    %v1665 = vld [vmem:[#allocation15 + $0x1d8] sm:$0xff]
    %v1666 = vld [vmem:[#allocation15 + $0x1e0] sm:$0xff]
    %v1667 = vld [vmem:[#allocation15 + $0x1e8] sm:$0xff]
    %v1668 = vld [vmem:[#allocation15 + $0x1f0] sm:$0xff]
    %v1669 = vld [vmem:[#allocation15 + $0x1f8] sm:$0xff]
    %1670 = vmatpush.msra.mxu0 %v1621
    %1671 = vmatpush.msra.mxu0 %v1620
    %1672 = vmatpush.msra.mxu0 %v1619
    %1673 = vmatpush.msra.mxu0 %v1618
    %1674 = vmatpush.msra.mxu0 %v1617
    %1675 = vmatpush.msra.mxu0 %v1616
    %1676 = vmatpush.msra.mxu0 %v1615
    %1677 = vmatpush.msra.mxu0 %v1614
    %1678 = vmatpush.msra.mxu0 %v1613
    %1679 = vmatpush.msra.mxu0 %v1612
    %1680 = vmatpush.msra.mxu0 %v1611
    %1681 = vmatpush.msra.mxu0 %v1610
    %1682 = vmatpush.msra.mxu0 %v1609
    %1683 = vmatpush.msra.mxu0 %v1608
    %1684 = vmatpush.msra.mxu0 %v1607
    %1685 = vmatpush.msra.mxu0 %v1606
    %1686 = vmatmul.f32.gmra.mxu0 %v1364
    %v1687 = vpop.f32.mrf.mxu0
    %v1688 = vadd.f32 0.0, %v1687
    %1689 = vdwg.mxu0
    %1690 = vmatpush.msra.mxu0 %v1637
    %1691 = vmatpush.msra.mxu0 %v1636
    %1692 = vmatpush.msra.mxu0 %v1635
    %1693 = vmatpush.msra.mxu0 %v1634
    %1694 = vmatpush.msra.mxu0 %v1633
    %1695 = vmatpush.msra.mxu0 %v1632
    %1696 = vmatpush.msra.mxu0 %v1631
    %1697 = vmatpush.msra.mxu0 %v1630
    %1698 = vmatpush.msra.mxu0 %v1629
    %1699 = vmatpush.msra.mxu0 %v1628
    %1700 = vmatpush.msra.mxu0 %v1627
    %1701 = vmatpush.msra.mxu0 %v1626
    %1702 = vmatpush.msra.mxu0 %v1625
    %1703 = vmatpush.msra.mxu0 %v1624
    %1704 = vmatpush.msra.mxu0 %v1623
    %1705 = vmatpush.msra.mxu0 %v1622
    %1706 = vmatmul.f32.gmra.mxu0 %v1444
    %v1707 = vpop.f32.mrf.mxu0
    %v1708 = vadd.f32 %v1688, %v1707
    %1709 = vdwg.mxu0
    %1710 = vmatpush.msra.mxu0 %v1653
    %1711 = vmatpush.msra.mxu0 %v1652
    %1712 = vmatpush.msra.mxu0 %v1651
    %1713 = vmatpush.msra.mxu0 %v1650
    %1714 = vmatpush.msra.mxu0 %v1649
    %1715 = vmatpush.msra.mxu0 %v1648
    %1716 = vmatpush.msra.mxu0 %v1647
    %1717 = vmatpush.msra.mxu0 %v1646
    %1718 = vmatpush.msra.mxu0 %v1645
    %1719 = vmatpush.msra.mxu0 %v1644
    %1720 = vmatpush.msra.mxu0 %v1643
    %1721 = vmatpush.msra.mxu0 %v1642
    %1722 = vmatpush.msra.mxu0 %v1641
    %1723 = vmatpush.msra.mxu0 %v1640
    %1724 = vmatpush.msra.mxu0 %v1639
    %1725 = vmatpush.msra.mxu0 %v1638
    %1726 = vmatmul.f32.gmra.mxu0 %v1524
    %v1727 = vpop.f32.mrf.mxu0
    %v1728 = vadd.f32 %v1708, %v1727
    %1729 = vdwg.mxu0
    %1730 = vmatpush.msra.mxu0 %v1669
    %1731 = vmatpush.msra.mxu0 %v1668
    %1732 = vmatpush.msra.mxu0 %v1667
    %1733 = vmatpush.msra.mxu0 %v1666
    %1734 = vmatpush.msra.mxu0 %v1665
    %1735 = vmatpush.msra.mxu0 %v1664
    %1736 = vmatpush.msra.mxu0 %v1663
    %1737 = vmatpush.msra.mxu0 %v1662
    %1738 = vmatpush.msra.mxu0 %v1661
    %1739 = vmatpush.msra.mxu0 %v1660
    %1740 = vmatpush.msra.mxu0 %v1659
    %1741 = vmatpush.msra.mxu0 %v1658
    %1742 = vmatpush.msra.mxu0 %v1657
    %1743 = vmatpush.msra.mxu0 %v1656
    %1744 = vmatpush.msra.mxu0 %v1655
    %1745 = vmatpush.msra.mxu0 %v1654
    %1746 = vmatmul.f32.gmra.mxu0 %v1604
    %v1747 = vpop.f32.mrf.mxu0
    %v1748 = vadd.f32 %v1728, %v1747
    %1749 = vdwg.mxu0
    %v1750 = vmul.f32 %v1364, %v1364
    %v1751 = vmul.f32 %v1444, %v1444
    %v1752 = vmul.f32 %v1524, %v1524
    %v1753 = vmul.f32 %v1604, %v1604
    %1754 = vmatpush.msra.mxu0 %v1621
    %1755 = vmatpush.msra.mxu0 %v1620
    %1756 = vmatpush.msra.mxu0 %v1619
    %1757 = vmatpush.msra.mxu0 %v1618
    %1758 = vmatpush.msra.mxu0 %v1617
    %1759 = vmatpush.msra.mxu0 %v1616
    %1760 = vmatpush.msra.mxu0 %v1615
    %1761 = vmatpush.msra.mxu0 %v1614
    %1762 = vmatpush.msra.mxu0 %v1613
    %1763 = vmatpush.msra.mxu0 %v1612
    %1764 = vmatpush.msra.mxu0 %v1611
    %1765 = vmatpush.msra.mxu0 %v1610
    %1766 = vmatpush.msra.mxu0 %v1609
    %1767 = vmatpush.msra.mxu0 %v1608
    %1768 = vmatpush.msra.mxu0 %v1607
    %1769 = vmatpush.msra.mxu0 %v1606
    %1770 = vmatmul.f32.gmra.mxu0 %v1750
    %v1771 = vpop.f32.mrf.mxu0
    %v1772 = vadd.f32 0.0, %v1771
    %1773 = vdwg.mxu0
    %1774 = vmatpush.msra.mxu0 %v1637
    %1775 = vmatpush.msra.mxu0 %v1636
    %1776 = vmatpush.msra.mxu0 %v1635
    %1777 = vmatpush.msra.mxu0 %v1634
    %1778 = vmatpush.msra.mxu0 %v1633
    %1779 = vmatpush.msra.mxu0 %v1632
    %1780 = vmatpush.msra.mxu0 %v1631
    %1781 = vmatpush.msra.mxu0 %v1630
    %1782 = vmatpush.msra.mxu0 %v1629
    %1783 = vmatpush.msra.mxu0 %v1628
    %1784 = vmatpush.msra.mxu0 %v1627
    %1785 = vmatpush.msra.mxu0 %v1626
    %1786 = vmatpush.msra.mxu0 %v1625
    %1787 = vmatpush.msra.mxu0 %v1624
    %1788 = vmatpush.msra.mxu0 %v1623
    %1789 = vmatpush.msra.mxu0 %v1622
    %1790 = vmatmul.f32.gmra.mxu0 %v1751
    %v1791 = vpop.f32.mrf.mxu0
    %v1792 = vadd.f32 %v1772, %v1791
    %1793 = vdwg.mxu0
    %1794 = vmatpush.msra.mxu0 %v1653
    %1795 = vmatpush.msra.mxu0 %v1652
    %1796 = vmatpush.msra.mxu0 %v1651
    %1797 = vmatpush.msra.mxu0 %v1650
    %1798 = vmatpush.msra.mxu0 %v1649
    %1799 = vmatpush.msra.mxu0 %v1648
    %1800 = vmatpush.msra.mxu0 %v1647
    %1801 = vmatpush.msra.mxu0 %v1646
    %1802 = vmatpush.msra.mxu0 %v1645
    %1803 = vmatpush.msra.mxu0 %v1644
    %1804 = vmatpush.msra.mxu0 %v1643
    %1805 = vmatpush.msra.mxu0 %v1642
    %1806 = vmatpush.msra.mxu0 %v1641
    %1807 = vmatpush.msra.mxu0 %v1640
    %1808 = vmatpush.msra.mxu0 %v1639
    %1809 = vmatpush.msra.mxu0 %v1638
    %1810 = vmatmul.f32.gmra.mxu0 %v1752
    %v1811 = vpop.f32.mrf.mxu0
    %v1812 = vadd.f32 %v1792, %v1811
    %1813 = vdwg.mxu0
    %1814 = vmatpush.msra.mxu0 %v1669
    %1815 = vmatpush.msra.mxu0 %v1668
    %1816 = vmatpush.msra.mxu0 %v1667
    %1817 = vmatpush.msra.mxu0 %v1666
    %1818 = vmatpush.msra.mxu0 %v1665
    %1819 = vmatpush.msra.mxu0 %v1664
    %1820 = vmatpush.msra.mxu0 %v1663
    %1821 = vmatpush.msra.mxu0 %v1662
    %1822 = vmatpush.msra.mxu0 %v1661
    %1823 = vmatpush.msra.mxu0 %v1660
    %1824 = vmatpush.msra.mxu0 %v1659
    %1825 = vmatpush.msra.mxu0 %v1658
    %1826 = vmatpush.msra.mxu0 %v1657
    %1827 = vmatpush.msra.mxu0 %v1656
    %1828 = vmatpush.msra.mxu0 %v1655
    %1829 = vmatpush.msra.mxu0 %v1654
    %1830 = vmatmul.f32.gmra.mxu0 %v1753
    %v1831 = vpop.f32.mrf.mxu0
    %v1832 = vadd.f32 %v1812, %v1831
    %1833 = vdwg.mxu0
    %vm1834 = vcmask 261120
    %v1835 = vsel %vm1834, %v1748, 0.0
    %v1836 = vrot.slane %v1835, 4
    %v1837 = vadd.f32 %v1835, %v1836
    %v1838 = vrot.slane %v1837, 2
    %v1839 = vadd.f32 %v1837, %v1838
    %v1840 = vrot.slane %v1839, 1
    %v1841 = vadd.f32 %v1839, %v1840
    %v1842 = vmul.f32 %v1841, 0.0078125
    %v1843 = vsel %vm1834, %v1832, 0.0
    %v1844 = vrot.slane %v1843, 4
    %v1845 = vadd.f32 %v1843, %v1844
    %v1846 = vrot.slane %v1845, 2
    %v1847 = vadd.f32 %v1845, %v1846
    %v1848 = vrot.slane %v1847, 1
    %v1849 = vadd.f32 %v1847, %v1848
    %v1850 = vmul.f32 %v1849, 0.0078125
    %v1851 = vmul.f32 %v1842, %v1842
    %v1852 = vsub.f32 %v1850, %v1851
    %v1853 = vld [vmem:[#allocation12] sm:$0x1]
    %v1854 = vadd.f32 %v1852, 1e-05
    %v1855 = vrsqrt.pop %v1854
    %v1856 = vmul.f32 %v1855, %v1854
    %v1857 = vmul.f32 %v1856, %v1855
    %v1858 = vmul.f32 0.5, %v1857
    %v1859 = vsub.f32 1.5, %v1858
    %v1860 = vmul.f32 %v1855, %v1859
    %vm1861 = vweird.f32 %v1854
    %vm1862 = vweird.f32 %v1855
    %vm1863 = vmor %vm1861, %vm1862
    %v1864 = vsel %vm1863, %v1855, %v1860
    %v1865 = vmul.f32 %v1853, %v1864
    %v1866 = vld [vmem:[#allocation13] sm:$0x1]
    %v1867 = vmul.f32 %v1842, %v1865
    %v1868 = vsub.f32 %v1866, %v1867
    %v1869 = vld [vmem:[#allocation16] sm:$0xff]
    %v1870 = vld [vmem:[#allocation16 + $0x8] sm:$0xff]
    %v1871 = vld [vmem:[#allocation16 + $0x10] sm:$0xff]
    %v1872 = vld [vmem:[#allocation16 + $0x18] sm:$0xff]
    %v1873 = vld [vmem:[#allocation16 + $0x20] sm:$0xff]
    %v1874 = vld [vmem:[#allocation16 + $0x28] sm:$0xff]
    %v1875 = vld [vmem:[#allocation16 + $0x30] sm:$0xff]
    %v1876 = vld [vmem:[#allocation16 + $0x38] sm:$0xff]
    %v1877 = vld [vmem:[#allocation16 + $0x40] sm:$0xff]
    %v1878 = vld [vmem:[#allocation16 + $0x48] sm:$0xff]
    %v1879 = vld [vmem:[#allocation16 + $0x50] sm:$0xff]
    %v1880 = vld [vmem:[#allocation16 + $0x58] sm:$0xff]
    %v1881 = vld [vmem:[#allocation16 + $0x60] sm:$0xff]
    %v1882 = vld [vmem:[#allocation16 + $0x68] sm:$0xff]
    %v1883 = vld [vmem:[#allocation16 + $0x70] sm:$0xff]
    %v1884 = vld [vmem:[#allocation16 + $0x78] sm:$0xff]
    %v1886 = vsel %vm1834, %v1865, 0
    %1888 = vmatpush.msra.mxu0 0.0
    %1889 = vmatpush.msra.mxu0 0.0
    %1890 = vmatpush.msra.mxu0 0.0
    %1891 = vmatpush.msra.mxu0 0.0
    %1892 = vmatpush.msra.mxu0 0.0
    %1893 = vmatpush.msra.mxu0 0.0
    %1894 = vmatpush.msra.mxu0 0.0
    %1895 = vmatpush.msra.mxu0 0.0
    %1896 = vmatpush.msra.mxu0 0.0
    %1897 = vmatpush.msra.mxu0 0.0
    %1898 = vmatpush.msra.mxu0 0.0
    %1899 = vmatpush.msra.mxu0 0.0
    %1900 = vmatpush.msra.mxu0 %v1881
    %1901 = vmatpush.msra.mxu0 %v1877
    %1902 = vmatpush.msra.mxu0 %v1873
    %1903 = vmatpush.msra.mxu0 %v1869
    %1904 = vmatmul.f32.gmra.mxu0 %v1886
    %v1905 = vpop.f32.mrf.mxu0
    %v1906 = vadd.f32 0.0, %v1905
    %1907 = vdwg.mxu0
    %1908 = vmatpush.msra.mxu0 0.0
    %1909 = vmatpush.msra.mxu0 0.0
    %1910 = vmatpush.msra.mxu0 0.0
    %1911 = vmatpush.msra.mxu0 0.0
    %1912 = vmatpush.msra.mxu0 0.0
    %1913 = vmatpush.msra.mxu0 0.0
    %1914 = vmatpush.msra.mxu0 0.0
    %1915 = vmatpush.msra.mxu0 0.0
    %1916 = vmatpush.msra.mxu0 0.0
    %1917 = vmatpush.msra.mxu0 0.0
    %1918 = vmatpush.msra.mxu0 0.0
    %1919 = vmatpush.msra.mxu0 0.0
    %1920 = vmatpush.msra.mxu0 %v1882
    %1921 = vmatpush.msra.mxu0 %v1878
    %1922 = vmatpush.msra.mxu0 %v1874
    %1923 = vmatpush.msra.mxu0 %v1870
    %1924 = vmatmul.f32.gmra.mxu0 %v1886
    %v1925 = vpop.f32.mrf.mxu0
    %v1926 = vadd.f32 0.0, %v1925
    %1927 = vdwg.mxu0
    %1928 = vmatpush.msra.mxu0 0.0
    %1929 = vmatpush.msra.mxu0 0.0
    %1930 = vmatpush.msra.mxu0 0.0
    %1931 = vmatpush.msra.mxu0 0.0
    %1932 = vmatpush.msra.mxu0 0.0
    %1933 = vmatpush.msra.mxu0 0.0
    %1934 = vmatpush.msra.mxu0 0.0
    %1935 = vmatpush.msra.mxu0 0.0
    %1936 = vmatpush.msra.mxu0 0.0
    %1937 = vmatpush.msra.mxu0 0.0
    %1938 = vmatpush.msra.mxu0 0.0
    %1939 = vmatpush.msra.mxu0 0.0
    %1940 = vmatpush.msra.mxu0 %v1883
    %1941 = vmatpush.msra.mxu0 %v1879
    %1942 = vmatpush.msra.mxu0 %v1875
    %1943 = vmatpush.msra.mxu0 %v1871
    %1944 = vmatmul.f32.gmra.mxu0 %v1886
    %v1945 = vpop.f32.mrf.mxu0
    %v1946 = vadd.f32 0.0, %v1945
    %1947 = vdwg.mxu0
    %1948 = vmatpush.msra.mxu0 0.0
    %1949 = vmatpush.msra.mxu0 0.0
    %1950 = vmatpush.msra.mxu0 0.0
    %1951 = vmatpush.msra.mxu0 0.0
    %1952 = vmatpush.msra.mxu0 0.0
    %1953 = vmatpush.msra.mxu0 0.0
    %1954 = vmatpush.msra.mxu0 0.0
    %1955 = vmatpush.msra.mxu0 0.0
    %1956 = vmatpush.msra.mxu0 0.0
    %1957 = vmatpush.msra.mxu0 0.0
    %1958 = vmatpush.msra.mxu0 0.0
    %1959 = vmatpush.msra.mxu0 0.0
    %1960 = vmatpush.msra.mxu0 %v1884
    %1961 = vmatpush.msra.mxu0 %v1880
    %1962 = vmatpush.msra.mxu0 %v1876
    %1963 = vmatpush.msra.mxu0 %v1872
    %1964 = vmatmul.f32.gmra.mxu0 %v1886
    %v1965 = vpop.f32.mrf.mxu0
    %v1966 = vadd.f32 0.0, %v1965
    %1967 = vdwg.mxu0
    %v1969 = vsel %vm1834, %v1868, 0
    %1971 = vmatpush.msra.mxu0 0.0
    %1972 = vmatpush.msra.mxu0 0.0
    %1973 = vmatpush.msra.mxu0 0.0
    %1974 = vmatpush.msra.mxu0 0.0
    %1975 = vmatpush.msra.mxu0 0.0
    %1976 = vmatpush.msra.mxu0 0.0
    %1977 = vmatpush.msra.mxu0 0.0
    %1978 = vmatpush.msra.mxu0 0.0
    %1979 = vmatpush.msra.mxu0 0.0
    %1980 = vmatpush.msra.mxu0 0.0
    %1981 = vmatpush.msra.mxu0 0.0
    %1982 = vmatpush.msra.mxu0 0.0
    %1983 = vmatpush.msra.mxu0 %v1881
    %1984 = vmatpush.msra.mxu0 %v1877
    %1985 = vmatpush.msra.mxu0 %v1873
    %1986 = vmatpush.msra.mxu0 %v1869
    %1987 = vmatmul.f32.gmra.mxu0 %v1969
    %v1988 = vpop.f32.mrf.mxu0
    %v1989 = vadd.f32 0.0, %v1988
    %1990 = vdwg.mxu0
    %1991 = vmatpush.msra.mxu0 0.0
    %1992 = vmatpush.msra.mxu0 0.0
    %1993 = vmatpush.msra.mxu0 0.0
    %1994 = vmatpush.msra.mxu0 0.0
    %1995 = vmatpush.msra.mxu0 0.0
    %1996 = vmatpush.msra.mxu0 0.0
    %1997 = vmatpush.msra.mxu0 0.0
    %1998 = vmatpush.msra.mxu0 0.0
    %1999 = vmatpush.msra.mxu0 0.0
    %2000 = vmatpush.msra.mxu0 0.0
    %2001 = vmatpush.msra.mxu0 0.0
    %2002 = vmatpush.msra.mxu0 0.0
    %2003 = vmatpush.msra.mxu0 %v1882
    %2004 = vmatpush.msra.mxu0 %v1878
    %2005 = vmatpush.msra.mxu0 %v1874
    %2006 = vmatpush.msra.mxu0 %v1870
    %2007 = vmatmul.f32.gmra.mxu0 %v1969
    %v2008 = vpop.f32.mrf.mxu0
    %v2009 = vadd.f32 0.0, %v2008
    %2010 = vdwg.mxu0
    %2011 = vmatpush.msra.mxu0 0.0
    %2012 = vmatpush.msra.mxu0 0.0
    %2013 = vmatpush.msra.mxu0 0.0
    %2014 = vmatpush.msra.mxu0 0.0
    %2015 = vmatpush.msra.mxu0 0.0
    %2016 = vmatpush.msra.mxu0 0.0
    %2017 = vmatpush.msra.mxu0 0.0
    %2018 = vmatpush.msra.mxu0 0.0
    %2019 = vmatpush.msra.mxu0 0.0
    %2020 = vmatpush.msra.mxu0 0.0
    %2021 = vmatpush.msra.mxu0 0.0
    %2022 = vmatpush.msra.mxu0 0.0
    %2023 = vmatpush.msra.mxu0 %v1883
    %2024 = vmatpush.msra.mxu0 %v1879
    %2025 = vmatpush.msra.mxu0 %v1875
    %2026 = vmatpush.msra.mxu0 %v1871
    %2027 = vmatmul.f32.gmra.mxu0 %v1969
    %v2028 = vpop.f32.mrf.mxu0
    %v2029 = vadd.f32 0.0, %v2028
    %2030 = vdwg.mxu0
    %2031 = vmatpush.msra.mxu0 0.0
    %2032 = vmatpush.msra.mxu0 0.0
    %2033 = vmatpush.msra.mxu0 0.0
    %2034 = vmatpush.msra.mxu0 0.0
    %2035 = vmatpush.msra.mxu0 0.0
    %2036 = vmatpush.msra.mxu0 0.0
    %2037 = vmatpush.msra.mxu0 0.0
    %2038 = vmatpush.msra.mxu0 0.0
    %2039 = vmatpush.msra.mxu0 0.0
    %2040 = vmatpush.msra.mxu0 0.0
    %2041 = vmatpush.msra.mxu0 0.0
    %2042 = vmatpush.msra.mxu0 0.0
    %2043 = vmatpush.msra.mxu0 %v1884
    %2044 = vmatpush.msra.mxu0 %v1880
    %2045 = vmatpush.msra.mxu0 %v1876
    %2046 = vmatpush.msra.mxu0 %v1872
    %2047 = vmatmul.f32.gmra.mxu0 %v1969
    %v2048 = vpop.f32.mrf.mxu0
    %v2049 = vadd.f32 0.0, %v2048
    %2050 = vdwg.mxu0
    %v2051 = vperm.slane %v1906, 0
    %v2052 = vperm.slane %v1926, 0
    %v2053 = vperm.slane %v1946, 0
    %v2054 = vperm.slane %v1966, 0
    %v2055 = vmul.f32 %v1364, %v2051
    %v2056 = vmul.f32 %v1444, %v2052
    %v2057 = vmul.f32 %v1524, %v2053
    %v2058 = vmul.f32 %v1604, %v2054
    %v2059 = vperm.slane %v1989, 0
    %v2060 = vperm.slane %v2009, 0
    %v2061 = vperm.slane %v2029, 0
    %v2062 = vperm.slane %v2049, 0
    %v2063 = vadd.f32 %v2055, %v2059
    %v2064 = vadd.f32 %v2056, %v2060
    %v2065 = vadd.f32 %v2057, %v2061
    %v2066 = vadd.f32 %v2058, %v2062
    %v2067 = vmax.f32 %v2063, 0.0
    %v2068 = vmax.f32 %v2064, 0.0
    %v2069 = vmax.f32 %v2065, 0.0
    %v2070 = vmax.f32 %v2066, 0.0
    %v2071 = vld [vmem:[#allocation18] sm:$0xff]
    %v2072 = vld [vmem:[#allocation18 + $0x8] sm:$0xff]
    %v2073 = vld [vmem:[#allocation18 + $0x10] sm:$0xff]
    %v2074 = vld [vmem:[#allocation18 + $0x18] sm:$0xff]
    %v2075 = vld [vmem:[#allocation18 + $0x20] sm:$0xff]
    %v2076 = vld [vmem:[#allocation18 + $0x28] sm:$0xff]
    %v2077 = vld [vmem:[#allocation18 + $0x30] sm:$0xff]
    %v2078 = vld [vmem:[#allocation18 + $0x38] sm:$0xff]
    %v2079 = vld [vmem:[#allocation18 + $0x40] sm:$0xff]
    %v2080 = vld [vmem:[#allocation18 + $0x48] sm:$0xff]
    %v2081 = vld [vmem:[#allocation18 + $0x50] sm:$0xff]
    %v2082 = vld [vmem:[#allocation18 + $0x58] sm:$0xff]
    %v2083 = vld [vmem:[#allocation18 + $0x60] sm:$0xff]
    %v2084 = vld [vmem:[#allocation18 + $0x68] sm:$0xff]
    %v2085 = vld [vmem:[#allocation18 + $0x70] sm:$0xff]
    %v2086 = vld [vmem:[#allocation18 + $0x78] sm:$0xff]
    %v2087 = vld [vmem:[#allocation18 + $0x80] sm:$0xff]
    %v2088 = vld [vmem:[#allocation18 + $0x88] sm:$0xff]
    %v2089 = vld [vmem:[#allocation18 + $0x90] sm:$0xff]
    %v2090 = vld [vmem:[#allocation18 + $0x98] sm:$0xff]
    %v2091 = vld [vmem:[#allocation18 + $0xa0] sm:$0xff]
    %v2092 = vld [vmem:[#allocation18 + $0xa8] sm:$0xff]
    %v2093 = vld [vmem:[#allocation18 + $0xb0] sm:$0xff]
    %v2094 = vld [vmem:[#allocation18 + $0xb8] sm:$0xff]
    %v2095 = vld [vmem:[#allocation18 + $0xc0] sm:$0xff]
    %v2096 = vld [vmem:[#allocation18 + $0xc8] sm:$0xff]
    %v2097 = vld [vmem:[#allocation18 + $0xd0] sm:$0xff]
    %v2098 = vld [vmem:[#allocation18 + $0xd8] sm:$0xff]
    %v2099 = vld [vmem:[#allocation18 + $0xe0] sm:$0xff]
    %v2100 = vld [vmem:[#allocation18 + $0xe8] sm:$0xff]
    %v2101 = vld [vmem:[#allocation18 + $0xf0] sm:$0xff]
    %v2102 = vld [vmem:[#allocation18 + $0xf8] sm:$0xff]
    %v2103 = vld [vmem:[#allocation18 + $0x100] sm:$0xff]
    %v2104 = vld [vmem:[#allocation18 + $0x108] sm:$0xff]
    %v2105 = vld [vmem:[#allocation18 + $0x110] sm:$0xff]
    %v2106 = vld [vmem:[#allocation18 + $0x118] sm:$0xff]
    %v2107 = vld [vmem:[#allocation18 + $0x120] sm:$0xff]
    %v2108 = vld [vmem:[#allocation18 + $0x128] sm:$0xff]
    %v2109 = vld [vmem:[#allocation18 + $0x130] sm:$0xff]
    %v2110 = vld [vmem:[#allocation18 + $0x138] sm:$0xff]
    %v2111 = vld [vmem:[#allocation18 + $0x140] sm:$0xff]
    %v2112 = vld [vmem:[#allocation18 + $0x148] sm:$0xff]
    %v2113 = vld [vmem:[#allocation18 + $0x150] sm:$0xff]
    %v2114 = vld [vmem:[#allocation18 + $0x158] sm:$0xff]
    %v2115 = vld [vmem:[#allocation18 + $0x160] sm:$0xff]
    %v2116 = vld [vmem:[#allocation18 + $0x168] sm:$0xff]
    %v2117 = vld [vmem:[#allocation18 + $0x170] sm:$0xff]
    %v2118 = vld [vmem:[#allocation18 + $0x178] sm:$0xff]
    %v2119 = vld [vmem:[#allocation18 + $0x180] sm:$0xff]
    %v2120 = vld [vmem:[#allocation18 + $0x188] sm:$0xff]
    %v2121 = vld [vmem:[#allocation18 + $0x190] sm:$0xff]
    %v2122 = vld [vmem:[#allocation18 + $0x198] sm:$0xff]
    %v2123 = vld [vmem:[#allocation18 + $0x1a0] sm:$0xff]
    %v2124 = vld [vmem:[#allocation18 + $0x1a8] sm:$0xff]
    %v2125 = vld [vmem:[#allocation18 + $0x1b0] sm:$0xff]
    %v2126 = vld [vmem:[#allocation18 + $0x1b8] sm:$0xff]
    %v2127 = vld [vmem:[#allocation18 + $0x1c0] sm:$0xff]
    %v2128 = vld [vmem:[#allocation18 + $0x1c8] sm:$0xff]
    %v2129 = vld [vmem:[#allocation18 + $0x1d0] sm:$0xff]
    %v2130 = vld [vmem:[#allocation18 + $0x1d8] sm:$0xff]
    %v2131 = vld [vmem:[#allocation18 + $0x1e0] sm:$0xff]
    %v2132 = vld [vmem:[#allocation18 + $0x1e8] sm:$0xff]
    %v2133 = vld [vmem:[#allocation18 + $0x1f0] sm:$0xff]
    %v2134 = vld [vmem:[#allocation18 + $0x1f8] sm:$0xff]
    %v2135 = vld [vmem:[#allocation18 + $0x200] sm:$0xff]
    %v2136 = vld [vmem:[#allocation18 + $0x208] sm:$0xff]
    %v2137 = vld [vmem:[#allocation18 + $0x210] sm:$0xff]
    %v2138 = vld [vmem:[#allocation18 + $0x218] sm:$0xff]
    %v2139 = vld [vmem:[#allocation18 + $0x220] sm:$0xff]
    %v2140 = vld [vmem:[#allocation18 + $0x228] sm:$0xff]
    %v2141 = vld [vmem:[#allocation18 + $0x230] sm:$0xff]
    %v2142 = vld [vmem:[#allocation18 + $0x238] sm:$0xff]
    %v2143 = vld [vmem:[#allocation18 + $0x240] sm:$0xff]
    %v2144 = vld [vmem:[#allocation18 + $0x248] sm:$0xff]
    %v2145 = vld [vmem:[#allocation18 + $0x250] sm:$0xff]
    %v2146 = vld [vmem:[#allocation18 + $0x258] sm:$0xff]
    %v2147 = vld [vmem:[#allocation18 + $0x260] sm:$0xff]
    %v2148 = vld [vmem:[#allocation18 + $0x268] sm:$0xff]
    %v2149 = vld [vmem:[#allocation18 + $0x270] sm:$0xff]
    %v2150 = vld [vmem:[#allocation18 + $0x278] sm:$0xff]
    %v2151 = vld [vmem:[#allocation18 + $0x280] sm:$0xff]
    %v2152 = vld [vmem:[#allocation18 + $0x288] sm:$0xff]
    %v2153 = vld [vmem:[#allocation18 + $0x290] sm:$0xff]
    %v2154 = vld [vmem:[#allocation18 + $0x298] sm:$0xff]
    %v2155 = vld [vmem:[#allocation18 + $0x2a0] sm:$0xff]
    %v2156 = vld [vmem:[#allocation18 + $0x2a8] sm:$0xff]
    %v2157 = vld [vmem:[#allocation18 + $0x2b0] sm:$0xff]
    %v2158 = vld [vmem:[#allocation18 + $0x2b8] sm:$0xff]
    %v2159 = vld [vmem:[#allocation18 + $0x2c0] sm:$0xff]
    %v2160 = vld [vmem:[#allocation18 + $0x2c8] sm:$0xff]
    %v2161 = vld [vmem:[#allocation18 + $0x2d0] sm:$0xff]
    %v2162 = vld [vmem:[#allocation18 + $0x2d8] sm:$0xff]
    %v2163 = vld [vmem:[#allocation18 + $0x2e0] sm:$0xff]
    %v2164 = vld [vmem:[#allocation18 + $0x2e8] sm:$0xff]
    %v2165 = vld [vmem:[#allocation18 + $0x2f0] sm:$0xff]
    %v2166 = vld [vmem:[#allocation18 + $0x2f8] sm:$0xff]
    %v2167 = vld [vmem:[#allocation18 + $0x300] sm:$0xff]
    %v2168 = vld [vmem:[#allocation18 + $0x308] sm:$0xff]
    %v2169 = vld [vmem:[#allocation18 + $0x310] sm:$0xff]
    %v2170 = vld [vmem:[#allocation18 + $0x318] sm:$0xff]
    %v2171 = vld [vmem:[#allocation18 + $0x320] sm:$0xff]
    %v2172 = vld [vmem:[#allocation18 + $0x328] sm:$0xff]
    %v2173 = vld [vmem:[#allocation18 + $0x330] sm:$0xff]
    %v2174 = vld [vmem:[#allocation18 + $0x338] sm:$0xff]
    %v2175 = vld [vmem:[#allocation18 + $0x340] sm:$0xff]
    %v2176 = vld [vmem:[#allocation18 + $0x348] sm:$0xff]
    %v2177 = vld [vmem:[#allocation18 + $0x350] sm:$0xff]
    %v2178 = vld [vmem:[#allocation18 + $0x358] sm:$0xff]
    %v2179 = vld [vmem:[#allocation18 + $0x360] sm:$0xff]
    %v2180 = vld [vmem:[#allocation18 + $0x368] sm:$0xff]
    %v2181 = vld [vmem:[#allocation18 + $0x370] sm:$0xff]
    %v2182 = vld [vmem:[#allocation18 + $0x378] sm:$0xff]
    %v2183 = vld [vmem:[#allocation18 + $0x380] sm:$0xff]
    %v2184 = vld [vmem:[#allocation18 + $0x388] sm:$0xff]
    %v2185 = vld [vmem:[#allocation18 + $0x390] sm:$0xff]
    %v2186 = vld [vmem:[#allocation18 + $0x398] sm:$0xff]
    %v2187 = vld [vmem:[#allocation18 + $0x3a0] sm:$0xff]
    %v2188 = vld [vmem:[#allocation18 + $0x3a8] sm:$0xff]
    %v2189 = vld [vmem:[#allocation18 + $0x3b0] sm:$0xff]
    %v2190 = vld [vmem:[#allocation18 + $0x3b8] sm:$0xff]
    %v2191 = vld [vmem:[#allocation18 + $0x3c0] sm:$0xff]
    %v2192 = vld [vmem:[#allocation18 + $0x3c8] sm:$0xff]
    %v2193 = vld [vmem:[#allocation18 + $0x3d0] sm:$0xff]
    %v2194 = vld [vmem:[#allocation18 + $0x3d8] sm:$0xff]
    %v2195 = vld [vmem:[#allocation18 + $0x3e0] sm:$0xff]
    %v2196 = vld [vmem:[#allocation18 + $0x3e8] sm:$0xff]
    %v2197 = vld [vmem:[#allocation18 + $0x3f0] sm:$0xff]
    %v2198 = vld [vmem:[#allocation18 + $0x3f8] sm:$0xff]
    %v2199 = vld [vmem:[#allocation18 + $0x400] sm:$0xff]
    %v2200 = vld [vmem:[#allocation18 + $0x408] sm:$0xff]
    %v2201 = vld [vmem:[#allocation18 + $0x410] sm:$0xff]
    %v2202 = vld [vmem:[#allocation18 + $0x418] sm:$0xff]
    %v2203 = vld [vmem:[#allocation18 + $0x420] sm:$0xff]
    %v2204 = vld [vmem:[#allocation18 + $0x428] sm:$0xff]
    %v2205 = vld [vmem:[#allocation18 + $0x430] sm:$0xff]
    %v2206 = vld [vmem:[#allocation18 + $0x438] sm:$0xff]
    %v2207 = vld [vmem:[#allocation18 + $0x440] sm:$0xff]
    %v2208 = vld [vmem:[#allocation18 + $0x448] sm:$0xff]
    %v2209 = vld [vmem:[#allocation18 + $0x450] sm:$0xff]
    %v2210 = vld [vmem:[#allocation18 + $0x458] sm:$0xff]
    %v2211 = vld [vmem:[#allocation18 + $0x460] sm:$0xff]
    %v2212 = vld [vmem:[#allocation18 + $0x468] sm:$0xff]
    %v2213 = vld [vmem:[#allocation18 + $0x470] sm:$0xff]
    %v2214 = vld [vmem:[#allocation18 + $0x478] sm:$0xff]
    %v2215 = vld [vmem:[#allocation18 + $0x480] sm:$0xff]
    %v2216 = vld [vmem:[#allocation18 + $0x488] sm:$0xff]
    %v2217 = vld [vmem:[#allocation18 + $0x490] sm:$0xff]
    %v2218 = vld [vmem:[#allocation18 + $0x498] sm:$0xff]
    %v2219 = vld [vmem:[#allocation18 + $0x4a0] sm:$0xff]
    %v2220 = vld [vmem:[#allocation18 + $0x4a8] sm:$0xff]
    %v2221 = vld [vmem:[#allocation18 + $0x4b0] sm:$0xff]
    %v2222 = vld [vmem:[#allocation18 + $0x4b8] sm:$0xff]
    %v2223 = vld [vmem:[#allocation18 + $0x4c0] sm:$0xff]
    %v2224 = vld [vmem:[#allocation18 + $0x4c8] sm:$0xff]
    %v2225 = vld [vmem:[#allocation18 + $0x4d0] sm:$0xff]
    %v2226 = vld [vmem:[#allocation18 + $0x4d8] sm:$0xff]
    %v2227 = vld [vmem:[#allocation18 + $0x4e0] sm:$0xff]
    %v2228 = vld [vmem:[#allocation18 + $0x4e8] sm:$0xff]
    %v2229 = vld [vmem:[#allocation18 + $0x4f0] sm:$0xff]
    %v2230 = vld [vmem:[#allocation18 + $0x4f8] sm:$0xff]
    %v2231 = vld [vmem:[#allocation18 + $0x500] sm:$0xff]
    %v2232 = vld [vmem:[#allocation18 + $0x508] sm:$0xff]
    %v2233 = vld [vmem:[#allocation18 + $0x510] sm:$0xff]
    %v2234 = vld [vmem:[#allocation18 + $0x518] sm:$0xff]
    %v2235 = vld [vmem:[#allocation18 + $0x520] sm:$0xff]
    %v2236 = vld [vmem:[#allocation18 + $0x528] sm:$0xff]
    %v2237 = vld [vmem:[#allocation18 + $0x530] sm:$0xff]
    %v2238 = vld [vmem:[#allocation18 + $0x538] sm:$0xff]
    %v2239 = vld [vmem:[#allocation18 + $0x540] sm:$0xff]
    %v2240 = vld [vmem:[#allocation18 + $0x548] sm:$0xff]
    %v2241 = vld [vmem:[#allocation18 + $0x550] sm:$0xff]
    %v2242 = vld [vmem:[#allocation18 + $0x558] sm:$0xff]
    %v2243 = vld [vmem:[#allocation18 + $0x560] sm:$0xff]
    %v2244 = vld [vmem:[#allocation18 + $0x568] sm:$0xff]
    %v2245 = vld [vmem:[#allocation18 + $0x570] sm:$0xff]
    %v2246 = vld [vmem:[#allocation18 + $0x578] sm:$0xff]
    %v2247 = vld [vmem:[#allocation18 + $0x580] sm:$0xff]
    %v2248 = vld [vmem:[#allocation18 + $0x588] sm:$0xff]
    %v2249 = vld [vmem:[#allocation18 + $0x590] sm:$0xff]
    %v2250 = vld [vmem:[#allocation18 + $0x598] sm:$0xff]
    %v2251 = vld [vmem:[#allocation18 + $0x5a0] sm:$0xff]
    %v2252 = vld [vmem:[#allocation18 + $0x5a8] sm:$0xff]
    %v2253 = vld [vmem:[#allocation18 + $0x5b0] sm:$0xff]
    %v2254 = vld [vmem:[#allocation18 + $0x5b8] sm:$0xff]
    %v2255 = vld [vmem:[#allocation18 + $0x5c0] sm:$0xff]
    %v2256 = vld [vmem:[#allocation18 + $0x5c8] sm:$0xff]
    %v2257 = vld [vmem:[#allocation18 + $0x5d0] sm:$0xff]
    %v2258 = vld [vmem:[#allocation18 + $0x5d8] sm:$0xff]
    %v2259 = vld [vmem:[#allocation18 + $0x5e0] sm:$0xff]
    %v2260 = vld [vmem:[#allocation18 + $0x5e8] sm:$0xff]
    %v2261 = vld [vmem:[#allocation18 + $0x5f0] sm:$0xff]
    %v2262 = vld [vmem:[#allocation18 + $0x5f8] sm:$0xff]
    %v2263 = vld [vmem:[#allocation18 + $0x600] sm:$0xff]
    %v2264 = vld [vmem:[#allocation18 + $0x608] sm:$0xff]
    %v2265 = vld [vmem:[#allocation18 + $0x610] sm:$0xff]
    %v2266 = vld [vmem:[#allocation18 + $0x618] sm:$0xff]
    %v2267 = vld [vmem:[#allocation18 + $0x620] sm:$0xff]
    %v2268 = vld [vmem:[#allocation18 + $0x628] sm:$0xff]
    %v2269 = vld [vmem:[#allocation18 + $0x630] sm:$0xff]
    %v2270 = vld [vmem:[#allocation18 + $0x638] sm:$0xff]
    %v2271 = vld [vmem:[#allocation18 + $0x640] sm:$0xff]
    %v2272 = vld [vmem:[#allocation18 + $0x648] sm:$0xff]
    %v2273 = vld [vmem:[#allocation18 + $0x650] sm:$0xff]
    %v2274 = vld [vmem:[#allocation18 + $0x658] sm:$0xff]
    %v2275 = vld [vmem:[#allocation18 + $0x660] sm:$0xff]
    %v2276 = vld [vmem:[#allocation18 + $0x668] sm:$0xff]
    %v2277 = vld [vmem:[#allocation18 + $0x670] sm:$0xff]
    %v2278 = vld [vmem:[#allocation18 + $0x678] sm:$0xff]
    %v2279 = vld [vmem:[#allocation18 + $0x680] sm:$0xff]
    %v2280 = vld [vmem:[#allocation18 + $0x688] sm:$0xff]
    %v2281 = vld [vmem:[#allocation18 + $0x690] sm:$0xff]
    %v2282 = vld [vmem:[#allocation18 + $0x698] sm:$0xff]
    %v2283 = vld [vmem:[#allocation18 + $0x6a0] sm:$0xff]
    %v2284 = vld [vmem:[#allocation18 + $0x6a8] sm:$0xff]
    %v2285 = vld [vmem:[#allocation18 + $0x6b0] sm:$0xff]
    %v2286 = vld [vmem:[#allocation18 + $0x6b8] sm:$0xff]
    %v2287 = vld [vmem:[#allocation18 + $0x6c0] sm:$0xff]
    %v2288 = vld [vmem:[#allocation18 + $0x6c8] sm:$0xff]
    %v2289 = vld [vmem:[#allocation18 + $0x6d0] sm:$0xff]
    %v2290 = vld [vmem:[#allocation18 + $0x6d8] sm:$0xff]
    %v2291 = vld [vmem:[#allocation18 + $0x6e0] sm:$0xff]
    %v2292 = vld [vmem:[#allocation18 + $0x6e8] sm:$0xff]
    %v2293 = vld [vmem:[#allocation18 + $0x6f0] sm:$0xff]
    %v2294 = vld [vmem:[#allocation18 + $0x6f8] sm:$0xff]
    %v2295 = vld [vmem:[#allocation18 + $0x700] sm:$0xff]
    %v2296 = vld [vmem:[#allocation18 + $0x708] sm:$0xff]
    %v2297 = vld [vmem:[#allocation18 + $0x710] sm:$0xff]
    %v2298 = vld [vmem:[#allocation18 + $0x718] sm:$0xff]
    %v2299 = vld [vmem:[#allocation18 + $0x720] sm:$0xff]
    %v2300 = vld [vmem:[#allocation18 + $0x728] sm:$0xff]
    %v2301 = vld [vmem:[#allocation18 + $0x730] sm:$0xff]
    %v2302 = vld [vmem:[#allocation18 + $0x738] sm:$0xff]
    %v2303 = vld [vmem:[#allocation18 + $0x740] sm:$0xff]
    %v2304 = vld [vmem:[#allocation18 + $0x748] sm:$0xff]
    %v2305 = vld [vmem:[#allocation18 + $0x750] sm:$0xff]
    %v2306 = vld [vmem:[#allocation18 + $0x758] sm:$0xff]
    %v2307 = vld [vmem:[#allocation18 + $0x760] sm:$0xff]
    %v2308 = vld [vmem:[#allocation18 + $0x768] sm:$0xff]
    %v2309 = vld [vmem:[#allocation18 + $0x770] sm:$0xff]
    %v2310 = vld [vmem:[#allocation18 + $0x778] sm:$0xff]
    %v2311 = vld [vmem:[#allocation18 + $0x780] sm:$0xff]
    %v2312 = vld [vmem:[#allocation18 + $0x788] sm:$0xff]
    %v2313 = vld [vmem:[#allocation18 + $0x790] sm:$0xff]
    %v2314 = vld [vmem:[#allocation18 + $0x798] sm:$0xff]
    %v2315 = vld [vmem:[#allocation18 + $0x7a0] sm:$0xff]
    %v2316 = vld [vmem:[#allocation18 + $0x7a8] sm:$0xff]
    %v2317 = vld [vmem:[#allocation18 + $0x7b0] sm:$0xff]
    %v2318 = vld [vmem:[#allocation18 + $0x7b8] sm:$0xff]
    %v2319 = vld [vmem:[#allocation18 + $0x7c0] sm:$0xff]
    %v2320 = vld [vmem:[#allocation18 + $0x7c8] sm:$0xff]
    %v2321 = vld [vmem:[#allocation18 + $0x7d0] sm:$0xff]
    %v2322 = vld [vmem:[#allocation18 + $0x7d8] sm:$0xff]
    %v2323 = vld [vmem:[#allocation18 + $0x7e0] sm:$0xff]
    %v2324 = vld [vmem:[#allocation18 + $0x7e8] sm:$0xff]
    %v2325 = vld [vmem:[#allocation18 + $0x7f0] sm:$0xff]
    %v2326 = vld [vmem:[#allocation18 + $0x7f8] sm:$0xff]
    %v2327 = vld [vmem:[#allocation18 + $0x800] sm:$0xff]
    %v2328 = vld [vmem:[#allocation18 + $0x808] sm:$0xff]
    %v2329 = vld [vmem:[#allocation18 + $0x810] sm:$0xff]
    %v2330 = vld [vmem:[#allocation18 + $0x818] sm:$0xff]
    %v2331 = vld [vmem:[#allocation18 + $0x820] sm:$0xff]
    %v2332 = vld [vmem:[#allocation18 + $0x828] sm:$0xff]
    %v2333 = vld [vmem:[#allocation18 + $0x830] sm:$0xff]
    %v2334 = vld [vmem:[#allocation18 + $0x838] sm:$0xff]
    %v2335 = vld [vmem:[#allocation18 + $0x840] sm:$0xff]
    %v2336 = vld [vmem:[#allocation18 + $0x848] sm:$0xff]
    %v2337 = vld [vmem:[#allocation18 + $0x850] sm:$0xff]
    %v2338 = vld [vmem:[#allocation18 + $0x858] sm:$0xff]
    %v2339 = vld [vmem:[#allocation18 + $0x860] sm:$0xff]
    %v2340 = vld [vmem:[#allocation18 + $0x868] sm:$0xff]
    %v2341 = vld [vmem:[#allocation18 + $0x870] sm:$0xff]
    %v2342 = vld [vmem:[#allocation18 + $0x878] sm:$0xff]
    %v2343 = vld [vmem:[#allocation18 + $0x880] sm:$0xff]
    %v2344 = vld [vmem:[#allocation18 + $0x888] sm:$0xff]
    %v2345 = vld [vmem:[#allocation18 + $0x890] sm:$0xff]
    %v2346 = vld [vmem:[#allocation18 + $0x898] sm:$0xff]
    %v2347 = vld [vmem:[#allocation18 + $0x8a0] sm:$0xff]
    %v2348 = vld [vmem:[#allocation18 + $0x8a8] sm:$0xff]
    %v2349 = vld [vmem:[#allocation18 + $0x8b0] sm:$0xff]
    %v2350 = vld [vmem:[#allocation18 + $0x8b8] sm:$0xff]
    %v2351 = vld [vmem:[#allocation18 + $0x8c0] sm:$0xff]
    %v2352 = vld [vmem:[#allocation18 + $0x8c8] sm:$0xff]
    %v2353 = vld [vmem:[#allocation18 + $0x8d0] sm:$0xff]
    %v2354 = vld [vmem:[#allocation18 + $0x8d8] sm:$0xff]
    %v2355 = vld [vmem:[#allocation18 + $0x8e0] sm:$0xff]
    %v2356 = vld [vmem:[#allocation18 + $0x8e8] sm:$0xff]
    %v2357 = vld [vmem:[#allocation18 + $0x8f0] sm:$0xff]
    %v2358 = vld [vmem:[#allocation18 + $0x8f8] sm:$0xff]
    %v2359 = vld [vmem:[#allocation18 + $0x900] sm:$0xff]
    %v2360 = vld [vmem:[#allocation18 + $0x908] sm:$0xff]
    %v2361 = vld [vmem:[#allocation18 + $0x910] sm:$0xff]
    %v2362 = vld [vmem:[#allocation18 + $0x918] sm:$0xff]
    %v2363 = vld [vmem:[#allocation18 + $0x920] sm:$0xff]
    %v2364 = vld [vmem:[#allocation18 + $0x928] sm:$0xff]
    %v2365 = vld [vmem:[#allocation18 + $0x930] sm:$0xff]
    %v2366 = vld [vmem:[#allocation18 + $0x938] sm:$0xff]
    %v2367 = vld [vmem:[#allocation18 + $0x940] sm:$0xff]
    %v2368 = vld [vmem:[#allocation18 + $0x948] sm:$0xff]
    %v2369 = vld [vmem:[#allocation18 + $0x950] sm:$0xff]
    %v2370 = vld [vmem:[#allocation18 + $0x958] sm:$0xff]
    %v2371 = vld [vmem:[#allocation18 + $0x960] sm:$0xff]
    %v2372 = vld [vmem:[#allocation18 + $0x968] sm:$0xff]
    %v2373 = vld [vmem:[#allocation18 + $0x970] sm:$0xff]
    %v2374 = vld [vmem:[#allocation18 + $0x978] sm:$0xff]
    %v2375 = vld [vmem:[#allocation18 + $0x980] sm:$0xff]
    %v2376 = vld [vmem:[#allocation18 + $0x988] sm:$0xff]
    %v2377 = vld [vmem:[#allocation18 + $0x990] sm:$0xff]
    %v2378 = vld [vmem:[#allocation18 + $0x998] sm:$0xff]
    %v2379 = vld [vmem:[#allocation18 + $0x9a0] sm:$0xff]
    %v2380 = vld [vmem:[#allocation18 + $0x9a8] sm:$0xff]
    %v2381 = vld [vmem:[#allocation18 + $0x9b0] sm:$0xff]
    %v2382 = vld [vmem:[#allocation18 + $0x9b8] sm:$0xff]
    %v2383 = vld [vmem:[#allocation18 + $0x9c0] sm:$0xff]
    %v2384 = vld [vmem:[#allocation18 + $0x9c8] sm:$0xff]
    %v2385 = vld [vmem:[#allocation18 + $0x9d0] sm:$0xff]
    %v2386 = vld [vmem:[#allocation18 + $0x9d8] sm:$0xff]
    %v2387 = vld [vmem:[#allocation18 + $0x9e0] sm:$0xff]
    %v2388 = vld [vmem:[#allocation18 + $0x9e8] sm:$0xff]
    %v2389 = vld [vmem:[#allocation18 + $0x9f0] sm:$0xff]
    %v2390 = vld [vmem:[#allocation18 + $0x9f8] sm:$0xff]
    %2391 = vmatpush.msra.mxu0 %v2146
    %2392 = vmatpush.msra.mxu0 %v2141
    %2393 = vmatpush.msra.mxu0 %v2136
    %2394 = vmatpush.msra.mxu0 %v2131
    %2395 = vmatpush.msra.mxu0 %v2126
    %2396 = vmatpush.msra.mxu0 %v2121
    %2397 = vmatpush.msra.mxu0 %v2116
    %2398 = vmatpush.msra.mxu0 %v2111
    %2399 = vmatpush.msra.mxu0 %v2106
    %2400 = vmatpush.msra.mxu0 %v2101
    %2401 = vmatpush.msra.mxu0 %v2096
    %2402 = vmatpush.msra.mxu0 %v2091
    %2403 = vmatpush.msra.mxu0 %v2086
    %2404 = vmatpush.msra.mxu0 %v2081
    %2405 = vmatpush.msra.mxu0 %v2076
    %2406 = vmatpush.msra.mxu0 %v2071
    %2407 = vmatmul.f32.gmra.mxu0 %v2067
    %v2408 = vpop.f32.mrf.mxu0
    %v2409 = vadd.f32 0.0, %v2408
    %2410 = vdwg.mxu0
    %2411 = vmatpush.msra.mxu0 %v2226
    %2412 = vmatpush.msra.mxu0 %v2221
    %2413 = vmatpush.msra.mxu0 %v2216
    %2414 = vmatpush.msra.mxu0 %v2211
    %2415 = vmatpush.msra.mxu0 %v2206
    %2416 = vmatpush.msra.mxu0 %v2201
    %2417 = vmatpush.msra.mxu0 %v2196
    %2418 = vmatpush.msra.mxu0 %v2191
    %2419 = vmatpush.msra.mxu0 %v2186
    %2420 = vmatpush.msra.mxu0 %v2181
    %2421 = vmatpush.msra.mxu0 %v2176
    %2422 = vmatpush.msra.mxu0 %v2171
    %2423 = vmatpush.msra.mxu0 %v2166
    %2424 = vmatpush.msra.mxu0 %v2161
    %2425 = vmatpush.msra.mxu0 %v2156
    %2426 = vmatpush.msra.mxu0 %v2151
    %2427 = vmatmul.f32.gmra.mxu0 %v2068
    %v2428 = vpop.f32.mrf.mxu0
    %v2429 = vadd.f32 %v2409, %v2428
    %2430 = vdwg.mxu0
    %2431 = vmatpush.msra.mxu0 %v2306
    %2432 = vmatpush.msra.mxu0 %v2301
    %2433 = vmatpush.msra.mxu0 %v2296
    %2434 = vmatpush.msra.mxu0 %v2291
    %2435 = vmatpush.msra.mxu0 %v2286
    %2436 = vmatpush.msra.mxu0 %v2281
    %2437 = vmatpush.msra.mxu0 %v2276
    %2438 = vmatpush.msra.mxu0 %v2271
    %2439 = vmatpush.msra.mxu0 %v2266
    %2440 = vmatpush.msra.mxu0 %v2261
    %2441 = vmatpush.msra.mxu0 %v2256
    %2442 = vmatpush.msra.mxu0 %v2251
    %2443 = vmatpush.msra.mxu0 %v2246
    %2444 = vmatpush.msra.mxu0 %v2241
    %2445 = vmatpush.msra.mxu0 %v2236
    %2446 = vmatpush.msra.mxu0 %v2231
    %2447 = vmatmul.f32.gmra.mxu0 %v2069
    %v2448 = vpop.f32.mrf.mxu0
    %v2449 = vadd.f32 %v2429, %v2448
    %2450 = vdwg.mxu0
    %2451 = vmatpush.msra.mxu0 %v2386
    %2452 = vmatpush.msra.mxu0 %v2381
    %2453 = vmatpush.msra.mxu0 %v2376
    %2454 = vmatpush.msra.mxu0 %v2371
    %2455 = vmatpush.msra.mxu0 %v2366
    %2456 = vmatpush.msra.mxu0 %v2361
    %2457 = vmatpush.msra.mxu0 %v2356
    %2458 = vmatpush.msra.mxu0 %v2351
    %2459 = vmatpush.msra.mxu0 %v2346
    %2460 = vmatpush.msra.mxu0 %v2341
    %2461 = vmatpush.msra.mxu0 %v2336
    %2462 = vmatpush.msra.mxu0 %v2331
    %2463 = vmatpush.msra.mxu0 %v2326
    %2464 = vmatpush.msra.mxu0 %v2321
    %2465 = vmatpush.msra.mxu0 %v2316
    %2466 = vmatpush.msra.mxu0 %v2311
    %2467 = vmatmul.f32.gmra.mxu0 %v2070
    %v2468 = vpop.f32.mrf.mxu0
    %v2469 = vadd.f32 %v2449, %v2468
    %2470 = vdwg.mxu0
    %2471 = vmatpush.msra.mxu0 %v2147
    %2472 = vmatpush.msra.mxu0 %v2142
    %2473 = vmatpush.msra.mxu0 %v2137
    %2474 = vmatpush.msra.mxu0 %v2132
    %2475 = vmatpush.msra.mxu0 %v2127
    %2476 = vmatpush.msra.mxu0 %v2122
    %2477 = vmatpush.msra.mxu0 %v2117
    %2478 = vmatpush.msra.mxu0 %v2112
    %2479 = vmatpush.msra.mxu0 %v2107
    %2480 = vmatpush.msra.mxu0 %v2102
    %2481 = vmatpush.msra.mxu0 %v2097
    %2482 = vmatpush.msra.mxu0 %v2092
    %2483 = vmatpush.msra.mxu0 %v2087
    %2484 = vmatpush.msra.mxu0 %v2082
    %2485 = vmatpush.msra.mxu0 %v2077
    %2486 = vmatpush.msra.mxu0 %v2072
    %2487 = vmatmul.f32.gmra.mxu0 %v2067
    %v2488 = vpop.f32.mrf.mxu0
    %v2489 = vadd.f32 0.0, %v2488
    %2490 = vdwg.mxu0
    %2491 = vmatpush.msra.mxu0 %v2227
    %2492 = vmatpush.msra.mxu0 %v2222
    %2493 = vmatpush.msra.mxu0 %v2217
    %2494 = vmatpush.msra.mxu0 %v2212
    %2495 = vmatpush.msra.mxu0 %v2207
    %2496 = vmatpush.msra.mxu0 %v2202
    %2497 = vmatpush.msra.mxu0 %v2197
    %2498 = vmatpush.msra.mxu0 %v2192
    %2499 = vmatpush.msra.mxu0 %v2187
    %2500 = vmatpush.msra.mxu0 %v2182
    %2501 = vmatpush.msra.mxu0 %v2177
    %2502 = vmatpush.msra.mxu0 %v2172
    %2503 = vmatpush.msra.mxu0 %v2167
    %2504 = vmatpush.msra.mxu0 %v2162
    %2505 = vmatpush.msra.mxu0 %v2157
    %2506 = vmatpush.msra.mxu0 %v2152
    %2507 = vmatmul.f32.gmra.mxu0 %v2068
    %v2508 = vpop.f32.mrf.mxu0
    %v2509 = vadd.f32 %v2489, %v2508
    %2510 = vdwg.mxu0
    %2511 = vmatpush.msra.mxu0 %v2307
    %2512 = vmatpush.msra.mxu0 %v2302
    %2513 = vmatpush.msra.mxu0 %v2297
    %2514 = vmatpush.msra.mxu0 %v2292
    %2515 = vmatpush.msra.mxu0 %v2287
    %2516 = vmatpush.msra.mxu0 %v2282
    %2517 = vmatpush.msra.mxu0 %v2277
    %2518 = vmatpush.msra.mxu0 %v2272
    %2519 = vmatpush.msra.mxu0 %v2267
    %2520 = vmatpush.msra.mxu0 %v2262
    %2521 = vmatpush.msra.mxu0 %v2257
    %2522 = vmatpush.msra.mxu0 %v2252
    %2523 = vmatpush.msra.mxu0 %v2247
    %2524 = vmatpush.msra.mxu0 %v2242
    %2525 = vmatpush.msra.mxu0 %v2237
    %2526 = vmatpush.msra.mxu0 %v2232
    %2527 = vmatmul.f32.gmra.mxu0 %v2069
    %v2528 = vpop.f32.mrf.mxu0
    %v2529 = vadd.f32 %v2509, %v2528
    %2530 = vdwg.mxu0
    %2531 = vmatpush.msra.mxu0 %v2387
    %2532 = vmatpush.msra.mxu0 %v2382
    %2533 = vmatpush.msra.mxu0 %v2377
    %2534 = vmatpush.msra.mxu0 %v2372
    %2535 = vmatpush.msra.mxu0 %v2367
    %2536 = vmatpush.msra.mxu0 %v2362
    %2537 = vmatpush.msra.mxu0 %v2357
    %2538 = vmatpush.msra.mxu0 %v2352
    %2539 = vmatpush.msra.mxu0 %v2347
    %2540 = vmatpush.msra.mxu0 %v2342
    %2541 = vmatpush.msra.mxu0 %v2337
    %2542 = vmatpush.msra.mxu0 %v2332
    %2543 = vmatpush.msra.mxu0 %v2327
    %2544 = vmatpush.msra.mxu0 %v2322
    %2545 = vmatpush.msra.mxu0 %v2317
    %2546 = vmatpush.msra.mxu0 %v2312
    %2547 = vmatmul.f32.gmra.mxu0 %v2070
    %v2548 = vpop.f32.mrf.mxu0
    %v2549 = vadd.f32 %v2529, %v2548
    %2550 = vdwg.mxu0
    %2551 = vmatpush.msra.mxu0 %v2148
    %2552 = vmatpush.msra.mxu0 %v2143
    %2553 = vmatpush.msra.mxu0 %v2138
    %2554 = vmatpush.msra.mxu0 %v2133
    %2555 = vmatpush.msra.mxu0 %v2128
    %2556 = vmatpush.msra.mxu0 %v2123
    %2557 = vmatpush.msra.mxu0 %v2118
    %2558 = vmatpush.msra.mxu0 %v2113
    %2559 = vmatpush.msra.mxu0 %v2108
    %2560 = vmatpush.msra.mxu0 %v2103
    %2561 = vmatpush.msra.mxu0 %v2098
    %2562 = vmatpush.msra.mxu0 %v2093
    %2563 = vmatpush.msra.mxu0 %v2088
    %2564 = vmatpush.msra.mxu0 %v2083
    %2565 = vmatpush.msra.mxu0 %v2078
    %2566 = vmatpush.msra.mxu0 %v2073
    %2567 = vmatmul.f32.gmra.mxu0 %v2067
    %v2568 = vpop.f32.mrf.mxu0
    %v2569 = vadd.f32 0.0, %v2568
    %2570 = vdwg.mxu0
    %2571 = vmatpush.msra.mxu0 %v2228
    %2572 = vmatpush.msra.mxu0 %v2223
    %2573 = vmatpush.msra.mxu0 %v2218
    %2574 = vmatpush.msra.mxu0 %v2213
    %2575 = vmatpush.msra.mxu0 %v2208
    %2576 = vmatpush.msra.mxu0 %v2203
    %2577 = vmatpush.msra.mxu0 %v2198
    %2578 = vmatpush.msra.mxu0 %v2193
    %2579 = vmatpush.msra.mxu0 %v2188
    %2580 = vmatpush.msra.mxu0 %v2183
    %2581 = vmatpush.msra.mxu0 %v2178
    %2582 = vmatpush.msra.mxu0 %v2173
    %2583 = vmatpush.msra.mxu0 %v2168
    %2584 = vmatpush.msra.mxu0 %v2163
    %2585 = vmatpush.msra.mxu0 %v2158
    %2586 = vmatpush.msra.mxu0 %v2153
    %2587 = vmatmul.f32.gmra.mxu0 %v2068
    %v2588 = vpop.f32.mrf.mxu0
    %v2589 = vadd.f32 %v2569, %v2588
    %2590 = vdwg.mxu0
    %2591 = vmatpush.msra.mxu0 %v2308
    %2592 = vmatpush.msra.mxu0 %v2303
    %2593 = vmatpush.msra.mxu0 %v2298
    %2594 = vmatpush.msra.mxu0 %v2293
    %2595 = vmatpush.msra.mxu0 %v2288
    %2596 = vmatpush.msra.mxu0 %v2283
    %2597 = vmatpush.msra.mxu0 %v2278
    %2598 = vmatpush.msra.mxu0 %v2273
    %2599 = vmatpush.msra.mxu0 %v2268
    %2600 = vmatpush.msra.mxu0 %v2263
    %2601 = vmatpush.msra.mxu0 %v2258
    %2602 = vmatpush.msra.mxu0 %v2253
    %2603 = vmatpush.msra.mxu0 %v2248
    %2604 = vmatpush.msra.mxu0 %v2243
    %2605 = vmatpush.msra.mxu0 %v2238
    %2606 = vmatpush.msra.mxu0 %v2233
    %2607 = vmatmul.f32.gmra.mxu0 %v2069
    %v2608 = vpop.f32.mrf.mxu0
    %v2609 = vadd.f32 %v2589, %v2608
    %2610 = vdwg.mxu0
    %2611 = vmatpush.msra.mxu0 %v2388
    %2612 = vmatpush.msra.mxu0 %v2383
    %2613 = vmatpush.msra.mxu0 %v2378
    %2614 = vmatpush.msra.mxu0 %v2373
    %2615 = vmatpush.msra.mxu0 %v2368
    %2616 = vmatpush.msra.mxu0 %v2363
    %2617 = vmatpush.msra.mxu0 %v2358
    %2618 = vmatpush.msra.mxu0 %v2353
    %2619 = vmatpush.msra.mxu0 %v2348
    %2620 = vmatpush.msra.mxu0 %v2343
    %2621 = vmatpush.msra.mxu0 %v2338
    %2622 = vmatpush.msra.mxu0 %v2333
    %2623 = vmatpush.msra.mxu0 %v2328
    %2624 = vmatpush.msra.mxu0 %v2323
    %2625 = vmatpush.msra.mxu0 %v2318
    %2626 = vmatpush.msra.mxu0 %v2313
    %2627 = vmatmul.f32.gmra.mxu0 %v2070
    %v2628 = vpop.f32.mrf.mxu0
    %v2629 = vadd.f32 %v2609, %v2628
    %2630 = vdwg.mxu0
    %2631 = vmatpush.msra.mxu0 %v2149
    %2632 = vmatpush.msra.mxu0 %v2144
    %2633 = vmatpush.msra.mxu0 %v2139
    %2634 = vmatpush.msra.mxu0 %v2134
    %2635 = vmatpush.msra.mxu0 %v2129
    %2636 = vmatpush.msra.mxu0 %v2124
    %2637 = vmatpush.msra.mxu0 %v2119
    %2638 = vmatpush.msra.mxu0 %v2114
    %2639 = vmatpush.msra.mxu0 %v2109
    %2640 = vmatpush.msra.mxu0 %v2104
    %2641 = vmatpush.msra.mxu0 %v2099
    %2642 = vmatpush.msra.mxu0 %v2094
    %2643 = vmatpush.msra.mxu0 %v2089
    %2644 = vmatpush.msra.mxu0 %v2084
    %2645 = vmatpush.msra.mxu0 %v2079
    %2646 = vmatpush.msra.mxu0 %v2074
    %2647 = vmatmul.f32.gmra.mxu0 %v2067
    %v2648 = vpop.f32.mrf.mxu0
    %v2649 = vadd.f32 0.0, %v2648
    %2650 = vdwg.mxu0
    %2651 = vmatpush.msra.mxu0 %v2229
    %2652 = vmatpush.msra.mxu0 %v2224
    %2653 = vmatpush.msra.mxu0 %v2219
    %2654 = vmatpush.msra.mxu0 %v2214
    %2655 = vmatpush.msra.mxu0 %v2209
    %2656 = vmatpush.msra.mxu0 %v2204
    %2657 = vmatpush.msra.mxu0 %v2199
    %2658 = vmatpush.msra.mxu0 %v2194
    %2659 = vmatpush.msra.mxu0 %v2189
    %2660 = vmatpush.msra.mxu0 %v2184
    %2661 = vmatpush.msra.mxu0 %v2179
    %2662 = vmatpush.msra.mxu0 %v2174
    %2663 = vmatpush.msra.mxu0 %v2169
    %2664 = vmatpush.msra.mxu0 %v2164
    %2665 = vmatpush.msra.mxu0 %v2159
    %2666 = vmatpush.msra.mxu0 %v2154
    %2667 = vmatmul.f32.gmra.mxu0 %v2068
    %v2668 = vpop.f32.mrf.mxu0
    %v2669 = vadd.f32 %v2649, %v2668
    %2670 = vdwg.mxu0
    %2671 = vmatpush.msra.mxu0 %v2309
    %2672 = vmatpush.msra.mxu0 %v2304
    %2673 = vmatpush.msra.mxu0 %v2299
    %2674 = vmatpush.msra.mxu0 %v2294
    %2675 = vmatpush.msra.mxu0 %v2289
    %2676 = vmatpush.msra.mxu0 %v2284
    %2677 = vmatpush.msra.mxu0 %v2279
    %2678 = vmatpush.msra.mxu0 %v2274
    %2679 = vmatpush.msra.mxu0 %v2269
    %2680 = vmatpush.msra.mxu0 %v2264
    %2681 = vmatpush.msra.mxu0 %v2259
    %2682 = vmatpush.msra.mxu0 %v2254
    %2683 = vmatpush.msra.mxu0 %v2249
    %2684 = vmatpush.msra.mxu0 %v2244
    %2685 = vmatpush.msra.mxu0 %v2239
    %2686 = vmatpush.msra.mxu0 %v2234
    %2687 = vmatmul.f32.gmra.mxu0 %v2069
    %v2688 = vpop.f32.mrf.mxu0
    %v2689 = vadd.f32 %v2669, %v2688
    %2690 = vdwg.mxu0
    %2691 = vmatpush.msra.mxu0 %v2389
    %2692 = vmatpush.msra.mxu0 %v2384
    %2693 = vmatpush.msra.mxu0 %v2379
    %2694 = vmatpush.msra.mxu0 %v2374
    %2695 = vmatpush.msra.mxu0 %v2369
    %2696 = vmatpush.msra.mxu0 %v2364
    %2697 = vmatpush.msra.mxu0 %v2359
    %2698 = vmatpush.msra.mxu0 %v2354
    %2699 = vmatpush.msra.mxu0 %v2349
    %2700 = vmatpush.msra.mxu0 %v2344
    %2701 = vmatpush.msra.mxu0 %v2339
    %2702 = vmatpush.msra.mxu0 %v2334
    %2703 = vmatpush.msra.mxu0 %v2329
    %2704 = vmatpush.msra.mxu0 %v2324
    %2705 = vmatpush.msra.mxu0 %v2319
    %2706 = vmatpush.msra.mxu0 %v2314
    %2707 = vmatmul.f32.gmra.mxu0 %v2070
    %v2708 = vpop.f32.mrf.mxu0
    %v2709 = vadd.f32 %v2689, %v2708
    %2710 = vdwg.mxu0
    %2711 = vmatpush.msra.mxu0 %v2150
    %2712 = vmatpush.msra.mxu0 %v2145
    %2713 = vmatpush.msra.mxu0 %v2140
    %2714 = vmatpush.msra.mxu0 %v2135
    %2715 = vmatpush.msra.mxu0 %v2130
    %2716 = vmatpush.msra.mxu0 %v2125
    %2717 = vmatpush.msra.mxu0 %v2120
    %2718 = vmatpush.msra.mxu0 %v2115
    %2719 = vmatpush.msra.mxu0 %v2110
    %2720 = vmatpush.msra.mxu0 %v2105
    %2721 = vmatpush.msra.mxu0 %v2100
    %2722 = vmatpush.msra.mxu0 %v2095
    %2723 = vmatpush.msra.mxu0 %v2090
    %2724 = vmatpush.msra.mxu0 %v2085
    %2725 = vmatpush.msra.mxu0 %v2080
    %2726 = vmatpush.msra.mxu0 %v2075
    %2727 = vmatmul.f32.gmra.mxu0 %v2067
    %v2728 = vpop.f32.mrf.mxu0
    %v2729 = vadd.f32 0.0, %v2728
    %2730 = vdwg.mxu0
    %2731 = vmatpush.msra.mxu0 %v2230
    %2732 = vmatpush.msra.mxu0 %v2225
    %2733 = vmatpush.msra.mxu0 %v2220
    %2734 = vmatpush.msra.mxu0 %v2215
    %2735 = vmatpush.msra.mxu0 %v2210
    %2736 = vmatpush.msra.mxu0 %v2205
    %2737 = vmatpush.msra.mxu0 %v2200
    %2738 = vmatpush.msra.mxu0 %v2195
    %2739 = vmatpush.msra.mxu0 %v2190
    %2740 = vmatpush.msra.mxu0 %v2185
    %2741 = vmatpush.msra.mxu0 %v2180
    %2742 = vmatpush.msra.mxu0 %v2175
    %2743 = vmatpush.msra.mxu0 %v2170
    %2744 = vmatpush.msra.mxu0 %v2165
    %2745 = vmatpush.msra.mxu0 %v2160
    %2746 = vmatpush.msra.mxu0 %v2155
    %2747 = vmatmul.f32.gmra.mxu0 %v2068
    %v2748 = vpop.f32.mrf.mxu0
    %v2749 = vadd.f32 %v2729, %v2748
    %2750 = vdwg.mxu0
    %2751 = vmatpush.msra.mxu0 %v2310
    %2752 = vmatpush.msra.mxu0 %v2305
    %2753 = vmatpush.msra.mxu0 %v2300
    %2754 = vmatpush.msra.mxu0 %v2295
    %2755 = vmatpush.msra.mxu0 %v2290
    %2756 = vmatpush.msra.mxu0 %v2285
    %2757 = vmatpush.msra.mxu0 %v2280
    %2758 = vmatpush.msra.mxu0 %v2275
    %2759 = vmatpush.msra.mxu0 %v2270
    %2760 = vmatpush.msra.mxu0 %v2265
    %2761 = vmatpush.msra.mxu0 %v2260
    %2762 = vmatpush.msra.mxu0 %v2255
    %2763 = vmatpush.msra.mxu0 %v2250
    %2764 = vmatpush.msra.mxu0 %v2245
    %2765 = vmatpush.msra.mxu0 %v2240
    %2766 = vmatpush.msra.mxu0 %v2235
    %2767 = vmatmul.f32.gmra.mxu0 %v2069
    %v2768 = vpop.f32.mrf.mxu0
    %v2769 = vadd.f32 %v2749, %v2768
    %2770 = vdwg.mxu0
    %2771 = vmatpush.msra.mxu0 %v2390
    %2772 = vmatpush.msra.mxu0 %v2385
    %2773 = vmatpush.msra.mxu0 %v2380
    %2774 = vmatpush.msra.mxu0 %v2375
    %2775 = vmatpush.msra.mxu0 %v2370
    %2776 = vmatpush.msra.mxu0 %v2365
    %2777 = vmatpush.msra.mxu0 %v2360
    %2778 = vmatpush.msra.mxu0 %v2355
    %2779 = vmatpush.msra.mxu0 %v2350
    %2780 = vmatpush.msra.mxu0 %v2345
    %2781 = vmatpush.msra.mxu0 %v2340
    %2782 = vmatpush.msra.mxu0 %v2335
    %2783 = vmatpush.msra.mxu0 %v2330
    %2784 = vmatpush.msra.mxu0 %v2325
    %2785 = vmatpush.msra.mxu0 %v2320
    %2786 = vmatpush.msra.mxu0 %v2315
    %2787 = vmatmul.f32.gmra.mxu0 %v2070
    %v2788 = vpop.f32.mrf.mxu0
    %v2789 = vadd.f32 %v2769, %v2788
    %2790 = vdwg.mxu0
    %v2791 = vld [vmem:[#allocation22] sm:$0xff]
    %v2792 = vld [vmem:[#allocation22 + $0x8] sm:$0xff]
    %v2793 = vld [vmem:[#allocation22 + $0x10] sm:$0xff]
    %v2794 = vld [vmem:[#allocation22 + $0x18] sm:$0xff]
    %v2795 = vld [vmem:[#allocation22 + $0x20] sm:$0xff]
    %v2796 = vld [vmem:[#allocation22 + $0x28] sm:$0xff]
    %v2797 = vld [vmem:[#allocation22 + $0x30] sm:$0xff]
    %v2798 = vld [vmem:[#allocation22 + $0x38] sm:$0xff]
    %v2799 = vld [vmem:[#allocation22 + $0x40] sm:$0xff]
    %v2800 = vld [vmem:[#allocation22 + $0x48] sm:$0xff]
    %v2801 = vld [vmem:[#allocation22 + $0x50] sm:$0xff]
    %v2802 = vld [vmem:[#allocation22 + $0x58] sm:$0xff]
    %v2803 = vld [vmem:[#allocation22 + $0x60] sm:$0xff]
    %v2804 = vld [vmem:[#allocation22 + $0x68] sm:$0xff]
    %v2805 = vld [vmem:[#allocation22 + $0x70] sm:$0xff]
    %v2806 = vld [vmem:[#allocation22 + $0x78] sm:$0xff]
    %v2807 = vld [vmem:[#allocation22 + $0x80] sm:$0xff]
    %v2808 = vld [vmem:[#allocation22 + $0x88] sm:$0xff]
    %v2809 = vld [vmem:[#allocation22 + $0x90] sm:$0xff]
    %v2810 = vld [vmem:[#allocation22 + $0x98] sm:$0xff]
    %v2811 = vld [vmem:[#allocation22 + $0xa0] sm:$0xff]
    %v2812 = vld [vmem:[#allocation22 + $0xa8] sm:$0xff]
    %v2813 = vld [vmem:[#allocation22 + $0xb0] sm:$0xff]
    %v2814 = vld [vmem:[#allocation22 + $0xb8] sm:$0xff]
    %v2815 = vld [vmem:[#allocation22 + $0xc0] sm:$0xff]
    %v2816 = vld [vmem:[#allocation22 + $0xc8] sm:$0xff]
    %v2817 = vld [vmem:[#allocation22 + $0xd0] sm:$0xff]
    %v2818 = vld [vmem:[#allocation22 + $0xd8] sm:$0xff]
    %v2819 = vld [vmem:[#allocation22 + $0xe0] sm:$0xff]
    %v2820 = vld [vmem:[#allocation22 + $0xe8] sm:$0xff]
    %v2821 = vld [vmem:[#allocation22 + $0xf0] sm:$0xff]
    %v2822 = vld [vmem:[#allocation22 + $0xf8] sm:$0xff]
    %v2823 = vld [vmem:[#allocation22 + $0x100] sm:$0xff]
    %v2824 = vld [vmem:[#allocation22 + $0x108] sm:$0xff]
    %v2825 = vld [vmem:[#allocation22 + $0x110] sm:$0xff]
    %v2826 = vld [vmem:[#allocation22 + $0x118] sm:$0xff]
    %v2827 = vld [vmem:[#allocation22 + $0x120] sm:$0xff]
    %v2828 = vld [vmem:[#allocation22 + $0x128] sm:$0xff]
    %v2829 = vld [vmem:[#allocation22 + $0x130] sm:$0xff]
    %v2830 = vld [vmem:[#allocation22 + $0x138] sm:$0xff]
    %v2831 = vld [vmem:[#allocation22 + $0x140] sm:$0xff]
    %v2832 = vld [vmem:[#allocation22 + $0x148] sm:$0xff]
    %v2833 = vld [vmem:[#allocation22 + $0x150] sm:$0xff]
    %v2834 = vld [vmem:[#allocation22 + $0x158] sm:$0xff]
    %v2835 = vld [vmem:[#allocation22 + $0x160] sm:$0xff]
    %v2836 = vld [vmem:[#allocation22 + $0x168] sm:$0xff]
    %v2837 = vld [vmem:[#allocation22 + $0x170] sm:$0xff]
    %v2838 = vld [vmem:[#allocation22 + $0x178] sm:$0xff]
    %v2839 = vld [vmem:[#allocation22 + $0x180] sm:$0xff]
    %v2840 = vld [vmem:[#allocation22 + $0x188] sm:$0xff]
    %v2841 = vld [vmem:[#allocation22 + $0x190] sm:$0xff]
    %v2842 = vld [vmem:[#allocation22 + $0x198] sm:$0xff]
    %v2843 = vld [vmem:[#allocation22 + $0x1a0] sm:$0xff]
    %v2844 = vld [vmem:[#allocation22 + $0x1a8] sm:$0xff]
    %v2845 = vld [vmem:[#allocation22 + $0x1b0] sm:$0xff]
    %v2846 = vld [vmem:[#allocation22 + $0x1b8] sm:$0xff]
    %v2847 = vld [vmem:[#allocation22 + $0x1c0] sm:$0xff]
    %v2848 = vld [vmem:[#allocation22 + $0x1c8] sm:$0xff]
    %v2849 = vld [vmem:[#allocation22 + $0x1d0] sm:$0xff]
    %v2850 = vld [vmem:[#allocation22 + $0x1d8] sm:$0xff]
    %v2851 = vld [vmem:[#allocation22 + $0x1e0] sm:$0xff]
    %v2852 = vld [vmem:[#allocation22 + $0x1e8] sm:$0xff]
    %v2853 = vld [vmem:[#allocation22 + $0x1f0] sm:$0xff]
    %v2854 = vld [vmem:[#allocation22 + $0x1f8] sm:$0xff]
    %v2855 = vld [vmem:[#allocation22 + $0x200] sm:$0xff]
    %v2856 = vld [vmem:[#allocation22 + $0x208] sm:$0xff]
    %v2857 = vld [vmem:[#allocation22 + $0x210] sm:$0xff]
    %v2858 = vld [vmem:[#allocation22 + $0x218] sm:$0xff]
    %v2859 = vld [vmem:[#allocation22 + $0x220] sm:$0xff]
    %v2860 = vld [vmem:[#allocation22 + $0x228] sm:$0xff]
    %v2861 = vld [vmem:[#allocation22 + $0x230] sm:$0xff]
    %v2862 = vld [vmem:[#allocation22 + $0x238] sm:$0xff]
    %vm2863 = vcmask 523264
    %v2865 = vsel %vm2863, %v2789, 0
    %2867 = vmatpush.msra.mxu0 %v2806
    %2868 = vmatpush.msra.mxu0 %v2805
    %2869 = vmatpush.msra.mxu0 %v2804
    %2870 = vmatpush.msra.mxu0 %v2803
    %2871 = vmatpush.msra.mxu0 %v2802
    %2872 = vmatpush.msra.mxu0 %v2801
    %2873 = vmatpush.msra.mxu0 %v2800
    %2874 = vmatpush.msra.mxu0 %v2799
    %2875 = vmatpush.msra.mxu0 %v2798
    %2876 = vmatpush.msra.mxu0 %v2797
    %2877 = vmatpush.msra.mxu0 %v2796
    %2878 = vmatpush.msra.mxu0 %v2795
    %2879 = vmatpush.msra.mxu0 %v2794
    %2880 = vmatpush.msra.mxu0 %v2793
    %2881 = vmatpush.msra.mxu0 %v2792
    %2882 = vmatpush.msra.mxu0 %v2791
    %2883 = vmatmul.f32.gmra.mxu0 %v2469
    %v2884 = vpop.f32.mrf.mxu0
    %v2885 = vadd.f32 0.0, %v2884
    %2886 = vdwg.mxu0
    %2887 = vmatpush.msra.mxu0 %v2822
    %2888 = vmatpush.msra.mxu0 %v2821
    %2889 = vmatpush.msra.mxu0 %v2820
    %2890 = vmatpush.msra.mxu0 %v2819
    %2891 = vmatpush.msra.mxu0 %v2818
    %2892 = vmatpush.msra.mxu0 %v2817
    %2893 = vmatpush.msra.mxu0 %v2816
    %2894 = vmatpush.msra.mxu0 %v2815
    %2895 = vmatpush.msra.mxu0 %v2814
    %2896 = vmatpush.msra.mxu0 %v2813
    %2897 = vmatpush.msra.mxu0 %v2812
    %2898 = vmatpush.msra.mxu0 %v2811
    %2899 = vmatpush.msra.mxu0 %v2810
    %2900 = vmatpush.msra.mxu0 %v2809
    %2901 = vmatpush.msra.mxu0 %v2808
    %2902 = vmatpush.msra.mxu0 %v2807
    %2903 = vmatmul.f32.gmra.mxu0 %v2549
    %v2904 = vpop.f32.mrf.mxu0
    %v2905 = vadd.f32 %v2885, %v2904
    %2906 = vdwg.mxu0
    %2907 = vmatpush.msra.mxu0 %v2838
    %2908 = vmatpush.msra.mxu0 %v2837
    %2909 = vmatpush.msra.mxu0 %v2836
    %2910 = vmatpush.msra.mxu0 %v2835
    %2911 = vmatpush.msra.mxu0 %v2834
    %2912 = vmatpush.msra.mxu0 %v2833
    %2913 = vmatpush.msra.mxu0 %v2832
    %2914 = vmatpush.msra.mxu0 %v2831
    %2915 = vmatpush.msra.mxu0 %v2830
    %2916 = vmatpush.msra.mxu0 %v2829
    %2917 = vmatpush.msra.mxu0 %v2828
    %2918 = vmatpush.msra.mxu0 %v2827
    %2919 = vmatpush.msra.mxu0 %v2826
    %2920 = vmatpush.msra.mxu0 %v2825
    %2921 = vmatpush.msra.mxu0 %v2824
    %2922 = vmatpush.msra.mxu0 %v2823
    %2923 = vmatmul.f32.gmra.mxu0 %v2629
    %v2924 = vpop.f32.mrf.mxu0
    %v2925 = vadd.f32 %v2905, %v2924
    %2926 = vdwg.mxu0
    %2927 = vmatpush.msra.mxu0 %v2854
    %2928 = vmatpush.msra.mxu0 %v2853
    %2929 = vmatpush.msra.mxu0 %v2852
    %2930 = vmatpush.msra.mxu0 %v2851
    %2931 = vmatpush.msra.mxu0 %v2850
    %2932 = vmatpush.msra.mxu0 %v2849
    %2933 = vmatpush.msra.mxu0 %v2848
    %2934 = vmatpush.msra.mxu0 %v2847
    %2935 = vmatpush.msra.mxu0 %v2846
    %2936 = vmatpush.msra.mxu0 %v2845
    %2937 = vmatpush.msra.mxu0 %v2844
    %2938 = vmatpush.msra.mxu0 %v2843
    %2939 = vmatpush.msra.mxu0 %v2842
    %2940 = vmatpush.msra.mxu0 %v2841
    %2941 = vmatpush.msra.mxu0 %v2840
    %2942 = vmatpush.msra.mxu0 %v2839
    %2943 = vmatmul.f32.gmra.mxu0 %v2709
    %v2944 = vpop.f32.mrf.mxu0
    %v2945 = vadd.f32 %v2925, %v2944
    %2946 = vdwg.mxu0
    %2947 = vmatpush.msra.mxu0 0.0
    %2948 = vmatpush.msra.mxu0 0.0
    %2949 = vmatpush.msra.mxu0 0.0
    %2950 = vmatpush.msra.mxu0 0.0
    %2951 = vmatpush.msra.mxu0 0.0
    %2952 = vmatpush.msra.mxu0 0.0
    %2953 = vmatpush.msra.mxu0 0.0
    %2954 = vmatpush.msra.mxu0 0.0
    %2955 = vmatpush.msra.mxu0 %v2862
    %2956 = vmatpush.msra.mxu0 %v2861
    %2957 = vmatpush.msra.mxu0 %v2860
    %2958 = vmatpush.msra.mxu0 %v2859
    %2959 = vmatpush.msra.mxu0 %v2858
    %2960 = vmatpush.msra.mxu0 %v2857
    %2961 = vmatpush.msra.mxu0 %v2856
    %2962 = vmatpush.msra.mxu0 %v2855
    %2963 = vmatmul.f32.gmra.mxu0 %v2865
    %v2964 = vpop.f32.mrf.mxu0
    %v2965 = vadd.f32 %v2945, %v2964
    %2966 = vdwg.mxu0
    %v2967 = vmul.f32 %v2469, %v2469
    %v2968 = vmul.f32 %v2549, %v2549
    %v2969 = vmul.f32 %v2629, %v2629
    %v2970 = vmul.f32 %v2709, %v2709
    %v2971 = vmul.f32 %v2789, %v2789
    %v2973 = vsel %vm2863, %v2971, 0
    %2975 = vmatpush.msra.mxu0 %v2806
    %2976 = vmatpush.msra.mxu0 %v2805
    %2977 = vmatpush.msra.mxu0 %v2804
    %2978 = vmatpush.msra.mxu0 %v2803
    %2979 = vmatpush.msra.mxu0 %v2802
    %2980 = vmatpush.msra.mxu0 %v2801
    %2981 = vmatpush.msra.mxu0 %v2800
    %2982 = vmatpush.msra.mxu0 %v2799
    %2983 = vmatpush.msra.mxu0 %v2798
    %2984 = vmatpush.msra.mxu0 %v2797
    %2985 = vmatpush.msra.mxu0 %v2796
    %2986 = vmatpush.msra.mxu0 %v2795
    %2987 = vmatpush.msra.mxu0 %v2794
    %2988 = vmatpush.msra.mxu0 %v2793
    %2989 = vmatpush.msra.mxu0 %v2792
    %2990 = vmatpush.msra.mxu0 %v2791
    %2991 = vmatmul.f32.gmra.mxu0 %v2967
    %v2992 = vpop.f32.mrf.mxu0
    %v2993 = vadd.f32 0.0, %v2992
    %2994 = vdwg.mxu0
    %2995 = vmatpush.msra.mxu0 %v2822
    %2996 = vmatpush.msra.mxu0 %v2821
    %2997 = vmatpush.msra.mxu0 %v2820
    %2998 = vmatpush.msra.mxu0 %v2819
    %2999 = vmatpush.msra.mxu0 %v2818
    %3000 = vmatpush.msra.mxu0 %v2817
    %3001 = vmatpush.msra.mxu0 %v2816
    %3002 = vmatpush.msra.mxu0 %v2815
    %3003 = vmatpush.msra.mxu0 %v2814
    %3004 = vmatpush.msra.mxu0 %v2813
    %3005 = vmatpush.msra.mxu0 %v2812
    %3006 = vmatpush.msra.mxu0 %v2811
    %3007 = vmatpush.msra.mxu0 %v2810
    %3008 = vmatpush.msra.mxu0 %v2809
    %3009 = vmatpush.msra.mxu0 %v2808
    %3010 = vmatpush.msra.mxu0 %v2807
    %3011 = vmatmul.f32.gmra.mxu0 %v2968
    %v3012 = vpop.f32.mrf.mxu0
    %v3013 = vadd.f32 %v2993, %v3012
    %3014 = vdwg.mxu0
    %3015 = vmatpush.msra.mxu0 %v2838
    %3016 = vmatpush.msra.mxu0 %v2837
    %3017 = vmatpush.msra.mxu0 %v2836
    %3018 = vmatpush.msra.mxu0 %v2835
    %3019 = vmatpush.msra.mxu0 %v2834
    %3020 = vmatpush.msra.mxu0 %v2833
    %3021 = vmatpush.msra.mxu0 %v2832
    %3022 = vmatpush.msra.mxu0 %v2831
    %3023 = vmatpush.msra.mxu0 %v2830
    %3024 = vmatpush.msra.mxu0 %v2829
    %3025 = vmatpush.msra.mxu0 %v2828
    %3026 = vmatpush.msra.mxu0 %v2827
    %3027 = vmatpush.msra.mxu0 %v2826
    %3028 = vmatpush.msra.mxu0 %v2825
    %3029 = vmatpush.msra.mxu0 %v2824
    %3030 = vmatpush.msra.mxu0 %v2823
    %3031 = vmatmul.f32.gmra.mxu0 %v2969
    %v3032 = vpop.f32.mrf.mxu0
    %v3033 = vadd.f32 %v3013, %v3032
    %3034 = vdwg.mxu0
    %3035 = vmatpush.msra.mxu0 %v2854
    %3036 = vmatpush.msra.mxu0 %v2853
    %3037 = vmatpush.msra.mxu0 %v2852
    %3038 = vmatpush.msra.mxu0 %v2851
    %3039 = vmatpush.msra.mxu0 %v2850
    %3040 = vmatpush.msra.mxu0 %v2849
    %3041 = vmatpush.msra.mxu0 %v2848
    %3042 = vmatpush.msra.mxu0 %v2847
    %3043 = vmatpush.msra.mxu0 %v2846
    %3044 = vmatpush.msra.mxu0 %v2845
    %3045 = vmatpush.msra.mxu0 %v2844
    %3046 = vmatpush.msra.mxu0 %v2843
    %3047 = vmatpush.msra.mxu0 %v2842
    %3048 = vmatpush.msra.mxu0 %v2841
    %3049 = vmatpush.msra.mxu0 %v2840
    %3050 = vmatpush.msra.mxu0 %v2839
    %3051 = vmatmul.f32.gmra.mxu0 %v2970
    %v3052 = vpop.f32.mrf.mxu0
    %v3053 = vadd.f32 %v3033, %v3052
    %3054 = vdwg.mxu0
    %3055 = vmatpush.msra.mxu0 0.0
    %3056 = vmatpush.msra.mxu0 0.0
    %3057 = vmatpush.msra.mxu0 0.0
    %3058 = vmatpush.msra.mxu0 0.0
    %3059 = vmatpush.msra.mxu0 0.0
    %3060 = vmatpush.msra.mxu0 0.0
    %3061 = vmatpush.msra.mxu0 0.0
    %3062 = vmatpush.msra.mxu0 0.0
    %3063 = vmatpush.msra.mxu0 %v2862
    %3064 = vmatpush.msra.mxu0 %v2861
    %3065 = vmatpush.msra.mxu0 %v2860
    %3066 = vmatpush.msra.mxu0 %v2859
    %3067 = vmatpush.msra.mxu0 %v2858
    %3068 = vmatpush.msra.mxu0 %v2857
    %3069 = vmatpush.msra.mxu0 %v2856
    %3070 = vmatpush.msra.mxu0 %v2855
    %3071 = vmatmul.f32.gmra.mxu0 %v2973
    %v3072 = vpop.f32.mrf.mxu0
    %v3073 = vadd.f32 %v3053, %v3072
    %3074 = vdwg.mxu0
    %v3075 = vsel %vm2863, %v2965, 0.0
    %v3076 = vrot.slane %v3075, 4
    %v3077 = vadd.f32 %v3075, %v3076
    %v3078 = vrot.slane %v3077, 2
    %v3079 = vadd.f32 %v3077, %v3078
    %v3080 = vrot.slane %v3079, 1
    %v3081 = vadd.f32 %v3079, %v3080
    %v3082 = vmul.f32 %v3081, 0.013888889
    %v3083 = vsel %vm2863, %v3073, 0.0
    %v3084 = vrot.slane %v3083, 4
    %v3085 = vadd.f32 %v3083, %v3084
    %v3086 = vrot.slane %v3085, 2
    %v3087 = vadd.f32 %v3085, %v3086
    %v3088 = vrot.slane %v3087, 1
    %v3089 = vadd.f32 %v3087, %v3088
    %v3090 = vmul.f32 %v3089, 0.013888889
    %v3091 = vmul.f32 %v3082, %v3082
    %v3092 = vsub.f32 %v3090, %v3091
    %v3093 = vld [vmem:[#allocation19] sm:$0x1]
    %v3094 = vadd.f32 %v3092, 1e-05
    %v3095 = vrsqrt.pop %v3094
    %v3096 = vmul.f32 %v3095, %v3094
    %v3097 = vmul.f32 %v3096, %v3095
    %v3098 = vmul.f32 0.5, %v3097
    %v3099 = vsub.f32 1.5, %v3098
    %v3100 = vmul.f32 %v3095, %v3099
    %vm3101 = vweird.f32 %v3094
    %vm3102 = vweird.f32 %v3095
    %vm3103 = vmor %vm3101, %vm3102
    %v3104 = vsel %vm3103, %v3095, %v3100
    %v3105 = vmul.f32 %v3093, %v3104
    %v3106 = vld [vmem:[#allocation21] sm:$0x1]
    %v3107 = vmul.f32 %v3082, %v3105
    %v3108 = vsub.f32 %v3106, %v3107
    %v3109 = vld [vmem:[#allocation24] sm:$0xff]
    %v3110 = vld [vmem:[#allocation24 + $0x8] sm:$0xff]
    %v3111 = vld [vmem:[#allocation24 + $0x10] sm:$0xff]
    %v3112 = vld [vmem:[#allocation24 + $0x18] sm:$0xff]
    %v3113 = vld [vmem:[#allocation24 + $0x20] sm:$0xff]
    %v3114 = vld [vmem:[#allocation24 + $0x28] sm:$0xff]
    %v3115 = vld [vmem:[#allocation24 + $0x30] sm:$0xff]
    %v3116 = vld [vmem:[#allocation24 + $0x38] sm:$0xff]
    %v3117 = vld [vmem:[#allocation24 + $0x40] sm:$0xff]
    %v3118 = vld [vmem:[#allocation24 + $0x48] sm:$0xff]
    %v3119 = vld [vmem:[#allocation24 + $0x50] sm:$0xff]
    %v3120 = vld [vmem:[#allocation24 + $0x58] sm:$0xff]
    %v3121 = vld [vmem:[#allocation24 + $0x60] sm:$0xff]
    %v3122 = vld [vmem:[#allocation24 + $0x68] sm:$0xff]
    %v3123 = vld [vmem:[#allocation24 + $0x70] sm:$0xff]
    %v3124 = vld [vmem:[#allocation24 + $0x78] sm:$0xff]
    %v3125 = vld [vmem:[#allocation24 + $0x80] sm:$0xff]
    %v3126 = vld [vmem:[#allocation24 + $0x88] sm:$0xff]
    %v3127 = vld [vmem:[#allocation24 + $0x90] sm:$0xff]
    %v3128 = vld [vmem:[#allocation24 + $0x98] sm:$0xff]
    %v3129 = vld [vmem:[#allocation24 + $0xa0] sm:$0xff]
    %v3130 = vld [vmem:[#allocation24 + $0xa8] sm:$0xff]
    %v3131 = vld [vmem:[#allocation24 + $0xb0] sm:$0xff]
    %v3132 = vld [vmem:[#allocation24 + $0xb8] sm:$0xff]
    %v3133 = vld [vmem:[#allocation24 + $0xc0] sm:$0xff]
    %v3134 = vld [vmem:[#allocation24 + $0xc8] sm:$0xff]
    %v3135 = vld [vmem:[#allocation24 + $0xd0] sm:$0xff]
    %v3136 = vld [vmem:[#allocation24 + $0xd8] sm:$0xff]
    %v3137 = vld [vmem:[#allocation24 + $0xe0] sm:$0xff]
    %v3138 = vld [vmem:[#allocation24 + $0xe8] sm:$0xff]
    %v3139 = vld [vmem:[#allocation24 + $0xf0] sm:$0xff]
    %v3140 = vld [vmem:[#allocation24 + $0xf8] sm:$0xff]
    %v3141 = vld [vmem:[#allocation24 + $0x100] sm:$0xff]
    %v3142 = vld [vmem:[#allocation24 + $0x108] sm:$0xff]
    %v3143 = vld [vmem:[#allocation24 + $0x110] sm:$0xff]
    %v3144 = vld [vmem:[#allocation24 + $0x118] sm:$0xff]
    %v3145 = vld [vmem:[#allocation24 + $0x120] sm:$0xff]
    %v3146 = vld [vmem:[#allocation24 + $0x128] sm:$0xff]
    %v3147 = vld [vmem:[#allocation24 + $0x130] sm:$0xff]
    %v3148 = vld [vmem:[#allocation24 + $0x138] sm:$0xff]
    %v3150 = vsel %vm2863, %v3105, 0
    %3152 = vmatpush.msra.mxu0 0.0
    %3153 = vmatpush.msra.mxu0 0.0
    %3154 = vmatpush.msra.mxu0 0.0
    %3155 = vmatpush.msra.mxu0 0.0
    %3156 = vmatpush.msra.mxu0 0.0
    %3157 = vmatpush.msra.mxu0 0.0
    %3158 = vmatpush.msra.mxu0 0.0
    %3159 = vmatpush.msra.mxu0 0.0
    %3160 = vmatpush.msra.mxu0 %v3144
    %3161 = vmatpush.msra.mxu0 %v3139
    %3162 = vmatpush.msra.mxu0 %v3134
    %3163 = vmatpush.msra.mxu0 %v3129
    %3164 = vmatpush.msra.mxu0 %v3124
    %3165 = vmatpush.msra.mxu0 %v3119
    %3166 = vmatpush.msra.mxu0 %v3114
    %3167 = vmatpush.msra.mxu0 %v3109
    %3168 = vmatmul.f32.gmra.mxu0 %v3150
    %v3169 = vpop.f32.mrf.mxu0
    %v3170 = vadd.f32 0.0, %v3169
    %3171 = vdwg.mxu0
    %3172 = vmatpush.msra.mxu0 0.0
    %3173 = vmatpush.msra.mxu0 0.0
    %3174 = vmatpush.msra.mxu0 0.0
    %3175 = vmatpush.msra.mxu0 0.0
    %3176 = vmatpush.msra.mxu0 0.0
    %3177 = vmatpush.msra.mxu0 0.0
    %3178 = vmatpush.msra.mxu0 0.0
    %3179 = vmatpush.msra.mxu0 0.0
    %3180 = vmatpush.msra.mxu0 %v3145
    %3181 = vmatpush.msra.mxu0 %v3140
    %3182 = vmatpush.msra.mxu0 %v3135
    %3183 = vmatpush.msra.mxu0 %v3130
    %3184 = vmatpush.msra.mxu0 %v3125
    %3185 = vmatpush.msra.mxu0 %v3120
    %3186 = vmatpush.msra.mxu0 %v3115
    %3187 = vmatpush.msra.mxu0 %v3110
    %3188 = vmatmul.f32.gmra.mxu0 %v3150
    %v3189 = vpop.f32.mrf.mxu0
    %v3190 = vadd.f32 0.0, %v3189
    %3191 = vdwg.mxu0
    %3192 = vmatpush.msra.mxu0 0.0
    %3193 = vmatpush.msra.mxu0 0.0
    %3194 = vmatpush.msra.mxu0 0.0
    %3195 = vmatpush.msra.mxu0 0.0
    %3196 = vmatpush.msra.mxu0 0.0
    %3197 = vmatpush.msra.mxu0 0.0
    %3198 = vmatpush.msra.mxu0 0.0
    %3199 = vmatpush.msra.mxu0 0.0
    %3200 = vmatpush.msra.mxu0 %v3146
    %3201 = vmatpush.msra.mxu0 %v3141
    %3202 = vmatpush.msra.mxu0 %v3136
    %3203 = vmatpush.msra.mxu0 %v3131
    %3204 = vmatpush.msra.mxu0 %v3126
    %3205 = vmatpush.msra.mxu0 %v3121
    %3206 = vmatpush.msra.mxu0 %v3116
    %3207 = vmatpush.msra.mxu0 %v3111
    %3208 = vmatmul.f32.gmra.mxu0 %v3150
    %v3209 = vpop.f32.mrf.mxu0
    %v3210 = vadd.f32 0.0, %v3209
    %3211 = vdwg.mxu0
    %3212 = vmatpush.msra.mxu0 0.0
    %3213 = vmatpush.msra.mxu0 0.0
    %3214 = vmatpush.msra.mxu0 0.0
    %3215 = vmatpush.msra.mxu0 0.0
    %3216 = vmatpush.msra.mxu0 0.0
    %3217 = vmatpush.msra.mxu0 0.0
    %3218 = vmatpush.msra.mxu0 0.0
    %3219 = vmatpush.msra.mxu0 0.0
    %3220 = vmatpush.msra.mxu0 %v3147
    %3221 = vmatpush.msra.mxu0 %v3142
    %3222 = vmatpush.msra.mxu0 %v3137
    %3223 = vmatpush.msra.mxu0 %v3132
    %3224 = vmatpush.msra.mxu0 %v3127
    %3225 = vmatpush.msra.mxu0 %v3122
    %3226 = vmatpush.msra.mxu0 %v3117
    %3227 = vmatpush.msra.mxu0 %v3112
    %3228 = vmatmul.f32.gmra.mxu0 %v3150
    %v3229 = vpop.f32.mrf.mxu0
    %v3230 = vadd.f32 0.0, %v3229
    %3231 = vdwg.mxu0
    %3232 = vmatpush.msra.mxu0 0.0
    %3233 = vmatpush.msra.mxu0 0.0
    %3234 = vmatpush.msra.mxu0 0.0
    %3235 = vmatpush.msra.mxu0 0.0
    %3236 = vmatpush.msra.mxu0 0.0
    %3237 = vmatpush.msra.mxu0 0.0
    %3238 = vmatpush.msra.mxu0 0.0
    %3239 = vmatpush.msra.mxu0 0.0
    %3240 = vmatpush.msra.mxu0 %v3148
    %3241 = vmatpush.msra.mxu0 %v3143
    %3242 = vmatpush.msra.mxu0 %v3138
    %3243 = vmatpush.msra.mxu0 %v3133
    %3244 = vmatpush.msra.mxu0 %v3128
    %3245 = vmatpush.msra.mxu0 %v3123
    %3246 = vmatpush.msra.mxu0 %v3118
    %3247 = vmatpush.msra.mxu0 %v3113
    %3248 = vmatmul.f32.gmra.mxu0 %v3150
    %v3249 = vpop.f32.mrf.mxu0
    %v3250 = vadd.f32 0.0, %v3249
    %3251 = vdwg.mxu0
    %v3253 = vsel %vm2863, %v3108, 0
    %3255 = vmatpush.msra.mxu0 0.0
    %3256 = vmatpush.msra.mxu0 0.0
    %3257 = vmatpush.msra.mxu0 0.0
    %3258 = vmatpush.msra.mxu0 0.0
    %3259 = vmatpush.msra.mxu0 0.0
    %3260 = vmatpush.msra.mxu0 0.0
    %3261 = vmatpush.msra.mxu0 0.0
    %3262 = vmatpush.msra.mxu0 0.0
    %3263 = vmatpush.msra.mxu0 %v3144
    %3264 = vmatpush.msra.mxu0 %v3139
    %3265 = vmatpush.msra.mxu0 %v3134
    %3266 = vmatpush.msra.mxu0 %v3129
    %3267 = vmatpush.msra.mxu0 %v3124
    %3268 = vmatpush.msra.mxu0 %v3119
    %3269 = vmatpush.msra.mxu0 %v3114
    %3270 = vmatpush.msra.mxu0 %v3109
    %3271 = vmatmul.f32.gmra.mxu0 %v3253
    %v3272 = vpop.f32.mrf.mxu0
    %v3273 = vadd.f32 0.0, %v3272
    %3274 = vdwg.mxu0
    %3275 = vmatpush.msra.mxu0 0.0
    %3276 = vmatpush.msra.mxu0 0.0
    %3277 = vmatpush.msra.mxu0 0.0
    %3278 = vmatpush.msra.mxu0 0.0
    %3279 = vmatpush.msra.mxu0 0.0
    %3280 = vmatpush.msra.mxu0 0.0
    %3281 = vmatpush.msra.mxu0 0.0
    %3282 = vmatpush.msra.mxu0 0.0
    %3283 = vmatpush.msra.mxu0 %v3145
    %3284 = vmatpush.msra.mxu0 %v3140
    %3285 = vmatpush.msra.mxu0 %v3135
    %3286 = vmatpush.msra.mxu0 %v3130
    %3287 = vmatpush.msra.mxu0 %v3125
    %3288 = vmatpush.msra.mxu0 %v3120
    %3289 = vmatpush.msra.mxu0 %v3115
    %3290 = vmatpush.msra.mxu0 %v3110
    %3291 = vmatmul.f32.gmra.mxu0 %v3253
    %v3292 = vpop.f32.mrf.mxu0
    %v3293 = vadd.f32 0.0, %v3292
    %3294 = vdwg.mxu0
    %3295 = vmatpush.msra.mxu0 0.0
    %3296 = vmatpush.msra.mxu0 0.0
    %3297 = vmatpush.msra.mxu0 0.0
    %3298 = vmatpush.msra.mxu0 0.0
    %3299 = vmatpush.msra.mxu0 0.0
    %3300 = vmatpush.msra.mxu0 0.0
    %3301 = vmatpush.msra.mxu0 0.0
    %3302 = vmatpush.msra.mxu0 0.0
    %3303 = vmatpush.msra.mxu0 %v3146
    %3304 = vmatpush.msra.mxu0 %v3141
    %3305 = vmatpush.msra.mxu0 %v3136
    %3306 = vmatpush.msra.mxu0 %v3131
    %3307 = vmatpush.msra.mxu0 %v3126
    %3308 = vmatpush.msra.mxu0 %v3121
    %3309 = vmatpush.msra.mxu0 %v3116
    %3310 = vmatpush.msra.mxu0 %v3111
    %3311 = vmatmul.f32.gmra.mxu0 %v3253
    %v3312 = vpop.f32.mrf.mxu0
    %v3313 = vadd.f32 0.0, %v3312
    %3314 = vdwg.mxu0
    %3315 = vmatpush.msra.mxu0 0.0
    %3316 = vmatpush.msra.mxu0 0.0
    %3317 = vmatpush.msra.mxu0 0.0
    %3318 = vmatpush.msra.mxu0 0.0
    %3319 = vmatpush.msra.mxu0 0.0
    %3320 = vmatpush.msra.mxu0 0.0
    %3321 = vmatpush.msra.mxu0 0.0
    %3322 = vmatpush.msra.mxu0 0.0
    %3323 = vmatpush.msra.mxu0 %v3147
    %3324 = vmatpush.msra.mxu0 %v3142
    %3325 = vmatpush.msra.mxu0 %v3137
    %3326 = vmatpush.msra.mxu0 %v3132
    %3327 = vmatpush.msra.mxu0 %v3127
    %3328 = vmatpush.msra.mxu0 %v3122
    %3329 = vmatpush.msra.mxu0 %v3117
    %3330 = vmatpush.msra.mxu0 %v3112
    %3331 = vmatmul.f32.gmra.mxu0 %v3253
    %v3332 = vpop.f32.mrf.mxu0
    %v3333 = vadd.f32 0.0, %v3332
    %3334 = vdwg.mxu0
    %3335 = vmatpush.msra.mxu0 0.0
    %3336 = vmatpush.msra.mxu0 0.0
    %3337 = vmatpush.msra.mxu0 0.0
    %3338 = vmatpush.msra.mxu0 0.0
    %3339 = vmatpush.msra.mxu0 0.0
    %3340 = vmatpush.msra.mxu0 0.0
    %3341 = vmatpush.msra.mxu0 0.0
    %3342 = vmatpush.msra.mxu0 0.0
    %3343 = vmatpush.msra.mxu0 %v3148
    %3344 = vmatpush.msra.mxu0 %v3143
    %3345 = vmatpush.msra.mxu0 %v3138
    %3346 = vmatpush.msra.mxu0 %v3133
    %3347 = vmatpush.msra.mxu0 %v3128
    %3348 = vmatpush.msra.mxu0 %v3123
    %3349 = vmatpush.msra.mxu0 %v3118
    %3350 = vmatpush.msra.mxu0 %v3113
    %3351 = vmatmul.f32.gmra.mxu0 %v3253
    %v3352 = vpop.f32.mrf.mxu0
    %v3353 = vadd.f32 0.0, %v3352
    %3354 = vdwg.mxu0
    %v3355 = vperm.slane %v3170, 0
    %v3356 = vperm.slane %v3190, 0
    %v3357 = vperm.slane %v3210, 0
    %v3358 = vperm.slane %v3230, 0
    %v3359 = vperm.slane %v3250, 0
    %v3360 = vmul.f32 %v2469, %v3355
    %v3361 = vmul.f32 %v2549, %v3356
    %v3362 = vmul.f32 %v2629, %v3357
    %v3363 = vmul.f32 %v2709, %v3358
    %v3364 = vmul.f32 %v2789, %v3359
    %v3365 = vperm.slane %v3273, 0
    %v3366 = vperm.slane %v3293, 0
    %v3367 = vperm.slane %v3313, 0
    %v3368 = vperm.slane %v3333, 0
    %v3369 = vperm.slane %v3353, 0
    %v3370 = vadd.f32 %v3360, %v3365
    %v3371 = vadd.f32 %v3361, %v3366
    %v3372 = vadd.f32 %v3362, %v3367
    %v3373 = vadd.f32 %v3363, %v3368
    %v3374 = vadd.f32 %v3364, %v3369
    %v3375 = vmax.f32 %v3370, 0.0
    %v3376 = vmax.f32 %v3371, 0.0
    %v3377 = vmax.f32 %v3372, 0.0
    %v3378 = vmax.f32 %v3373, 0.0
    %v3379 = vmax.f32 %v3374, 0.0
    %v3380 = vld [vmem:[#allocation25] sm:$0xff]
    %v3381 = vld [vmem:[#allocation25 + $0x8] sm:$0xff]
    %v3382 = vld [vmem:[#allocation25 + $0x10] sm:$0xff]
    %v3383 = vld [vmem:[#allocation25 + $0x18] sm:$0xff]
    %v3384 = vld [vmem:[#allocation25 + $0x20] sm:$0xff]
    %v3385 = vld [vmem:[#allocation25 + $0x28] sm:$0xff]
    %v3386 = vld [vmem:[#allocation25 + $0x30] sm:$0xff]
    %v3387 = vld [vmem:[#allocation25 + $0x38] sm:$0xff]
    %v3388 = vld [vmem:[#allocation25 + $0x40] sm:$0xff]
    %v3389 = vld [vmem:[#allocation25 + $0x48] sm:$0xff]
    %v3390 = vld [vmem:[#allocation25 + $0x50] sm:$0xff]
    %v3391 = vld [vmem:[#allocation25 + $0x58] sm:$0xff]
    %v3392 = vld [vmem:[#allocation25 + $0x60] sm:$0xff]
    %v3393 = vld [vmem:[#allocation25 + $0x68] sm:$0xff]
    %v3394 = vld [vmem:[#allocation25 + $0x70] sm:$0xff]
    %v3395 = vld [vmem:[#allocation25 + $0x78] sm:$0xff]
    %v3396 = vld [vmem:[#allocation25 + $0x80] sm:$0xff]
    %v3397 = vld [vmem:[#allocation25 + $0x88] sm:$0xff]
    %v3398 = vld [vmem:[#allocation25 + $0x90] sm:$0xff]
    %v3399 = vld [vmem:[#allocation25 + $0x98] sm:$0xff]
    %v3400 = vld [vmem:[#allocation25 + $0xa0] sm:$0xff]
    %v3401 = vld [vmem:[#allocation25 + $0xa8] sm:$0xff]
    %v3402 = vld [vmem:[#allocation25 + $0xb0] sm:$0xff]
    %v3403 = vld [vmem:[#allocation25 + $0xb8] sm:$0xff]
    %v3404 = vld [vmem:[#allocation25 + $0xc0] sm:$0xff]
    %v3405 = vld [vmem:[#allocation25 + $0xc8] sm:$0xff]
    %v3406 = vld [vmem:[#allocation25 + $0xd0] sm:$0xff]
    %v3407 = vld [vmem:[#allocation25 + $0xd8] sm:$0xff]
    %v3408 = vld [vmem:[#allocation25 + $0xe0] sm:$0xff]
    %v3409 = vld [vmem:[#allocation25 + $0xe8] sm:$0xff]
    %v3410 = vld [vmem:[#allocation25 + $0xf0] sm:$0xff]
    %v3411 = vld [vmem:[#allocation25 + $0xf8] sm:$0xff]
    %v3412 = vld [vmem:[#allocation25 + $0x100] sm:$0xff]
    %v3413 = vld [vmem:[#allocation25 + $0x108] sm:$0xff]
    %v3414 = vld [vmem:[#allocation25 + $0x110] sm:$0xff]
    %v3415 = vld [vmem:[#allocation25 + $0x118] sm:$0xff]
    %v3416 = vld [vmem:[#allocation25 + $0x120] sm:$0xff]
    %v3417 = vld [vmem:[#allocation25 + $0x128] sm:$0xff]
    %v3418 = vld [vmem:[#allocation25 + $0x130] sm:$0xff]
    %v3419 = vld [vmem:[#allocation25 + $0x138] sm:$0xff]
    %v3420 = vld [vmem:[#allocation25 + $0x140] sm:$0xff]
    %v3421 = vld [vmem:[#allocation25 + $0x148] sm:$0xff]
    %v3422 = vld [vmem:[#allocation25 + $0x150] sm:$0xff]
    %v3423 = vld [vmem:[#allocation25 + $0x158] sm:$0xff]
    %v3424 = vld [vmem:[#allocation25 + $0x160] sm:$0xff]
    %v3425 = vld [vmem:[#allocation25 + $0x168] sm:$0xff]
    %v3426 = vld [vmem:[#allocation25 + $0x170] sm:$0xff]
    %v3427 = vld [vmem:[#allocation25 + $0x178] sm:$0xff]
    %v3428 = vld [vmem:[#allocation25 + $0x180] sm:$0xff]
    %v3429 = vld [vmem:[#allocation25 + $0x188] sm:$0xff]
    %v3430 = vld [vmem:[#allocation25 + $0x190] sm:$0xff]
    %v3431 = vld [vmem:[#allocation25 + $0x198] sm:$0xff]
    %v3432 = vld [vmem:[#allocation25 + $0x1a0] sm:$0xff]
    %v3433 = vld [vmem:[#allocation25 + $0x1a8] sm:$0xff]
    %v3434 = vld [vmem:[#allocation25 + $0x1b0] sm:$0xff]
    %v3435 = vld [vmem:[#allocation25 + $0x1b8] sm:$0xff]
    %v3436 = vld [vmem:[#allocation25 + $0x1c0] sm:$0xff]
    %v3437 = vld [vmem:[#allocation25 + $0x1c8] sm:$0xff]
    %v3438 = vld [vmem:[#allocation25 + $0x1d0] sm:$0xff]
    %v3439 = vld [vmem:[#allocation25 + $0x1d8] sm:$0xff]
    %v3440 = vld [vmem:[#allocation25 + $0x1e0] sm:$0xff]
    %v3441 = vld [vmem:[#allocation25 + $0x1e8] sm:$0xff]
    %v3442 = vld [vmem:[#allocation25 + $0x1f0] sm:$0xff]
    %v3443 = vld [vmem:[#allocation25 + $0x1f8] sm:$0xff]
    %v3444 = vld [vmem:[#allocation25 + $0x200] sm:$0xff]
    %v3445 = vld [vmem:[#allocation25 + $0x208] sm:$0xff]
    %v3446 = vld [vmem:[#allocation25 + $0x210] sm:$0xff]
    %v3447 = vld [vmem:[#allocation25 + $0x218] sm:$0xff]
    %v3448 = vld [vmem:[#allocation25 + $0x220] sm:$0xff]
    %v3449 = vld [vmem:[#allocation25 + $0x228] sm:$0xff]
    %v3450 = vld [vmem:[#allocation25 + $0x230] sm:$0xff]
    %v3451 = vld [vmem:[#allocation25 + $0x238] sm:$0xff]
    %v3452 = vld [vmem:[#allocation27] sm:$0x1]
    %v3454 = vperm.slane %v3452, 0
    %v3457 = vsel %vm2863, %v3379, 0
    %3459 = vmatpush.msra.mxu0 %v3395
    %3460 = vmatpush.msra.mxu0 %v3394
    %3461 = vmatpush.msra.mxu0 %v3393
    %3462 = vmatpush.msra.mxu0 %v3392
    %3463 = vmatpush.msra.mxu0 %v3391
    %3464 = vmatpush.msra.mxu0 %v3390
    %3465 = vmatpush.msra.mxu0 %v3389
    %3466 = vmatpush.msra.mxu0 %v3388
    %3467 = vmatpush.msra.mxu0 %v3387
    %3468 = vmatpush.msra.mxu0 %v3386
    %3469 = vmatpush.msra.mxu0 %v3385
    %3470 = vmatpush.msra.mxu0 %v3384
    %3471 = vmatpush.msra.mxu0 %v3383
    %3472 = vmatpush.msra.mxu0 %v3382
    %3473 = vmatpush.msra.mxu0 %v3381
    %3474 = vmatpush.msra.mxu0 %v3380
    %3475 = vmatmul.f32.gmra.mxu0 %v3375
    %v3476 = vpop.f32.mrf.mxu0
    %v3477 = vadd.f32 %v3454, %v3476
    %3478 = vdwg.mxu0
    %3479 = vmatpush.msra.mxu0 %v3411
    %3480 = vmatpush.msra.mxu0 %v3410
    %3481 = vmatpush.msra.mxu0 %v3409
    %3482 = vmatpush.msra.mxu0 %v3408
    %3483 = vmatpush.msra.mxu0 %v3407
    %3484 = vmatpush.msra.mxu0 %v3406
    %3485 = vmatpush.msra.mxu0 %v3405
    %3486 = vmatpush.msra.mxu0 %v3404
    %3487 = vmatpush.msra.mxu0 %v3403
    %3488 = vmatpush.msra.mxu0 %v3402
    %3489 = vmatpush.msra.mxu0 %v3401
    %3490 = vmatpush.msra.mxu0 %v3400
    %3491 = vmatpush.msra.mxu0 %v3399
    %3492 = vmatpush.msra.mxu0 %v3398
    %3493 = vmatpush.msra.mxu0 %v3397
    %3494 = vmatpush.msra.mxu0 %v3396
    %3495 = vmatmul.f32.gmra.mxu0 %v3376
    %v3496 = vpop.f32.mrf.mxu0
    %v3497 = vadd.f32 %v3477, %v3496
    %3498 = vdwg.mxu0
    %3499 = vmatpush.msra.mxu0 %v3427
    %3500 = vmatpush.msra.mxu0 %v3426
    %3501 = vmatpush.msra.mxu0 %v3425
    %3502 = vmatpush.msra.mxu0 %v3424
    %3503 = vmatpush.msra.mxu0 %v3423
    %3504 = vmatpush.msra.mxu0 %v3422
    %3505 = vmatpush.msra.mxu0 %v3421
    %3506 = vmatpush.msra.mxu0 %v3420
    %3507 = vmatpush.msra.mxu0 %v3419
    %3508 = vmatpush.msra.mxu0 %v3418
    %3509 = vmatpush.msra.mxu0 %v3417
    %3510 = vmatpush.msra.mxu0 %v3416
    %3511 = vmatpush.msra.mxu0 %v3415
    %3512 = vmatpush.msra.mxu0 %v3414
    %3513 = vmatpush.msra.mxu0 %v3413
    %3514 = vmatpush.msra.mxu0 %v3412
    %3515 = vmatmul.f32.gmra.mxu0 %v3377
    %v3516 = vpop.f32.mrf.mxu0
    %v3517 = vadd.f32 %v3497, %v3516
    %3518 = vdwg.mxu0
    %3519 = vmatpush.msra.mxu0 %v3443
    %3520 = vmatpush.msra.mxu0 %v3442
    %3521 = vmatpush.msra.mxu0 %v3441
    %3522 = vmatpush.msra.mxu0 %v3440
    %3523 = vmatpush.msra.mxu0 %v3439
    %3524 = vmatpush.msra.mxu0 %v3438
    %3525 = vmatpush.msra.mxu0 %v3437
    %3526 = vmatpush.msra.mxu0 %v3436
    %3527 = vmatpush.msra.mxu0 %v3435
    %3528 = vmatpush.msra.mxu0 %v3434
    %3529 = vmatpush.msra.mxu0 %v3433
    %3530 = vmatpush.msra.mxu0 %v3432
    %3531 = vmatpush.msra.mxu0 %v3431
    %3532 = vmatpush.msra.mxu0 %v3430
    %3533 = vmatpush.msra.mxu0 %v3429
    %3534 = vmatpush.msra.mxu0 %v3428
    %3535 = vmatmul.f32.gmra.mxu0 %v3378
    %v3536 = vpop.f32.mrf.mxu0
    %v3537 = vadd.f32 %v3517, %v3536
    %3538 = vdwg.mxu0
    %3539 = vmatpush.msra.mxu0 0.0
    %3540 = vmatpush.msra.mxu0 0.0
    %3541 = vmatpush.msra.mxu0 0.0
    %3542 = vmatpush.msra.mxu0 0.0
    %3543 = vmatpush.msra.mxu0 0.0
    %3544 = vmatpush.msra.mxu0 0.0
    %3545 = vmatpush.msra.mxu0 0.0
    %3546 = vmatpush.msra.mxu0 0.0
    %3547 = vmatpush.msra.mxu0 %v3451
    %3548 = vmatpush.msra.mxu0 %v3450
    %3549 = vmatpush.msra.mxu0 %v3449
    %3550 = vmatpush.msra.mxu0 %v3448
    %3551 = vmatpush.msra.mxu0 %v3447
    %3552 = vmatpush.msra.mxu0 %v3446
    %3553 = vmatpush.msra.mxu0 %v3445
    %3554 = vmatpush.msra.mxu0 %v3444
    %3555 = vmatmul.f32.gmra.mxu0 %v3457
    %v3556 = vpop.f32.mrf.mxu0
    %v3557 = vadd.f32 %v3537, %v3556
    %3558 = vdwg.mxu0
    %v3559 = vld [vmem:[#allocation28] sm:$0xff]
    %v3560 = vld [vmem:[#allocation28 + $0x8] sm:$0xff]
    %v3561 = vld [vmem:[#allocation28 + $0x10] sm:$0xff]
    %v3562 = vld [vmem:[#allocation28 + $0x18] sm:$0xff]
    %v3563 = vld [vmem:[#allocation28 + $0x20] sm:$0xff]
    %v3564 = vld [vmem:[#allocation28 + $0x28] sm:$0xff]
    %v3565 = vld [vmem:[#allocation28 + $0x30] sm:$0xff]
    %v3566 = vld [vmem:[#allocation28 + $0x38] sm:$0xff]
    %v3567 = vld [vmem:[#allocation28 + $0x40] sm:$0xff]
    %v3568 = vld [vmem:[#allocation28 + $0x48] sm:$0xff]
    %v3569 = vld [vmem:[#allocation28 + $0x50] sm:$0xff]
    %v3570 = vld [vmem:[#allocation28 + $0x58] sm:$0xff]
    %v3571 = vld [vmem:[#allocation28 + $0x60] sm:$0xff]
    %v3572 = vld [vmem:[#allocation28 + $0x68] sm:$0xff]
    %v3573 = vld [vmem:[#allocation28 + $0x70] sm:$0xff]
    %v3574 = vld [vmem:[#allocation28 + $0x78] sm:$0xff]
    %v3575 = vld [vmem:[#allocation28 + $0x80] sm:$0xff]
    %v3576 = vld [vmem:[#allocation28 + $0x88] sm:$0xff]
    %v3577 = vld [vmem:[#allocation28 + $0x90] sm:$0xff]
    %v3578 = vld [vmem:[#allocation28 + $0x98] sm:$0xff]
    %v3579 = vld [vmem:[#allocation28 + $0xa0] sm:$0xff]
    %v3580 = vld [vmem:[#allocation28 + $0xa8] sm:$0xff]
    %v3581 = vld [vmem:[#allocation28 + $0xb0] sm:$0xff]
    %v3582 = vld [vmem:[#allocation28 + $0xb8] sm:$0xff]
    %v3583 = vld [vmem:[#allocation28 + $0xc0] sm:$0xff]
    %v3584 = vld [vmem:[#allocation28 + $0xc8] sm:$0xff]
    %v3585 = vld [vmem:[#allocation28 + $0xd0] sm:$0xff]
    %v3586 = vld [vmem:[#allocation28 + $0xd8] sm:$0xff]
    %v3587 = vld [vmem:[#allocation28 + $0xe0] sm:$0xff]
    %v3588 = vld [vmem:[#allocation28 + $0xe8] sm:$0xff]
    %v3589 = vld [vmem:[#allocation28 + $0xf0] sm:$0xff]
    %v3590 = vld [vmem:[#allocation28 + $0xf8] sm:$0xff]
    %v3591 = vld [vmem:[#allocation30] sm:$0x3]
    %v3593 = vperm.slane %v3591, 0
    %v3594 = vperm.slane %v3591, 1
    %3597 = vmatpush.msra.mxu0 %v3589
    %3598 = vmatpush.msra.mxu0 %v3587
    %3599 = vmatpush.msra.mxu0 %v3585
    %3600 = vmatpush.msra.mxu0 %v3583
    %3601 = vmatpush.msra.mxu0 %v3581
    %3602 = vmatpush.msra.mxu0 %v3579
    %3603 = vmatpush.msra.mxu0 %v3577
    %3604 = vmatpush.msra.mxu0 %v3575
    %3605 = vmatpush.msra.mxu0 %v3573
    %3606 = vmatpush.msra.mxu0 %v3571
    %3607 = vmatpush.msra.mxu0 %v3569
    %3608 = vmatpush.msra.mxu0 %v3567
    %3609 = vmatpush.msra.mxu0 %v3565
    %3610 = vmatpush.msra.mxu0 %v3563
    %3611 = vmatpush.msra.mxu0 %v3561
    %3612 = vmatpush.msra.mxu0 %v3559
    %3613 = vmatmul.f32.gmra.mxu0 %v3557
    %v3614 = vpop.f32.mrf.mxu0
    %v3615 = vadd.f32 %v3593, %v3614
    %3616 = vdwg.mxu0
    %3617 = vmatpush.msra.mxu0 %v3590
    %3618 = vmatpush.msra.mxu0 %v3588
    %3619 = vmatpush.msra.mxu0 %v3586
    %3620 = vmatpush.msra.mxu0 %v3584
    %3621 = vmatpush.msra.mxu0 %v3582
    %3622 = vmatpush.msra.mxu0 %v3580
    %3623 = vmatpush.msra.mxu0 %v3578
    %3624 = vmatpush.msra.mxu0 %v3576
    %3625 = vmatpush.msra.mxu0 %v3574
    %3626 = vmatpush.msra.mxu0 %v3572
    %3627 = vmatpush.msra.mxu0 %v3570
    %3628 = vmatpush.msra.mxu0 %v3568
    %3629 = vmatpush.msra.mxu0 %v3566
    %3630 = vmatpush.msra.mxu0 %v3564
    %3631 = vmatpush.msra.mxu0 %v3562
    %3632 = vmatpush.msra.mxu0 %v3560
    %3633 = vmatmul.f32.gmra.mxu0 %v3557
    %v3634 = vpop.f32.mrf.mxu0
    %v3635 = vadd.f32 %v3594, %v3634
    %3636 = vdwg.mxu0
    %v3637 = vmax.f32 %v3615, 0.0
    %v3638 = vmax.f32 %v3635, 0.0
    %v3639 = vld [vmem:[#allocation31] sm:$0xff]
    %v3640 = vld [vmem:[#allocation31 + $0x8] sm:$0xff]
    %v3641 = vld [vmem:[#allocation31 + $0x10] sm:$0xff]
    %v3642 = vld [vmem:[#allocation31 + $0x18] sm:$0xff]
    %v3643 = vld [vmem:[#allocation31 + $0x20] sm:$0xff]
    %v3644 = vld [vmem:[#allocation31 + $0x28] sm:$0xff]
    %v3645 = vld [vmem:[#allocation31 + $0x30] sm:$0xff]
    %v3646 = vld [vmem:[#allocation31 + $0x38] sm:$0xff]
    %v3647 = vld [vmem:[#allocation31 + $0x40] sm:$0xff]
    %v3648 = vld [vmem:[#allocation31 + $0x48] sm:$0xff]
    %v3649 = vld [vmem:[#allocation31 + $0x50] sm:$0xff]
    %v3650 = vld [vmem:[#allocation31 + $0x58] sm:$0xff]
    %v3651 = vld [vmem:[#allocation31 + $0x60] sm:$0xff]
    %v3652 = vld [vmem:[#allocation31 + $0x68] sm:$0xff]
    %v3653 = vld [vmem:[#allocation31 + $0x70] sm:$0xff]
    %v3654 = vld [vmem:[#allocation31 + $0x78] sm:$0xff]
    %v3655 = vld [vmem:[#allocation31 + $0x80] sm:$0xff]
    %v3656 = vld [vmem:[#allocation31 + $0x88] sm:$0xff]
    %v3657 = vld [vmem:[#allocation31 + $0x90] sm:$0xff]
    %v3658 = vld [vmem:[#allocation31 + $0x98] sm:$0xff]
    %v3659 = vld [vmem:[#allocation31 + $0xa0] sm:$0xff]
    %v3660 = vld [vmem:[#allocation31 + $0xa8] sm:$0xff]
    %v3661 = vld [vmem:[#allocation31 + $0xb0] sm:$0xff]
    %v3662 = vld [vmem:[#allocation31 + $0xb8] sm:$0xff]
    %v3663 = vld [vmem:[#allocation31 + $0xc0] sm:$0xff]
    %v3664 = vld [vmem:[#allocation31 + $0xc8] sm:$0xff]
    %v3665 = vld [vmem:[#allocation31 + $0xd0] sm:$0xff]
    %v3666 = vld [vmem:[#allocation31 + $0xd8] sm:$0xff]
    %v3667 = vld [vmem:[#allocation31 + $0xe0] sm:$0xff]
    %v3668 = vld [vmem:[#allocation31 + $0xe8] sm:$0xff]
    %v3669 = vld [vmem:[#allocation31 + $0xf0] sm:$0xff]
    %v3670 = vld [vmem:[#allocation31 + $0xf8] sm:$0xff]
    %v3671 = vld [vmem:[#allocation33] sm:$0x1]
    %v3673 = vperm.slane %v3671, 0
    %3675 = vmatpush.msra.mxu0 %v3654
    %3676 = vmatpush.msra.mxu0 %v3653
    %3677 = vmatpush.msra.mxu0 %v3652
    %3678 = vmatpush.msra.mxu0 %v3651
    %3679 = vmatpush.msra.mxu0 %v3650
    %3680 = vmatpush.msra.mxu0 %v3649
    %3681 = vmatpush.msra.mxu0 %v3648
    %3682 = vmatpush.msra.mxu0 %v3647
    %3683 = vmatpush.msra.mxu0 %v3646
    %3684 = vmatpush.msra.mxu0 %v3645
    %3685 = vmatpush.msra.mxu0 %v3644
    %3686 = vmatpush.msra.mxu0 %v3643
    %3687 = vmatpush.msra.mxu0 %v3642
    %3688 = vmatpush.msra.mxu0 %v3641
    %3689 = vmatpush.msra.mxu0 %v3640
    %3690 = vmatpush.msra.mxu0 %v3639
    %3691 = vmatmul.f32.gmra.mxu0 %v3637
    %v3692 = vpop.f32.mrf.mxu0
    %v3693 = vadd.f32 %v3673, %v3692
    %3694 = vdwg.mxu0
    %3695 = vmatpush.msra.mxu0 %v3670
    %3696 = vmatpush.msra.mxu0 %v3669
    %3697 = vmatpush.msra.mxu0 %v3668
    %3698 = vmatpush.msra.mxu0 %v3667
    %3699 = vmatpush.msra.mxu0 %v3666
    %3700 = vmatpush.msra.mxu0 %v3665
    %3701 = vmatpush.msra.mxu0 %v3664
    %3702 = vmatpush.msra.mxu0 %v3663
    %3703 = vmatpush.msra.mxu0 %v3662
    %3704 = vmatpush.msra.mxu0 %v3661
    %3705 = vmatpush.msra.mxu0 %v3660
    %3706 = vmatpush.msra.mxu0 %v3659
    %3707 = vmatpush.msra.mxu0 %v3658
    %3708 = vmatpush.msra.mxu0 %v3657
    %3709 = vmatpush.msra.mxu0 %v3656
    %3710 = vmatpush.msra.mxu0 %v3655
    %3711 = vmatmul.f32.gmra.mxu0 %v3638
    %v3712 = vpop.f32.mrf.mxu0
    %v3713 = vadd.f32 %v3693, %v3712
    %3714 = vdwg.mxu0
    %v3715 = vlaneseq
    %v3716 = vand.u32 %v3715, 127
    %vm3717 = vcmp.lt.s32.totalorder %v3716, 7
    %v3718 = vsel %vm3717, %v3713, -1e+30
    %3719 = vmax.xlane.f32.xlu0 %v3718
    %v3720 = vpop.xlane.xlu0 %3719
    %v3721 = vsub.f32 %v3718, %v3720
    %v3722 = vmul.f32 %v3721, 1.442695
    %v3723 = vpow.pop %v3722
    %3724 = vadd.xlane.f32.xlu0 %v3723
    %v3725 = vpop.xlane.xlu0 %3724
    %v3726 = vlog2.pop %v3725
    %v3727 = vmul.f32 %v3726, 0.6931472
    %v3728 = vadd.f32 %v3720, %v3727
    %v3729 = vsub.f32 %v3713, %v3728
    %v3730 = vsel %vm3717, %v3729, %v3713
    %3731 = vst [vmem:[%s22] sm:$0xff] %v3730
    // Predicated region
    $region174: #{_lambda_.1} parent=1 // pred_check
      _
    $region175: #{_lambda_.1} parent=1 // pred_check_branch
      %3733 = sbr.rel (0) target = $region177
    $region176: #{_lambda_.1} parent=1 // pred_region
      _
    $region177: #{_lambda_.1} parent=1 // pred_fallthru
      _
    // Predicated region
    $region178: #{_lambda_.1} parent=1 // pred_check
      _
    $region179: #{_lambda_.1} parent=1 // pred_check_branch
      %3735 = sbr.rel (0) target = $region181
    $region180: #{_lambda_.1} parent=1 // pred_region
      _
    $region181: #{_lambda_.1} parent=1 // pred_fallthru
      _
    %3736 = vsyncpa [#allocation3], 1
    %3737 = vsyncpa [#allocation5], 1
    %3738 = vsyncpa [#allocation8], 1
    %3739 = vsyncpa [#allocation11], 1
    %3740 = vsyncpa [#allocation14], 1
    %3741 = vsyncpa [#allocation17], 1
    %3742 = vsyncpa [#allocation20], 1
    %3743 = vsyncpa [#allocation23], 1
    %3744 = vsyncpa [#allocation26], 1
    %3745 = vsyncpa [#allocation29], 1
    %3746 = vsyncpa [#allocation32], 1

</llo_original>
